<compile_context>
chip_gen: v6e
topology: v6e:2x2x1
jax: 0.10.0
libtpu: 0.0.40
codegen_flags: <defaults>
</compile_context>

<pallas_src>
import functools

import jax
import jax.numpy as jnp
from jax import lax
from jax.experimental import pallas as pl
from jax.experimental.pallas import tpu as pltpu

VMEM = pltpu.MemorySpace.VMEM


# ----------------------------- fused Pallas kernel -----------------------------

def _gru_cell(h, gx, whh, bhh, H):
    """One GRU step (PyTorch gate order r, z, n); everything rank-2.

    h   : (N, H)    current hidden (N = logical batch rows)
    gx  : (N, 3H)   precomputed x @ Wih + bih for this step
    whh : (H, 3H)   hidden-to-hidden weights (gates packed along lanes)
    bhh : (1, 3H)
    """
    gh = jnp.dot(h, whh, preferred_element_type=jnp.float32) + bhh
    rz = jax.nn.sigmoid(gx[:, :2 * H] + gh[:, :2 * H])   # r|z fused: one EUP push
    r = rz[:, :H]
    z = rz[:, H:]
    n = jnp.tanh(gx[:, 2 * H:] + r * gh[:, 2 * H:])
    return (1.0 - z) * n + z * h


def _lstnet_kernel(
    x_ref, xm_ref,
    emb_w_ref, emb_b_ref,
    conv_wx_ref, conv_we_ref, conv_b_ref,
    rnn_wih_ref, rnn_whh_ref, rnn_bih_ref, rnn_bhh_ref,
    skip_wih_ref, skip_whh_ref, skip_bih_ref, skip_bhh_ref,
    proj_wr_ref, proj_ws_ref, proj_b_ref,
    hw_wx_ref, hw_we_ref, hw_b_ref,
    out_ref,
    *, B, T, K, L, H, SH, c_in, E, skip_size, skip_num, ar_window,
):
    f32 = jnp.float32
    dot = functools.partial(jnp.dot, preferred_element_type=f32)

    x = x_ref[...]      # (T*B, c_in)   time-major-flat: row t*B + b
    xm = xm_ref[...]    # (T*B, FD)

    # ---- time-feature embedding: one 2-D matmul over all (t, b) rows ----
    emb = dot(xm, emb_w_ref[...]) + emb_b_ref[...]            # (T*B, E)

    # ---- Conv2d(1, C, (K, c_in+E)) as K pairs of shifted 2-D matmuls.
    #      Tap k of output row (l, b) consumes input row (l+k, b) = flat row
    #      (l*B + b) + k*B, so each tap is a contiguous static slice of x / emb.
    #      x- and embedding-halves of the kernel stay separate: no lane concat. ----
    conv_wx = conv_wx_ref[...]        # (K*c_in, C)
    conv_we = conv_we_ref[...]        # (K*E,    C)
    C = conv_wx.shape[-1]
    LB = L * B
    conv = jnp.zeros((LB, C), f32) + conv_b_ref[...]
    for k in range(K):                # static unroll over kernel taps
        conv = conv + dot(x[k * B:k * B + LB, :], conv_wx[k * c_in:(k + 1) * c_in, :])
        conv = conv + dot(emb[k * B:k * B + LB, :], conv_we[k * E:(k + 1) * E, :])
    c = jnp.maximum(conv, 0.0)        # ReLU; dropout = identity (eval)   (L*B, C)

    # ---- main GRU: input-to-hidden projection hoisted out of the recurrence ----
    gx_all = dot(c, rnn_wih_ref[...]) + rnn_bih_ref[...]      # (L*B, 3H)
    rnn_whh = rnn_whh_ref[...]        # loaded once, loop-invariant
    rnn_bhh = rnn_bhh_ref[...]
    h = jnp.zeros((B, H), f32)
    for t in range(L):                # static unroll (short fixed trip count)
        h = _gru_cell(h, gx_all[t * B:(t + 1) * B, :], rnn_whh, rnn_bhh, H)
    # h : (B, H) == final hidden of the main GRU

    # ---- skip GRU: logical row (j, b) at skip-step m reads time start + m*ss + j,
    #      i.e. flat row (start + m*ss + j)*B + b  ->  each step consumes one
    #      contiguous (ss*B, 3SH) block; all ss*B sequences advance together. ----
    start = L - skip_num * skip_size
    SB = skip_size * B
    gs_all = dot(c[start * B:(start + skip_num * skip_size) * B, :],
                 skip_wih_ref[...]) + skip_bih_ref[...]       # (sn*ss*B, 3SH)
    skip_whh = skip_whh_ref[...]
    skip_bhh = skip_bhh_ref[...]
    hs = jnp.zeros((SB, SH), f32)
    for m in range(skip_num):         # static unroll
        hs = _gru_cell(hs, gs_all[m * SB:(m + 1) * SB, :], skip_whh, skip_bhh, SH)
    # hs : (ss*B, SH), row ordering j*B + b  (same (b, j) pairing as the torch .view)

    # ---- projection Linear([r ; s]) ----
    out = dot(h, proj_wr_ref[...]) + proj_b_ref[...]          # (B, O)
    proj_ws = proj_ws_ref[...]        # (ss*SH, O)
    for j in range(skip_size):
        out = out + dot(hs[j * B:(j + 1) * B, :], proj_ws[j * SH:(j + 1) * SH, :])

    # ---- auto-regressive highway on the last ar_window rows of [x, emb] ----
    hw_wx = hw_wx_ref[...]            # (ar*c_in, O)
    hw_we = hw_we_ref[...]            # (ar*E,    O)
    out = out + hw_b_ref[...]
    for a in range(ar_window):
        r0 = (T - ar_window + a) * B
        out = out + dot(x[r0:r0 + B, :], hw_wx[a * c_in:(a + 1) * c_in, :])
        out = out + dot(emb[r0:r0 + B, :], hw_we[a * E:(a + 1) * E, :])

    out_ref[...] = out.astype(out_ref.dtype)


def lstnet_forward(packed, x, x_mark, y_mark, cfg):
    """Fused Pallas forward.  Returns (B, pred_len, c_out)."""
    del y_mark  # unused by the PyTorch forward
    B, T, c_in = x.shape
    K = cfg["kernel_size"]
    L = T - K + 1
    H, SH = cfg["hidden_size"], cfg["skip_hidden_size"]
    ss = cfg["skip_size"]
    sn = (T - K) // ss
    ar = cfg["ar_window"]
    E = cfg["embedding_dim"]
    O = cfg["pred_len"] * cfg["c_out"]

    # Time-major-flat inputs (row = t*B + b): every in-kernel matmul becomes a plain
    # rank-2 MXU dot and every per-tap / per-timestep access a contiguous static row
    # slice.  This tiny re-layout is done outside the kernel (XLA, ~2 KB of data).
    x_tm = jnp.transpose(x, (1, 0, 2)).reshape(T * B, c_in)
    xm_tm = jnp.transpose(x_mark, (1, 0, 2)).reshape(T * B, x_mark.shape[-1])

    kernel = functools.partial(
        _lstnet_kernel, B=B, T=T, K=K, L=L, H=H, SH=SH, c_in=c_in, E=E,
        skip_size=ss, skip_num=sn, ar_window=ar)

    args = (
        x_tm, xm_tm,
        packed["emb_w"], packed["emb_b"],
        packed["conv_wx"], packed["conv_we"], packed["conv_b"],
        packed["rnn_wih"], packed["rnn_whh"], packed["rnn_bih"], packed["rnn_bhh"],
        packed["skip_wih"], packed["skip_whh"], packed["skip_bih"], packed["skip_bhh"],
        packed["proj_wr"], packed["proj_ws"], packed["proj_b"],
        packed["hw_wx"], packed["hw_we"], packed["hw_b"],
    )
    out = pl.pallas_call(
        kernel,
        out_shape=jax.ShapeDtypeStruct((B, O), jnp.float32),
        in_specs=[pl.BlockSpec(memory_space=VMEM)] * len(args),
        out_specs=pl.BlockSpec(memory_space=VMEM),
    )(*args)
    # TODO(synk): shard a leading batch grid across the second TensorCore (v7x) once
    # B is large enough to matter; pointless at B=2.
    return out.reshape(B, cfg["pred_len"], cfg["c_out"])


# ----------------------------- parameter setup -----------------------------

def _uniform(key, shape, scale):
    return jax.random.uniform(key, shape, jnp.float32, -scale, scale)


def init_params(key, cfg):
    """PyTorch-layout parameters (used directly by the pure-JAX reference)."""
    c_in, c_out = cfg["c_in"], cfg["c_out"]
    K, C = cfg["kernel_size"], cfg["out_channels"]
    H, SH = cfg["hidden_size"], cfg["skip_hidden_size"]
    E = cfg["embedding_dim"]
    FD = cfg["freq_dim"]
    D = c_in + E
    out_dim = cfg["pred_len"] * c_out

    ks = jax.random.split(key, 16)
    p = {}
    p["emb_w"] = _uniform(ks[0], (E, FD), 1.0 / FD ** 0.5)          # Linear(FD, E)
    p["emb_b"] = _uniform(ks[1], (E,), 1.0 / FD ** 0.5)
    fan = K * D
    p["conv_w"] = _uniform(ks[2], (C, 1, K, D), 1.0 / fan ** 0.5)   # Conv2d(1, C, (K, D))
    p["conv_b"] = _uniform(ks[3], (C,), 1.0 / fan ** 0.5)
    p["rnn_wih"] = _uniform(ks[4], (3 * H, C), 1.0 / H ** 0.5)      # GRU(C, H)
    p["rnn_whh"] = _uniform(ks[5], (3 * H, H), 1.0 / H ** 0.5)
    p["rnn_bih"] = _uniform(ks[6], (3 * H,), 1.0 / H ** 0.5)
    p["rnn_bhh"] = _uniform(ks[7], (3 * H,), 1.0 / H ** 0.5)
    p["skip_wih"] = _uniform(ks[8], (3 * SH, C), 1.0 / SH ** 0.5)   # GRU(C, SH)
    p["skip_whh"] = _uniform(ks[9], (3 * SH, SH), 1.0 / SH ** 0.5)
    p["skip_bih"] = _uniform(ks[10], (3 * SH,), 1.0 / SH ** 0.5)
    p["skip_bhh"] = _uniform(ks[11], (3 * SH,), 1.0 / SH ** 0.5)
    pin = H + SH * cfg["skip_size"]
    p["proj_w"] = _uniform(ks[12], (out_dim, pin), 1.0 / pin ** 0.5)
    p["proj_b"] = _uniform(ks[13], (out_dim,), 1.0 / pin ** 0.5)
    hin = cfg["ar_window"] * D
    p["hw_w"] = _uniform(ks[14], (out_dim, hin), 1.0 / hin ** 0.5)
    p["hw_b"] = _uniform(ks[15], (out_dim,), 1.0 / hin ** 0.5)
    return p


def pack_params(p, cfg):
    """One-time host-side re-layout of the torch weights into kernel-friendly 2-D form."""
    c_in, E = cfg["c_in"], cfg["embedding_dim"]
    K, C = cfg["kernel_size"], cfg["out_channels"]
    H, SH = cfg["hidden_size"], cfg["skip_hidden_size"]
    D = c_in + E
    ss, ar = cfg["skip_size"], cfg["ar_window"]
    O = cfg["pred_len"] * cfg["c_out"]

    conv_w = p["conv_w"].reshape(C, K * D).T.reshape(K, D, C)   # [k, d, c]
    proj_w = p["proj_w"].T                                      # (H + ss*SH, O)
    hw_w = p["hw_w"].T.reshape(ar, D, O)                        # [a, d, o]
    return dict(
        emb_w=p["emb_w"].T, emb_b=p["emb_b"][None, :],
        conv_wx=conv_w[:, :c_in, :].reshape(K * c_in, C),
        conv_we=conv_w[:, c_in:, :].reshape(K * E, C),
        conv_b=p["conv_b"][None, :],
        # torch GRU weights (3H, in) stacked [r; z; n]; transpose packs gates on lanes.
        rnn_wih=p["rnn_wih"].T, rnn_whh=p["rnn_whh"].T,
        rnn_bih=p["rnn_bih"][None, :], rnn_bhh=p["rnn_bhh"][None, :],
        skip_wih=p["skip_wih"].T, skip_whh=p["skip_whh"].T,
        skip_bih=p["skip_bih"][None, :], skip_bhh=p["skip_bhh"][None, :],
        proj_wr=proj_w[:H, :], proj_ws=proj_w[H:, :],           # (ss*SH, O)
        proj_b=p["proj_b"][None, :],
        hw_wx=hw_w[:, :c_in, :].reshape(ar * c_in, O),
        hw_we=hw_w[:, c_in:, :].reshape(ar * E, O),
        hw_b=p["hw_b"][None, :],
    )


# ----------------------------- pure-JAX reference -----------------------------

def _ref_gru(x_seq, wih, whh, bih, bhh):
    # x_seq: (L, B, C); torch-layout weights (3H, in), (3H, H), (3H,), (3H,)
    H = whh.shape[1]
    B = x_seq.shape[1]

    def step(h, x_t):
        gi = x_t @ wih.T + bih
        gh = h @ whh.T + bhh
        r = jax.nn.sigmoid(gi[:, :H] + gh[:, :H])
        z = jax.nn.sigmoid(gi[:, H:2 * H] + gh[:, H:2 * H])
        n = jnp.tanh(gi[:, 2 * H:] + r * gh[:, 2 * H:])
        return (1.0 - z) * n + z * h, None

    h, _ = lax.scan(step, jnp.zeros((B, H), jnp.float32), x_seq)
    return h


def ref_forward(params, x, x_mark, y_mark, cfg):
    del y_mark
    B, T, c_in = x.shape
    K, C = cfg["kernel_size"], cfg["out_channels"]
    SH = cfg["skip_hidden_size"]
    E = cfg["embedding_dim"]
    D = c_in + E
    L = T - K + 1
    ss = cfg["skip_size"]
    sn = (T - K) // ss

    emb = x_mark @ params["emb_w"].T + params["emb_b"]
    x_cat = jnp.concatenate([x, emb], axis=-1)
    windows = jnp.stack([x_cat[:, k:k + L, :] for k in range(K)], axis=2)  # (B,L,K,D)
    conv = windows.reshape(B, L, K * D) @ params["conv_w"].reshape(C, K * D).T
    c = jnp.maximum(conv + params["conv_b"], 0.0)                          # (B,L,C)

    r = _ref_gru(jnp.transpose(c, (1, 0, 2)),
                 params["rnn_wih"], params["rnn_whh"],
                 params["rnn_bih"], params["rnn_bhh"])
    c_bcl = jnp.transpose(c, (0, 2, 1))
    s = c_bcl[:, :, L - sn * ss:].reshape(B, C, sn, ss)
    s = jnp.transpose(s, (0, 3, 2, 1)).reshape(B * ss, sn, C)
    s_h = _ref_gru(jnp.transpose(s, (1, 0, 2)),
                   params["skip_wih"], params["skip_whh"],
                   params["skip_bih"], params["skip_bhh"])
    s_h = s_h.reshape(B, ss * SH)

    rs = jnp.concatenate([r, s_h], axis=1)
    r_out = (rs @ params["proj_w"].T + params["proj_b"]).reshape(
        B, cfg["pred_len"], cfg["c_out"])
    z = x_cat[:, T - cfg["ar_window"]:, :].reshape(B, -1)
    z = (z @ params["hw_w"].T + params["hw_b"]).reshape(B, cfg["pred_len"], cfg["c_out"])
    return r_out + z


# ----------------------------- main -----------------------------

if __name__ == "__main__":
    cfg = dict(
        c_in=4, c_out=2, hist_len=16, pred_len=4,
        out_channels=8, kernel_size=3,
        cell_type="GRU", hidden_size=16, num_layers=1,
        skip_cell_type="GRU", skip_hidden_size=8, skip_num_layers=1,
        skip_size=4, ar_window=3, embedding_dim=10, freq_dim=5,  # freq='H' -> 5 features
    )
    B = 2

    key = jax.random.PRNGKey(0)
    kp, kx, kxm, kym = jax.random.split(key, 4)
    params = init_params(kp, cfg)
    packed = pack_params(params, cfg)   # one-time weight re-layout (not per forward)

    x = jax.random.normal(kx, (B, cfg["hist_len"], cfg["c_in"]), jnp.float32)
    x_mark = jax.random.normal(kxm, (B, cfg["hist_len"], cfg["freq_dim"]), jnp.float32)
    y_mark = jax.random.normal(kym, (B, cfg["pred_len"], cfg["freq_dim"]), jnp.float32)

    @jax.jit
    def fwd(packed, x, x_mark, y_mark):
        return lstnet_forward(packed, x, x_mark, y_mark, cfg)

    out = jax.block_until_ready(fwd(packed, x, x_mark, y_mark))
    ref = jax.block_until_ready(ref_forward(params, x, x_mark, y_mark, cfg))

    assert out.shape == (B, cfg["pred_len"], cfg["c_out"])
    max_err = float(jnp.max(jnp.abs(out - ref)))
    # all-f32 path; tolerance covers possible MXU-pass differences vs. the XLA reference
    assert jnp.allclose(out, ref, rtol=5e-3, atol=5e-3), \
        f"Pallas output mismatch vs JAX reference (max abs err {max_err})"

    print("KERNEL_OK")
</pallas_src>

<mosaic_0001>
module attributes {stable_mosaic.version = 11 : i64} {
  func.func @_lstnet_kernel(%arg0: memref<32x4xf32, #tpu.memory_space<vmem>>, %arg1: memref<32x5xf32, #tpu.memory_space<vmem>>, %arg2: memref<5x10xf32, #tpu.memory_space<vmem>>, %arg3: memref<1x10xf32, #tpu.memory_space<vmem>>, %arg4: memref<12x8xf32, #tpu.memory_space<vmem>>, %arg5: memref<30x8xf32, #tpu.memory_space<vmem>>, %arg6: memref<1x8xf32, #tpu.memory_space<vmem>>, %arg7: memref<8x48xf32, #tpu.memory_space<vmem>>, %arg8: memref<16x48xf32, #tpu.memory_space<vmem>>, %arg9: memref<1x48xf32, #tpu.memory_space<vmem>>, %arg10: memref<1x48xf32, #tpu.memory_space<vmem>>, %arg11: memref<8x24xf32, #tpu.memory_space<vmem>>, %arg12: memref<8x24xf32, #tpu.memory_space<vmem>>, %arg13: memref<1x24xf32, #tpu.memory_space<vmem>>, %arg14: memref<1x24xf32, #tpu.memory_space<vmem>>, %arg15: memref<16x8xf32, #tpu.memory_space<vmem>>, %arg16: memref<32x8xf32, #tpu.memory_space<vmem>>, %arg17: memref<1x8xf32, #tpu.memory_space<vmem>>, %arg18: memref<12x8xf32, #tpu.memory_space<vmem>>, %arg19: memref<30x8xf32, #tpu.memory_space<vmem>>, %arg20: memref<1x8xf32, #tpu.memory_space<vmem>>, %arg21: memref<2x8xf32, #tpu.memory_space<vmem>>) attributes {dimension_semantics = [], scalar_prefetch = 0 : i64, scratch_operands = 0 : i64, tpu.core_type = #tpu.core_type<tc>} {
    %c0 = arith.constant 0 : index
    %c0_0 = arith.constant 0 : index
    %0 = vector.load %arg0[%c0, %c0_0] : memref<32x4xf32, #tpu.memory_space<vmem>>, vector<32x4xf32>
    %c0_1 = arith.constant 0 : index
    %c0_2 = arith.constant 0 : index
    %1 = vector.load %arg1[%c0_1, %c0_2] : memref<32x5xf32, #tpu.memory_space<vmem>>, vector<32x5xf32>
    %c0_3 = arith.constant 0 : index
    %c0_4 = arith.constant 0 : index
    %2 = vector.load %arg2[%c0_3, %c0_4] : memref<5x10xf32, #tpu.memory_space<vmem>>, vector<5x10xf32>
    %cst = arith.constant dense<0.000000e+00> : vector<32x10xf32>
    %3 = tpu.matmul %1, %2, %cst {dimension_numbers = #tpu.dot_dimension_numbers<[1], [0], [0], [1], [0, 0, 1, 1], [], []>} : vector<32x5xf32>, vector<5x10xf32>, vector<32x10xf32> -> vector<32x10xf32>
    %c0_5 = arith.constant 0 : index
    %c0_6 = arith.constant 0 : index
    %4 = vector.load %arg3[%c0_5, %c0_6] : memref<1x10xf32, #tpu.memory_space<vmem>>, vector<1x10xf32>
    %5 = vector.broadcast %4 : vector<1x10xf32> to vector<32x10xf32>
    %6 = arith.addf %3, %5 : vector<32x10xf32>
    %c0_7 = arith.constant 0 : index
    %c0_8 = arith.constant 0 : index
    %7 = vector.load %arg4[%c0_7, %c0_8] : memref<12x8xf32, #tpu.memory_space<vmem>>, vector<12x8xf32>
    %c0_9 = arith.constant 0 : index
    %c0_10 = arith.constant 0 : index
    %8 = vector.load %arg5[%c0_9, %c0_10] : memref<30x8xf32, #tpu.memory_space<vmem>>, vector<30x8xf32>
    %cst_11 = arith.constant 0.000000e+00 : f32
    %9 = vector.broadcast %cst_11 : f32 to vector<28x8xf32>
    %c0_12 = arith.constant 0 : index
    %c0_13 = arith.constant 0 : index
    %10 = vector.load %arg6[%c0_12, %c0_13] : memref<1x8xf32, #tpu.memory_space<vmem>>, vector<1x8xf32>
    %11 = vector.broadcast %10 : vector<1x8xf32> to vector<28x8xf32>
    %12 = arith.addf %9, %11 : vector<28x8xf32>
    %13 = vector.extract_strided_slice %0 {offsets = [0, 0], sizes = [28, 4], strides = [1, 1]} : vector<32x4xf32> to vector<28x4xf32>
    %14 = vector.extract_strided_slice %7 {offsets = [0, 0], sizes = [4, 8], strides = [1, 1]} : vector<12x8xf32> to vector<4x8xf32>
    %cst_14 = arith.constant dense<0.000000e+00> : vector<28x8xf32>
    %15 = tpu.matmul %13, %14, %cst_14 {dimension_numbers = #tpu.dot_dimension_numbers<[1], [0], [0], [1], [0, 0, 1, 1], [], []>} : vector<28x4xf32>, vector<4x8xf32>, vector<28x8xf32> -> vector<28x8xf32>
    %16 = arith.addf %12, %15 : vector<28x8xf32>
    %17 = vector.extract_strided_slice %6 {offsets = [0, 0], sizes = [28, 10], strides = [1, 1]} : vector<32x10xf32> to vector<28x10xf32>
    %18 = vector.extract_strided_slice %8 {offsets = [0, 0], sizes = [10, 8], strides = [1, 1]} : vector<30x8xf32> to vector<10x8xf32>
    %cst_15 = arith.constant dense<0.000000e+00> : vector<28x8xf32>
    %19 = tpu.matmul %17, %18, %cst_15 {dimension_numbers = #tpu.dot_dimension_numbers<[1], [0], [0], [1], [0, 0, 1, 1], [], []>} : vector<28x10xf32>, vector<10x8xf32>, vector<28x8xf32> -> vector<28x8xf32>
    %20 = arith.addf %16, %19 : vector<28x8xf32>
    %21 = vector.extract_strided_slice %0 {offsets = [2, 0], sizes = [28, 4], strides = [1, 1]} : vector<32x4xf32> to vector<28x4xf32>
    %22 = vector.extract_strided_slice %7 {offsets = [4, 0], sizes = [4, 8], strides = [1, 1]} : vector<12x8xf32> to vector<4x8xf32>
    %cst_16 = arith.constant dense<0.000000e+00> : vector<28x8xf32>
    %23 = tpu.matmul %21, %22, %cst_16 {dimension_numbers = #tpu.dot_dimension_numbers<[1], [0], [0], [1], [0, 0, 1, 1], [], []>} : vector<28x4xf32>, vector<4x8xf32>, vector<28x8xf32> -> vector<28x8xf32>
    %24 = arith.addf %20, %23 : vector<28x8xf32>
    %25 = vector.extract_strided_slice %6 {offsets = [2, 0], sizes = [28, 10], strides = [1, 1]} : vector<32x10xf32> to vector<28x10xf32>
    %26 = vector.extract_strided_slice %8 {offsets = [10, 0], sizes = [10, 8], strides = [1, 1]} : vector<30x8xf32> to vector<10x8xf32>
    %cst_17 = arith.constant dense<0.000000e+00> : vector<28x8xf32>
    %27 = tpu.matmul %25, %26, %cst_17 {dimension_numbers = #tpu.dot_dimension_numbers<[1], [0], [0], [1], [0, 0, 1, 1], [], []>} : vector<28x10xf32>, vector<10x8xf32>, vector<28x8xf32> -> vector<28x8xf32>
    %28 = arith.addf %24, %27 : vector<28x8xf32>
    %29 = vector.extract_strided_slice %0 {offsets = [4, 0], sizes = [28, 4], strides = [1, 1]} : vector<32x4xf32> to vector<28x4xf32>
    %30 = vector.extract_strided_slice %7 {offsets = [8, 0], sizes = [4, 8], strides = [1, 1]} : vector<12x8xf32> to vector<4x8xf32>
    %cst_18 = arith.constant dense<0.000000e+00> : vector<28x8xf32>
    %31 = tpu.matmul %29, %30, %cst_18 {dimension_numbers = #tpu.dot_dimension_numbers<[1], [0], [0], [1], [0, 0, 1, 1], [], []>} : vector<28x4xf32>, vector<4x8xf32>, vector<28x8xf32> -> vector<28x8xf32>
    %32 = arith.addf %28, %31 : vector<28x8xf32>
    %33 = vector.extract_strided_slice %6 {offsets = [4, 0], sizes = [28, 10], strides = [1, 1]} : vector<32x10xf32> to vector<28x10xf32>
    %34 = vector.extract_strided_slice %8 {offsets = [20, 0], sizes = [10, 8], strides = [1, 1]} : vector<30x8xf32> to vector<10x8xf32>
    %cst_19 = arith.constant dense<0.000000e+00> : vector<28x8xf32>
    %35 = tpu.matmul %33, %34, %cst_19 {dimension_numbers = #tpu.dot_dimension_numbers<[1], [0], [0], [1], [0, 0, 1, 1], [], []>} : vector<28x10xf32>, vector<10x8xf32>, vector<28x8xf32> -> vector<28x8xf32>
    %36 = arith.addf %32, %35 : vector<28x8xf32>
    %cst_20 = arith.constant 0.000000e+00 : f32
    %37 = vector.broadcast %cst_20 : f32 to vector<28x8xf32>
    %38 = arith.maximumf %36, %37 : vector<28x8xf32>
    %c0_21 = arith.constant 0 : index
    %c0_22 = arith.constant 0 : index
    %39 = vector.load %arg7[%c0_21, %c0_22] : memref<8x48xf32, #tpu.memory_space<vmem>>, vector<8x48xf32>
    %cst_23 = arith.constant dense<0.000000e+00> : vector<28x48xf32>
    %40 = tpu.matmul %38, %39, %cst_23 {dimension_numbers = #tpu.dot_dimension_numbers<[1], [0], [0], [1], [0, 0, 1, 1], [], []>} : vector<28x8xf32>, vector<8x48xf32>, vector<28x48xf32> -> vector<28x48xf32>
    %c0_24 = arith.constant 0 : index
    %c0_25 = arith.constant 0 : index
    %41 = vector.load %arg9[%c0_24, %c0_25] : memref<1x48xf32, #tpu.memory_space<vmem>>, vector<1x48xf32>
    %42 = vector.broadcast %41 : vector<1x48xf32> to vector<28x48xf32>
    %43 = arith.addf %40, %42 : vector<28x48xf32>
    %c0_26 = arith.constant 0 : index
    %c0_27 = arith.constant 0 : index
    %44 = vector.load %arg8[%c0_26, %c0_27] : memref<16x48xf32, #tpu.memory_space<vmem>>, vector<16x48xf32>
    %c0_28 = arith.constant 0 : index
    %c0_29 = arith.constant 0 : index
    %45 = vector.load %arg10[%c0_28, %c0_29] : memref<1x48xf32, #tpu.memory_space<vmem>>, vector<1x48xf32>
    %cst_30 = arith.constant 0.000000e+00 : f32
    %46 = vector.broadcast %cst_30 : f32 to vector<2x16xf32>
    %47 = vector.extract_strided_slice %43 {offsets = [0, 0], sizes = [2, 48], strides = [1, 1]} : vector<28x48xf32> to vector<2x48xf32>
    %cst_31 = arith.constant dense<0.000000e+00> : vector<2x48xf32>
    %48 = tpu.matmul %46, %44, %cst_31 {dimension_numbers = #tpu.dot_dimension_numbers<[1], [0], [0], [1], [0, 0, 1, 1], [], []>} : vector<2x16xf32>, vector<16x48xf32>, vector<2x48xf32> -> vector<2x48xf32>
    %49 = vector.broadcast %45 : vector<1x48xf32> to vector<2x48xf32>
    %50 = arith.addf %48, %49 : vector<2x48xf32>
    %51 = vector.extract_strided_slice %47 {offsets = [0, 0], sizes = [2, 32], strides = [1, 1]} : vector<2x48xf32> to vector<2x32xf32>
    %52 = vector.extract_strided_slice %50 {offsets = [0, 0], sizes = [2, 32], strides = [1, 1]} : vector<2x48xf32> to vector<2x32xf32>
    %53 = arith.addf %51, %52 : vector<2x32xf32>
    %54 = arith.negf %53 : vector<2x32xf32>
    %55 = math.exp %54 : vector<2x32xf32>
    %cst_32 = arith.constant 1.000000e+00 : f32
    %56 = vector.broadcast %cst_32 : f32 to vector<2x32xf32>
    %57 = arith.addf %56, %55 : vector<2x32xf32>
    %58 = arith.divf %56, %57 : vector<2x32xf32>
    %59 = vector.extract_strided_slice %58 {offsets = [0, 0], sizes = [2, 16], strides = [1, 1]} : vector<2x32xf32> to vector<2x16xf32>
    %60 = vector.extract_strided_slice %58 {offsets = [0, 16], sizes = [2, 16], strides = [1, 1]} : vector<2x32xf32> to vector<2x16xf32>
    %61 = vector.extract_strided_slice %47 {offsets = [0, 32], sizes = [2, 16], strides = [1, 1]} : vector<2x48xf32> to vector<2x16xf32>
    %62 = vector.extract_strided_slice %50 {offsets = [0, 32], sizes = [2, 16], strides = [1, 1]} : vector<2x48xf32> to vector<2x16xf32>
    %63 = arith.mulf %59, %62 : vector<2x16xf32>
    %64 = arith.addf %61, %63 : vector<2x16xf32>
    %65 = math.tanh %64 : vector<2x16xf32>
    %cst_33 = arith.constant 1.000000e+00 : f32
    %66 = vector.broadcast %cst_33 : f32 to vector<2x16xf32>
    %67 = arith.subf %66, %60 : vector<2x16xf32>
    %68 = arith.mulf %67, %65 : vector<2x16xf32>
    %69 = arith.mulf %60, %46 : vector<2x16xf32>
    %70 = arith.addf %68, %69 : vector<2x16xf32>
    %71 = vector.extract_strided_slice %43 {offsets = [2, 0], sizes = [2, 48], strides = [1, 1]} : vector<28x48xf32> to vector<2x48xf32>
    %cst_34 = arith.constant dense<0.000000e+00> : vector<2x48xf32>
    %72 = tpu.matmul %70, %44, %cst_34 {dimension_numbers = #tpu.dot_dimension_numbers<[1], [0], [0], [1], [0, 0, 1, 1], [], []>} : vector<2x16xf32>, vector<16x48xf32>, vector<2x48xf32> -> vector<2x48xf32>
    %73 = vector.broadcast %45 : vector<1x48xf32> to vector<2x48xf32>
    %74 = arith.addf %72, %73 : vector<2x48xf32>
    %75 = vector.extract_strided_slice %71 {offsets = [0, 0], sizes = [2, 32], strides = [1, 1]} : vector<2x48xf32> to vector<2x32xf32>
    %76 = vector.extract_strided_slice %74 {offsets = [0, 0], sizes = [2, 32], strides = [1, 1]} : vector<2x48xf32> to vector<2x32xf32>
    %77 = arith.addf %75, %76 : vector<2x32xf32>
    %78 = arith.negf %77 : vector<2x32xf32>
    %79 = math.exp %78 : vector<2x32xf32>
    %cst_35 = arith.constant 1.000000e+00 : f32
    %80 = vector.broadcast %cst_35 : f32 to vector<2x32xf32>
    %81 = arith.addf %80, %79 : vector<2x32xf32>
    %82 = arith.divf %80, %81 : vector<2x32xf32>
    %83 = vector.extract_strided_slice %82 {offsets = [0, 0], sizes = [2, 16], strides = [1, 1]} : vector<2x32xf32> to vector<2x16xf32>
    %84 = vector.extract_strided_slice %82 {offsets = [0, 16], sizes = [2, 16], strides = [1, 1]} : vector<2x32xf32> to vector<2x16xf32>
    %85 = vector.extract_strided_slice %71 {offsets = [0, 32], sizes = [2, 16], strides = [1, 1]} : vector<2x48xf32> to vector<2x16xf32>
    %86 = vector.extract_strided_slice %74 {offsets = [0, 32], sizes = [2, 16], strides = [1, 1]} : vector<2x48xf32> to vector<2x16xf32>
    %87 = arith.mulf %83, %86 : vector<2x16xf32>
    %88 = arith.addf %85, %87 : vector<2x16xf32>
    %89 = math.tanh %88 : vector<2x16xf32>
    %cst_36 = arith.constant 1.000000e+00 : f32
    %90 = vector.broadcast %cst_36 : f32 to vector<2x16xf32>
    %91 = arith.subf %90, %84 : vector<2x16xf32>
    %92 = arith.mulf %91, %89 : vector<2x16xf32>
    %93 = arith.mulf %84, %70 : vector<2x16xf32>
    %94 = arith.addf %92, %93 : vector<2x16xf32>
    %95 = vector.extract_strided_slice %43 {offsets = [4, 0], sizes = [2, 48], strides = [1, 1]} : vector<28x48xf32> to vector<2x48xf32>
    %cst_37 = arith.constant dense<0.000000e+00> : vector<2x48xf32>
    %96 = tpu.matmul %94, %44, %cst_37 {dimension_numbers = #tpu.dot_dimension_numbers<[1], [0], [0], [1], [0, 0, 1, 1], [], []>} : vector<2x16xf32>, vector<16x48xf32>, vector<2x48xf32> -> vector<2x48xf32>
    %97 = vector.broadcast %45 : vector<1x48xf32> to vector<2x48xf32>
    %98 = arith.addf %96, %97 : vector<2x48xf32>
    %99 = vector.extract_strided_slice %95 {offsets = [0, 0], sizes = [2, 32], strides = [1, 1]} : vector<2x48xf32> to vector<2x32xf32>
    %100 = vector.extract_strided_slice %98 {offsets = [0, 0], sizes = [2, 32], strides = [1, 1]} : vector<2x48xf32> to vector<2x32xf32>
    %101 = arith.addf %99, %100 : vector<2x32xf32>
    %102 = arith.negf %101 : vector<2x32xf32>
    %103 = math.exp %102 : vector<2x32xf32>
    %cst_38 = arith.constant 1.000000e+00 : f32
    %104 = vector.broadcast %cst_38 : f32 to vector<2x32xf32>
    %105 = arith.addf %104, %103 : vector<2x32xf32>
    %106 = arith.divf %104, %105 : vector<2x32xf32>
    %107 = vector.extract_strided_slice %106 {offsets = [0, 0], sizes = [2, 16], strides = [1, 1]} : vector<2x32xf32> to vector<2x16xf32>
    %108 = vector.extract_strided_slice %106 {offsets = [0, 16], sizes = [2, 16], strides = [1, 1]} : vector<2x32xf32> to vector<2x16xf32>
    %109 = vector.extract_strided_slice %95 {offsets = [0, 32], sizes = [2, 16], strides = [1, 1]} : vector<2x48xf32> to vector<2x16xf32>
    %110 = vector.extract_strided_slice %98 {offsets = [0, 32], sizes = [2, 16], strides = [1, 1]} : vector<2x48xf32> to vector<2x16xf32>
    %111 = arith.mulf %107, %110 : vector<2x16xf32>
    %112 = arith.addf %109, %111 : vector<2x16xf32>
    %113 = math.tanh %112 : vector<2x16xf32>
    %cst_39 = arith.constant 1.000000e+00 : f32
    %114 = vector.broadcast %cst_39 : f32 to vector<2x16xf32>
    %115 = arith.subf %114, %108 : vector<2x16xf32>
    %116 = arith.mulf %115, %113 : vector<2x16xf32>
    %117 = arith.mulf %108, %94 : vector<2x16xf32>
    %118 = arith.addf %116, %117 : vector<2x16xf32>
    %119 = vector.extract_strided_slice %43 {offsets = [6, 0], sizes = [2, 48], strides = [1, 1]} : vector<28x48xf32> to vector<2x48xf32>
    %cst_40 = arith.constant dense<0.000000e+00> : vector<2x48xf32>
    %120 = tpu.matmul %118, %44, %cst_40 {dimension_numbers = #tpu.dot_dimension_numbers<[1], [0], [0], [1], [0, 0, 1, 1], [], []>} : vector<2x16xf32>, vector<16x48xf32>, vector<2x48xf32> -> vector<2x48xf32>
    %121 = vector.broadcast %45 : vector<1x48xf32> to vector<2x48xf32>
    %122 = arith.addf %120, %121 : vector<2x48xf32>
    %123 = vector.extract_strided_slice %119 {offsets = [0, 0], sizes = [2, 32], strides = [1, 1]} : vector<2x48xf32> to vector<2x32xf32>
    %124 = vector.extract_strided_slice %122 {offsets = [0, 0], sizes = [2, 32], strides = [1, 1]} : vector<2x48xf32> to vector<2x32xf32>
    %125 = arith.addf %123, %124 : vector<2x32xf32>
    %126 = arith.negf %125 : vector<2x32xf32>
    %127 = math.exp %126 : vector<2x32xf32>
    %cst_41 = arith.constant 1.000000e+00 : f32
    %128 = vector.broadcast %cst_41 : f32 to vector<2x32xf32>
    %129 = arith.addf %128, %127 : vector<2x32xf32>
    %130 = arith.divf %128, %129 : vector<2x32xf32>
    %131 = vector.extract_strided_slice %130 {offsets = [0, 0], sizes = [2, 16], strides = [1, 1]} : vector<2x32xf32> to vector<2x16xf32>
    %132 = vector.extract_strided_slice %130 {offsets = [0, 16], sizes = [2, 16], strides = [1, 1]} : vector<2x32xf32> to vector<2x16xf32>
    %133 = vector.extract_strided_slice %119 {offsets = [0, 32], sizes = [2, 16], strides = [1, 1]} : vector<2x48xf32> to vector<2x16xf32>
    %134 = vector.extract_strided_slice %122 {offsets = [0, 32], sizes = [2, 16], strides = [1, 1]} : vector<2x48xf32> to vector<2x16xf32>
    %135 = arith.mulf %131, %134 : vector<2x16xf32>
    %136 = arith.addf %133, %135 : vector<2x16xf32>
    %137 = math.tanh %136 : vector<2x16xf32>
    %cst_42 = arith.constant 1.000000e+00 : f32
    %138 = vector.broadcast %cst_42 : f32 to vector<2x16xf32>
    %139 = arith.subf %138, %132 : vector<2x16xf32>
    %140 = arith.mulf %139, %137 : vector<2x16xf32>
    %141 = arith.mulf %132, %118 : vector<2x16xf32>
    %142 = arith.addf %140, %141 : vector<2x16xf32>
    %143 = vector.extract_strided_slice %43 {offsets = [8, 0], sizes = [2, 48], strides = [1, 1]} : vector<28x48xf32> to vector<2x48xf32>
    %cst_43 = arith.constant dense<0.000000e+00> : vector<2x48xf32>
    %144 = tpu.matmul %142, %44, %cst_43 {dimension_numbers = #tpu.dot_dimension_numbers<[1], [0], [0], [1], [0, 0, 1, 1], [], []>} : vector<2x16xf32>, vector<16x48xf32>, vector<2x48xf32> -> vector<2x48xf32>
    %145 = vector.broadcast %45 : vector<1x48xf32> to vector<2x48xf32>
    %146 = arith.addf %144, %145 : vector<2x48xf32>
    %147 = vector.extract_strided_slice %143 {offsets = [0, 0], sizes = [2, 32], strides = [1, 1]} : vector<2x48xf32> to vector<2x32xf32>
    %148 = vector.extract_strided_slice %146 {offsets = [0, 0], sizes = [2, 32], strides = [1, 1]} : vector<2x48xf32> to vector<2x32xf32>
    %149 = arith.addf %147, %148 : vector<2x32xf32>
    %150 = arith.negf %149 : vector<2x32xf32>
    %151 = math.exp %150 : vector<2x32xf32>
    %cst_44 = arith.constant 1.000000e+00 : f32
    %152 = vector.broadcast %cst_44 : f32 to vector<2x32xf32>
    %153 = arith.addf %152, %151 : vector<2x32xf32>
    %154 = arith.divf %152, %153 : vector<2x32xf32>
    %155 = vector.extract_strided_slice %154 {offsets = [0, 0], sizes = [2, 16], strides = [1, 1]} : vector<2x32xf32> to vector<2x16xf32>
    %156 = vector.extract_strided_slice %154 {offsets = [0, 16], sizes = [2, 16], strides = [1, 1]} : vector<2x32xf32> to vector<2x16xf32>
    %157 = vector.extract_strided_slice %143 {offsets = [0, 32], sizes = [2, 16], strides = [1, 1]} : vector<2x48xf32> to vector<2x16xf32>
    %158 = vector.extract_strided_slice %146 {offsets = [0, 32], sizes = [2, 16], strides = [1, 1]} : vector<2x48xf32> to vector<2x16xf32>
    %159 = arith.mulf %155, %158 : vector<2x16xf32>
    %160 = arith.addf %157, %159 : vector<2x16xf32>
    %161 = math.tanh %160 : vector<2x16xf32>
    %cst_45 = arith.constant 1.000000e+00 : f32
    %162 = vector.broadcast %cst_45 : f32 to vector<2x16xf32>
    %163 = arith.subf %162, %156 : vector<2x16xf32>
    %164 = arith.mulf %163, %161 : vector<2x16xf32>
    %165 = arith.mulf %156, %142 : vector<2x16xf32>
    %166 = arith.addf %164, %165 : vector<2x16xf32>
    %167 = vector.extract_strided_slice %43 {offsets = [10, 0], sizes = [2, 48], strides = [1, 1]} : vector<28x48xf32> to vector<2x48xf32>
    %cst_46 = arith.constant dense<0.000000e+00> : vector<2x48xf32>
    %168 = tpu.matmul %166, %44, %cst_46 {dimension_numbers = #tpu.dot_dimension_numbers<[1], [0], [0], [1], [0, 0, 1, 1], [], []>} : vector<2x16xf32>, vector<16x48xf32>, vector<2x48xf32> -> vector<2x48xf32>
    %169 = vector.broadcast %45 : vector<1x48xf32> to vector<2x48xf32>
    %170 = arith.addf %168, %169 : vector<2x48xf32>
    %171 = vector.extract_strided_slice %167 {offsets = [0, 0], sizes = [2, 32], strides = [1, 1]} : vector<2x48xf32> to vector<2x32xf32>
    %172 = vector.extract_strided_slice %170 {offsets = [0, 0], sizes = [2, 32], strides = [1, 1]} : vector<2x48xf32> to vector<2x32xf32>
    %173 = arith.addf %171, %172 : vector<2x32xf32>
    %174 = arith.negf %173 : vector<2x32xf32>
    %175 = math.exp %174 : vector<2x32xf32>
    %cst_47 = arith.constant 1.000000e+00 : f32
    %176 = vector.broadcast %cst_47 : f32 to vector<2x32xf32>
    %177 = arith.addf %176, %175 : vector<2x32xf32>
    %178 = arith.divf %176, %177 : vector<2x32xf32>
    %179 = vector.extract_strided_slice %178 {offsets = [0, 0], sizes = [2, 16], strides = [1, 1]} : vector<2x32xf32> to vector<2x16xf32>
    %180 = vector.extract_strided_slice %178 {offsets = [0, 16], sizes = [2, 16], strides = [1, 1]} : vector<2x32xf32> to vector<2x16xf32>
    %181 = vector.extract_strided_slice %167 {offsets = [0, 32], sizes = [2, 16], strides = [1, 1]} : vector<2x48xf32> to vector<2x16xf32>
    %182 = vector.extract_strided_slice %170 {offsets = [0, 32], sizes = [2, 16], strides = [1, 1]} : vector<2x48xf32> to vector<2x16xf32>
    %183 = arith.mulf %179, %182 : vector<2x16xf32>
    %184 = arith.addf %181, %183 : vector<2x16xf32>
    %185 = math.tanh %184 : vector<2x16xf32>
    %cst_48 = arith.constant 1.000000e+00 : f32
    %186 = vector.broadcast %cst_48 : f32 to vector<2x16xf32>
    %187 = arith.subf %186, %180 : vector<2x16xf32>
    %188 = arith.mulf %187, %185 : vector<2x16xf32>
    %189 = arith.mulf %180, %166 : vector<2x16xf32>
    %190 = arith.addf %188, %189 : vector<2x16xf32>
    %191 = vector.extract_strided_slice %43 {offsets = [12, 0], sizes = [2, 48], strides = [1, 1]} : vector<28x48xf32> to vector<2x48xf32>
    %cst_49 = arith.constant dense<0.000000e+00> : vector<2x48xf32>
    %192 = tpu.matmul %190, %44, %cst_49 {dimension_numbers = #tpu.dot_dimension_numbers<[1], [0], [0], [1], [0, 0, 1, 1], [], []>} : vector<2x16xf32>, vector<16x48xf32>, vector<2x48xf32> -> vector<2x48xf32>
    %193 = vector.broadcast %45 : vector<1x48xf32> to vector<2x48xf32>
    %194 = arith.addf %192, %193 : vector<2x48xf32>
    %195 = vector.extract_strided_slice %191 {offsets = [0, 0], sizes = [2, 32], strides = [1, 1]} : vector<2x48xf32> to vector<2x32xf32>
    %196 = vector.extract_strided_slice %194 {offsets = [0, 0], sizes = [2, 32], strides = [1, 1]} : vector<2x48xf32> to vector<2x32xf32>
    %197 = arith.addf %195, %196 : vector<2x32xf32>
    %198 = arith.negf %197 : vector<2x32xf32>
    %199 = math.exp %198 : vector<2x32xf32>
    %cst_50 = arith.constant 1.000000e+00 : f32
    %200 = vector.broadcast %cst_50 : f32 to vector<2x32xf32>
    %201 = arith.addf %200, %199 : vector<2x32xf32>
    %202 = arith.divf %200, %201 : vector<2x32xf32>
    %203 = vector.extract_strided_slice %202 {offsets = [0, 0], sizes = [2, 16], strides = [1, 1]} : vector<2x32xf32> to vector<2x16xf32>
    %204 = vector.extract_strided_slice %202 {offsets = [0, 16], sizes = [2, 16], strides = [1, 1]} : vector<2x32xf32> to vector<2x16xf32>
    %205 = vector.extract_strided_slice %191 {offsets = [0, 32], sizes = [2, 16], strides = [1, 1]} : vector<2x48xf32> to vector<2x16xf32>
    %206 = vector.extract_strided_slice %194 {offsets = [0, 32], sizes = [2, 16], strides = [1, 1]} : vector<2x48xf32> to vector<2x16xf32>
    %207 = arith.mulf %203, %206 : vector<2x16xf32>
    %208 = arith.addf %205, %207 : vector<2x16xf32>
    %209 = math.tanh %208 : vector<2x16xf32>
    %cst_51 = arith.constant 1.000000e+00 : f32
    %210 = vector.broadcast %cst_51 : f32 to vector<2x16xf32>
    %211 = arith.subf %210, %204 : vector<2x16xf32>
    %212 = arith.mulf %211, %209 : vector<2x16xf32>
    %213 = arith.mulf %204, %190 : vector<2x16xf32>
    %214 = arith.addf %212, %213 : vector<2x16xf32>
    %215 = vector.extract_strided_slice %43 {offsets = [14, 0], sizes = [2, 48], strides = [1, 1]} : vector<28x48xf32> to vector<2x48xf32>
    %cst_52 = arith.constant dense<0.000000e+00> : vector<2x48xf32>
    %216 = tpu.matmul %214, %44, %cst_52 {dimension_numbers = #tpu.dot_dimension_numbers<[1], [0], [0], [1], [0, 0, 1, 1], [], []>} : vector<2x16xf32>, vector<16x48xf32>, vector<2x48xf32> -> vector<2x48xf32>
    %217 = vector.broadcast %45 : vector<1x48xf32> to vector<2x48xf32>
    %218 = arith.addf %216, %217 : vector<2x48xf32>
    %219 = vector.extract_strided_slice %215 {offsets = [0, 0], sizes = [2, 32], strides = [1, 1]} : vector<2x48xf32> to vector<2x32xf32>
    %220 = vector.extract_strided_slice %218 {offsets = [0, 0], sizes = [2, 32], strides = [1, 1]} : vector<2x48xf32> to vector<2x32xf32>
    %221 = arith.addf %219, %220 : vector<2x32xf32>
    %222 = arith.negf %221 : vector<2x32xf32>
    %223 = math.exp %222 : vector<2x32xf32>
    %cst_53 = arith.constant 1.000000e+00 : f32
    %224 = vector.broadcast %cst_53 : f32 to vector<2x32xf32>
    %225 = arith.addf %224, %223 : vector<2x32xf32>
    %226 = arith.divf %224, %225 : vector<2x32xf32>
    %227 = vector.extract_strided_slice %226 {offsets = [0, 0], sizes = [2, 16], strides = [1, 1]} : vector<2x32xf32> to vector<2x16xf32>
    %228 = vector.extract_strided_slice %226 {offsets = [0, 16], sizes = [2, 16], strides = [1, 1]} : vector<2x32xf32> to vector<2x16xf32>
    %229 = vector.extract_strided_slice %215 {offsets = [0, 32], sizes = [2, 16], strides = [1, 1]} : vector<2x48xf32> to vector<2x16xf32>
    %230 = vector.extract_strided_slice %218 {offsets = [0, 32], sizes = [2, 16], strides = [1, 1]} : vector<2x48xf32> to vector<2x16xf32>
    %231 = arith.mulf %227, %230 : vector<2x16xf32>
    %232 = arith.addf %229, %231 : vector<2x16xf32>
    %233 = math.tanh %232 : vector<2x16xf32>
    %cst_54 = arith.constant 1.000000e+00 : f32
    %234 = vector.broadcast %cst_54 : f32 to vector<2x16xf32>
    %235 = arith.subf %234, %228 : vector<2x16xf32>
    %236 = arith.mulf %235, %233 : vector<2x16xf32>
    %237 = arith.mulf %228, %214 : vector<2x16xf32>
    %238 = arith.addf %236, %237 : vector<2x16xf32>
    %239 = vector.extract_strided_slice %43 {offsets = [16, 0], sizes = [2, 48], strides = [1, 1]} : vector<28x48xf32> to vector<2x48xf32>
    %cst_55 = arith.constant dense<0.000000e+00> : vector<2x48xf32>
    %240 = tpu.matmul %238, %44, %cst_55 {dimension_numbers = #tpu.dot_dimension_numbers<[1], [0], [0], [1], [0, 0, 1, 1], [], []>} : vector<2x16xf32>, vector<16x48xf32>, vector<2x48xf32> -> vector<2x48xf32>
    %241 = vector.broadcast %45 : vector<1x48xf32> to vector<2x48xf32>
    %242 = arith.addf %240, %241 : vector<2x48xf32>
    %243 = vector.extract_strided_slice %239 {offsets = [0, 0], sizes = [2, 32], strides = [1, 1]} : vector<2x48xf32> to vector<2x32xf32>
    %244 = vector.extract_strided_slice %242 {offsets = [0, 0], sizes = [2, 32], strides = [1, 1]} : vector<2x48xf32> to vector<2x32xf32>
    %245 = arith.addf %243, %244 : vector<2x32xf32>
    %246 = arith.negf %245 : vector<2x32xf32>
    %247 = math.exp %246 : vector<2x32xf32>
    %cst_56 = arith.constant 1.000000e+00 : f32
    %248 = vector.broadcast %cst_56 : f32 to vector<2x32xf32>
    %249 = arith.addf %248, %247 : vector<2x32xf32>
    %250 = arith.divf %248, %249 : vector<2x32xf32>
    %251 = vector.extract_strided_slice %250 {offsets = [0, 0], sizes = [2, 16], strides = [1, 1]} : vector<2x32xf32> to vector<2x16xf32>
    %252 = vector.extract_strided_slice %250 {offsets = [0, 16], sizes = [2, 16], strides = [1, 1]} : vector<2x32xf32> to vector<2x16xf32>
    %253 = vector.extract_strided_slice %239 {offsets = [0, 32], sizes = [2, 16], strides = [1, 1]} : vector<2x48xf32> to vector<2x16xf32>
    %254 = vector.extract_strided_slice %242 {offsets = [0, 32], sizes = [2, 16], strides = [1, 1]} : vector<2x48xf32> to vector<2x16xf32>
    %255 = arith.mulf %251, %254 : vector<2x16xf32>
    %256 = arith.addf %253, %255 : vector<2x16xf32>
    %257 = math.tanh %256 : vector<2x16xf32>
    %cst_57 = arith.constant 1.000000e+00 : f32
    %258 = vector.broadcast %cst_57 : f32 to vector<2x16xf32>
    %259 = arith.subf %258, %252 : vector<2x16xf32>
    %260 = arith.mulf %259, %257 : vector<2x16xf32>
    %261 = arith.mulf %252, %238 : vector<2x16xf32>
    %262 = arith.addf %260, %261 : vector<2x16xf32>
    %263 = vector.extract_strided_slice %43 {offsets = [18, 0], sizes = [2, 48], strides = [1, 1]} : vector<28x48xf32> to vector<2x48xf32>
    %cst_58 = arith.constant dense<0.000000e+00> : vector<2x48xf32>
    %264 = tpu.matmul %262, %44, %cst_58 {dimension_numbers = #tpu.dot_dimension_numbers<[1], [0], [0], [1], [0, 0, 1, 1], [], []>} : vector<2x16xf32>, vector<16x48xf32>, vector<2x48xf32> -> vector<2x48xf32>
    %265 = vector.broadcast %45 : vector<1x48xf32> to vector<2x48xf32>
    %266 = arith.addf %264, %265 : vector<2x48xf32>
    %267 = vector.extract_strided_slice %263 {offsets = [0, 0], sizes = [2, 32], strides = [1, 1]} : vector<2x48xf32> to vector<2x32xf32>
    %268 = vector.extract_strided_slice %266 {offsets = [0, 0], sizes = [2, 32], strides = [1, 1]} : vector<2x48xf32> to vector<2x32xf32>
    %269 = arith.addf %267, %268 : vector<2x32xf32>
    %270 = arith.negf %269 : vector<2x32xf32>
    %271 = math.exp %270 : vector<2x32xf32>
    %cst_59 = arith.constant 1.000000e+00 : f32
    %272 = vector.broadcast %cst_59 : f32 to vector<2x32xf32>
    %273 = arith.addf %272, %271 : vector<2x32xf32>
    %274 = arith.divf %272, %273 : vector<2x32xf32>
    %275 = vector.extract_strided_slice %274 {offsets = [0, 0], sizes = [2, 16], strides = [1, 1]} : vector<2x32xf32> to vector<2x16xf32>
    %276 = vector.extract_strided_slice %274 {offsets = [0, 16], sizes = [2, 16], strides = [1, 1]} : vector<2x32xf32> to vector<2x16xf32>
    %277 = vector.extract_strided_slice %263 {offsets = [0, 32], sizes = [2, 16], strides = [1, 1]} : vector<2x48xf32> to vector<2x16xf32>
    %278 = vector.extract_strided_slice %266 {offsets = [0, 32], sizes = [2, 16], strides = [1, 1]} : vector<2x48xf32> to vector<2x16xf32>
    %279 = arith.mulf %275, %278 : vector<2x16xf32>
    %280 = arith.addf %277, %279 : vector<2x16xf32>
    %281 = math.tanh %280 : vector<2x16xf32>
    %cst_60 = arith.constant 1.000000e+00 : f32
    %282 = vector.broadcast %cst_60 : f32 to vector<2x16xf32>
    %283 = arith.subf %282, %276 : vector<2x16xf32>
    %284 = arith.mulf %283, %281 : vector<2x16xf32>
    %285 = arith.mulf %276, %262 : vector<2x16xf32>
    %286 = arith.addf %284, %285 : vector<2x16xf32>
    %287 = vector.extract_strided_slice %43 {offsets = [20, 0], sizes = [2, 48], strides = [1, 1]} : vector<28x48xf32> to vector<2x48xf32>
    %cst_61 = arith.constant dense<0.000000e+00> : vector<2x48xf32>
    %288 = tpu.matmul %286, %44, %cst_61 {dimension_numbers = #tpu.dot_dimension_numbers<[1], [0], [0], [1], [0, 0, 1, 1], [], []>} : vector<2x16xf32>, vector<16x48xf32>, vector<2x48xf32> -> vector<2x48xf32>
    %289 = vector.broadcast %45 : vector<1x48xf32> to vector<2x48xf32>
    %290 = arith.addf %288, %289 : vector<2x48xf32>
    %291 = vector.extract_strided_slice %287 {offsets = [0, 0], sizes = [2, 32], strides = [1, 1]} : vector<2x48xf32> to vector<2x32xf32>
    %292 = vector.extract_strided_slice %290 {offsets = [0, 0], sizes = [2, 32], strides = [1, 1]} : vector<2x48xf32> to vector<2x32xf32>
    %293 = arith.addf %291, %292 : vector<2x32xf32>
    %294 = arith.negf %293 : vector<2x32xf32>
    %295 = math.exp %294 : vector<2x32xf32>
    %cst_62 = arith.constant 1.000000e+00 : f32
    %296 = vector.broadcast %cst_62 : f32 to vector<2x32xf32>
    %297 = arith.addf %296, %295 : vector<2x32xf32>
    %298 = arith.divf %296, %297 : vector<2x32xf32>
    %299 = vector.extract_strided_slice %298 {offsets = [0, 0], sizes = [2, 16], strides = [1, 1]} : vector<2x32xf32> to vector<2x16xf32>
    %300 = vector.extract_strided_slice %298 {offsets = [0, 16], sizes = [2, 16], strides = [1, 1]} : vector<2x32xf32> to vector<2x16xf32>
    %301 = vector.extract_strided_slice %287 {offsets = [0, 32], sizes = [2, 16], strides = [1, 1]} : vector<2x48xf32> to vector<2x16xf32>
    %302 = vector.extract_strided_slice %290 {offsets = [0, 32], sizes = [2, 16], strides = [1, 1]} : vector<2x48xf32> to vector<2x16xf32>
    %303 = arith.mulf %299, %302 : vector<2x16xf32>
    %304 = arith.addf %301, %303 : vector<2x16xf32>
    %305 = math.tanh %304 : vector<2x16xf32>
    %cst_63 = arith.constant 1.000000e+00 : f32
    %306 = vector.broadcast %cst_63 : f32 to vector<2x16xf32>
    %307 = arith.subf %306, %300 : vector<2x16xf32>
    %308 = arith.mulf %307, %305 : vector<2x16xf32>
    %309 = arith.mulf %300, %286 : vector<2x16xf32>
    %310 = arith.addf %308, %309 : vector<2x16xf32>
    %311 = vector.extract_strided_slice %43 {offsets = [22, 0], sizes = [2, 48], strides = [1, 1]} : vector<28x48xf32> to vector<2x48xf32>
    %cst_64 = arith.constant dense<0.000000e+00> : vector<2x48xf32>
    %312 = tpu.matmul %310, %44, %cst_64 {dimension_numbers = #tpu.dot_dimension_numbers<[1], [0], [0], [1], [0, 0, 1, 1], [], []>} : vector<2x16xf32>, vector<16x48xf32>, vector<2x48xf32> -> vector<2x48xf32>
    %313 = vector.broadcast %45 : vector<1x48xf32> to vector<2x48xf32>
    %314 = arith.addf %312, %313 : vector<2x48xf32>
    %315 = vector.extract_strided_slice %311 {offsets = [0, 0], sizes = [2, 32], strides = [1, 1]} : vector<2x48xf32> to vector<2x32xf32>
    %316 = vector.extract_strided_slice %314 {offsets = [0, 0], sizes = [2, 32], strides = [1, 1]} : vector<2x48xf32> to vector<2x32xf32>
    %317 = arith.addf %315, %316 : vector<2x32xf32>
    %318 = arith.negf %317 : vector<2x32xf32>
    %319 = math.exp %318 : vector<2x32xf32>
    %cst_65 = arith.constant 1.000000e+00 : f32
    %320 = vector.broadcast %cst_65 : f32 to vector<2x32xf32>
    %321 = arith.addf %320, %319 : vector<2x32xf32>
    %322 = arith.divf %320, %321 : vector<2x32xf32>
    %323 = vector.extract_strided_slice %322 {offsets = [0, 0], sizes = [2, 16], strides = [1, 1]} : vector<2x32xf32> to vector<2x16xf32>
    %324 = vector.extract_strided_slice %322 {offsets = [0, 16], sizes = [2, 16], strides = [1, 1]} : vector<2x32xf32> to vector<2x16xf32>
    %325 = vector.extract_strided_slice %311 {offsets = [0, 32], sizes = [2, 16], strides = [1, 1]} : vector<2x48xf32> to vector<2x16xf32>
    %326 = vector.extract_strided_slice %314 {offsets = [0, 32], sizes = [2, 16], strides = [1, 1]} : vector<2x48xf32> to vector<2x16xf32>
    %327 = arith.mulf %323, %326 : vector<2x16xf32>
    %328 = arith.addf %325, %327 : vector<2x16xf32>
    %329 = math.tanh %328 : vector<2x16xf32>
    %cst_66 = arith.constant 1.000000e+00 : f32
    %330 = vector.broadcast %cst_66 : f32 to vector<2x16xf32>
    %331 = arith.subf %330, %324 : vector<2x16xf32>
    %332 = arith.mulf %331, %329 : vector<2x16xf32>
    %333 = arith.mulf %324, %310 : vector<2x16xf32>
    %334 = arith.addf %332, %333 : vector<2x16xf32>
    %335 = vector.extract_strided_slice %43 {offsets = [24, 0], sizes = [2, 48], strides = [1, 1]} : vector<28x48xf32> to vector<2x48xf32>
    %cst_67 = arith.constant dense<0.000000e+00> : vector<2x48xf32>
    %336 = tpu.matmul %334, %44, %cst_67 {dimension_numbers = #tpu.dot_dimension_numbers<[1], [0], [0], [1], [0, 0, 1, 1], [], []>} : vector<2x16xf32>, vector<16x48xf32>, vector<2x48xf32> -> vector<2x48xf32>
    %337 = vector.broadcast %45 : vector<1x48xf32> to vector<2x48xf32>
    %338 = arith.addf %336, %337 : vector<2x48xf32>
    %339 = vector.extract_strided_slice %335 {offsets = [0, 0], sizes = [2, 32], strides = [1, 1]} : vector<2x48xf32> to vector<2x32xf32>
    %340 = vector.extract_strided_slice %338 {offsets = [0, 0], sizes = [2, 32], strides = [1, 1]} : vector<2x48xf32> to vector<2x32xf32>
    %341 = arith.addf %339, %340 : vector<2x32xf32>
    %342 = arith.negf %341 : vector<2x32xf32>
    %343 = math.exp %342 : vector<2x32xf32>
    %cst_68 = arith.constant 1.000000e+00 : f32
    %344 = vector.broadcast %cst_68 : f32 to vector<2x32xf32>
    %345 = arith.addf %344, %343 : vector<2x32xf32>
    %346 = arith.divf %344, %345 : vector<2x32xf32>
    %347 = vector.extract_strided_slice %346 {offsets = [0, 0], sizes = [2, 16], strides = [1, 1]} : vector<2x32xf32> to vector<2x16xf32>
    %348 = vector.extract_strided_slice %346 {offsets = [0, 16], sizes = [2, 16], strides = [1, 1]} : vector<2x32xf32> to vector<2x16xf32>
    %349 = vector.extract_strided_slice %335 {offsets = [0, 32], sizes = [2, 16], strides = [1, 1]} : vector<2x48xf32> to vector<2x16xf32>
    %350 = vector.extract_strided_slice %338 {offsets = [0, 32], sizes = [2, 16], strides = [1, 1]} : vector<2x48xf32> to vector<2x16xf32>
    %351 = arith.mulf %347, %350 : vector<2x16xf32>
    %352 = arith.addf %349, %351 : vector<2x16xf32>
    %353 = math.tanh %352 : vector<2x16xf32>
    %cst_69 = arith.constant 1.000000e+00 : f32
    %354 = vector.broadcast %cst_69 : f32 to vector<2x16xf32>
    %355 = arith.subf %354, %348 : vector<2x16xf32>
    %356 = arith.mulf %355, %353 : vector<2x16xf32>
    %357 = arith.mulf %348, %334 : vector<2x16xf32>
    %358 = arith.addf %356, %357 : vector<2x16xf32>
    %359 = vector.extract_strided_slice %43 {offsets = [26, 0], sizes = [2, 48], strides = [1, 1]} : vector<28x48xf32> to vector<2x48xf32>
    %cst_70 = arith.constant dense<0.000000e+00> : vector<2x48xf32>
    %360 = tpu.matmul %358, %44, %cst_70 {dimension_numbers = #tpu.dot_dimension_numbers<[1], [0], [0], [1], [0, 0, 1, 1], [], []>} : vector<2x16xf32>, vector<16x48xf32>, vector<2x48xf32> -> vector<2x48xf32>
    %361 = vector.broadcast %45 : vector<1x48xf32> to vector<2x48xf32>
    %362 = arith.addf %360, %361 : vector<2x48xf32>
    %363 = vector.extract_strided_slice %359 {offsets = [0, 0], sizes = [2, 32], strides = [1, 1]} : vector<2x48xf32> to vector<2x32xf32>
    %364 = vector.extract_strided_slice %362 {offsets = [0, 0], sizes = [2, 32], strides = [1, 1]} : vector<2x48xf32> to vector<2x32xf32>
    %365 = arith.addf %363, %364 : vector<2x32xf32>
    %366 = arith.negf %365 : vector<2x32xf32>
    %367 = math.exp %366 : vector<2x32xf32>
    %cst_71 = arith.constant 1.000000e+00 : f32
    %368 = vector.broadcast %cst_71 : f32 to vector<2x32xf32>
    %369 = arith.addf %368, %367 : vector<2x32xf32>
    %370 = arith.divf %368, %369 : vector<2x32xf32>
    %371 = vector.extract_strided_slice %370 {offsets = [0, 0], sizes = [2, 16], strides = [1, 1]} : vector<2x32xf32> to vector<2x16xf32>
    %372 = vector.extract_strided_slice %370 {offsets = [0, 16], sizes = [2, 16], strides = [1, 1]} : vector<2x32xf32> to vector<2x16xf32>
    %373 = vector.extract_strided_slice %359 {offsets = [0, 32], sizes = [2, 16], strides = [1, 1]} : vector<2x48xf32> to vector<2x16xf32>
    %374 = vector.extract_strided_slice %362 {offsets = [0, 32], sizes = [2, 16], strides = [1, 1]} : vector<2x48xf32> to vector<2x16xf32>
    %375 = arith.mulf %371, %374 : vector<2x16xf32>
    %376 = arith.addf %373, %375 : vector<2x16xf32>
    %377 = math.tanh %376 : vector<2x16xf32>
    %cst_72 = arith.constant 1.000000e+00 : f32
    %378 = vector.broadcast %cst_72 : f32 to vector<2x16xf32>
    %379 = arith.subf %378, %372 : vector<2x16xf32>
    %380 = arith.mulf %379, %377 : vector<2x16xf32>
    %381 = arith.mulf %372, %358 : vector<2x16xf32>
    %382 = arith.addf %380, %381 : vector<2x16xf32>
    %383 = vector.extract_strided_slice %38 {offsets = [4, 0], sizes = [24, 8], strides = [1, 1]} : vector<28x8xf32> to vector<24x8xf32>
    %c0_73 = arith.constant 0 : index
    %c0_74 = arith.constant 0 : index
    %384 = vector.load %arg11[%c0_73, %c0_74] : memref<8x24xf32, #tpu.memory_space<vmem>>, vector<8x24xf32>
    %cst_75 = arith.constant dense<0.000000e+00> : vector<24x24xf32>
    %385 = tpu.matmul %383, %384, %cst_75 {dimension_numbers = #tpu.dot_dimension_numbers<[1], [0], [0], [1], [0, 0, 1, 1], [], []>} : vector<24x8xf32>, vector<8x24xf32>, vector<24x24xf32> -> vector<24x24xf32>
    %c0_76 = arith.constant 0 : index
    %c0_77 = arith.constant 0 : index
    %386 = vector.load %arg13[%c0_76, %c0_77] : memref<1x24xf32, #tpu.memory_space<vmem>>, vector<1x24xf32>
    %387 = vector.broadcast %386 : vector<1x24xf32> to vector<24x24xf32>
    %388 = arith.addf %385, %387 : vector<24x24xf32>
    %c0_78 = arith.constant 0 : index
    %c0_79 = arith.constant 0 : index
    %389 = vector.load %arg12[%c0_78, %c0_79] : memref<8x24xf32, #tpu.memory_space<vmem>>, vector<8x24xf32>
    %c0_80 = arith.constant 0 : index
    %c0_81 = arith.constant 0 : index
    %390 = vector.load %arg14[%c0_80, %c0_81] : memref<1x24xf32, #tpu.memory_space<vmem>>, vector<1x24xf32>
    %cst_82 = arith.constant 0.000000e+00 : f32
    %391 = vector.broadcast %cst_82 : f32 to vector<8x8xf32>
    %392 = vector.extract_strided_slice %388 {offsets = [0, 0], sizes = [8, 24], strides = [1, 1]} : vector<24x24xf32> to vector<8x24xf32>
    %cst_83 = arith.constant dense<0.000000e+00> : vector<8x24xf32>
    %393 = tpu.matmul %391, %389, %cst_83 {dimension_numbers = #tpu.dot_dimension_numbers<[1], [0], [0], [1], [0, 0, 1, 1], [], []>} : vector<8x8xf32>, vector<8x24xf32>, vector<8x24xf32> -> vector<8x24xf32>
    %394 = vector.broadcast %390 : vector<1x24xf32> to vector<8x24xf32>
    %395 = arith.addf %393, %394 : vector<8x24xf32>
    %396 = vector.extract_strided_slice %392 {offsets = [0, 0], sizes = [8, 16], strides = [1, 1]} : vector<8x24xf32> to vector<8x16xf32>
    %397 = vector.extract_strided_slice %395 {offsets = [0, 0], sizes = [8, 16], strides = [1, 1]} : vector<8x24xf32> to vector<8x16xf32>
    %398 = arith.addf %396, %397 : vector<8x16xf32>
    %399 = arith.negf %398 : vector<8x16xf32>
    %400 = math.exp %399 : vector<8x16xf32>
    %cst_84 = arith.constant 1.000000e+00 : f32
    %401 = vector.broadcast %cst_84 : f32 to vector<8x16xf32>
    %402 = arith.addf %401, %400 : vector<8x16xf32>
    %403 = arith.divf %401, %402 : vector<8x16xf32>
    %404 = vector.extract_strided_slice %403 {offsets = [0, 0], sizes = [8, 8], strides = [1, 1]} : vector<8x16xf32> to vector<8x8xf32>
    %405 = vector.extract_strided_slice %403 {offsets = [0, 8], sizes = [8, 8], strides = [1, 1]} : vector<8x16xf32> to vector<8x8xf32>
    %406 = vector.extract_strided_slice %392 {offsets = [0, 16], sizes = [8, 8], strides = [1, 1]} : vector<8x24xf32> to vector<8x8xf32>
    %407 = vector.extract_strided_slice %395 {offsets = [0, 16], sizes = [8, 8], strides = [1, 1]} : vector<8x24xf32> to vector<8x8xf32>
    %408 = arith.mulf %404, %407 : vector<8x8xf32>
    %409 = arith.addf %406, %408 : vector<8x8xf32>
    %410 = math.tanh %409 : vector<8x8xf32>
    %cst_85 = arith.constant 1.000000e+00 : f32
    %411 = vector.broadcast %cst_85 : f32 to vector<8x8xf32>
    %412 = arith.subf %411, %405 : vector<8x8xf32>
    %413 = arith.mulf %412, %410 : vector<8x8xf32>
    %414 = arith.mulf %405, %391 : vector<8x8xf32>
    %415 = arith.addf %413, %414 : vector<8x8xf32>
    %416 = vector.extract_strided_slice %388 {offsets = [8, 0], sizes = [8, 24], strides = [1, 1]} : vector<24x24xf32> to vector<8x24xf32>
    %cst_86 = arith.constant dense<0.000000e+00> : vector<8x24xf32>
    %417 = tpu.matmul %415, %389, %cst_86 {dimension_numbers = #tpu.dot_dimension_numbers<[1], [0], [0], [1], [0, 0, 1, 1], [], []>} : vector<8x8xf32>, vector<8x24xf32>, vector<8x24xf32> -> vector<8x24xf32>
    %418 = vector.broadcast %390 : vector<1x24xf32> to vector<8x24xf32>
    %419 = arith.addf %417, %418 : vector<8x24xf32>
    %420 = vector.extract_strided_slice %416 {offsets = [0, 0], sizes = [8, 16], strides = [1, 1]} : vector<8x24xf32> to vector<8x16xf32>
    %421 = vector.extract_strided_slice %419 {offsets = [0, 0], sizes = [8, 16], strides = [1, 1]} : vector<8x24xf32> to vector<8x16xf32>
    %422 = arith.addf %420, %421 : vector<8x16xf32>
    %423 = arith.negf %422 : vector<8x16xf32>
    %424 = math.exp %423 : vector<8x16xf32>
    %cst_87 = arith.constant 1.000000e+00 : f32
    %425 = vector.broadcast %cst_87 : f32 to vector<8x16xf32>
    %426 = arith.addf %425, %424 : vector<8x16xf32>
    %427 = arith.divf %425, %426 : vector<8x16xf32>
    %428 = vector.extract_strided_slice %427 {offsets = [0, 0], sizes = [8, 8], strides = [1, 1]} : vector<8x16xf32> to vector<8x8xf32>
    %429 = vector.extract_strided_slice %427 {offsets = [0, 8], sizes = [8, 8], strides = [1, 1]} : vector<8x16xf32> to vector<8x8xf32>
    %430 = vector.extract_strided_slice %416 {offsets = [0, 16], sizes = [8, 8], strides = [1, 1]} : vector<8x24xf32> to vector<8x8xf32>
    %431 = vector.extract_strided_slice %419 {offsets = [0, 16], sizes = [8, 8], strides = [1, 1]} : vector<8x24xf32> to vector<8x8xf32>
    %432 = arith.mulf %428, %431 : vector<8x8xf32>
    %433 = arith.addf %430, %432 : vector<8x8xf32>
    %434 = math.tanh %433 : vector<8x8xf32>
    %cst_88 = arith.constant 1.000000e+00 : f32
    %435 = vector.broadcast %cst_88 : f32 to vector<8x8xf32>
    %436 = arith.subf %435, %429 : vector<8x8xf32>
    %437 = arith.mulf %436, %434 : vector<8x8xf32>
    %438 = arith.mulf %429, %415 : vector<8x8xf32>
    %439 = arith.addf %437, %438 : vector<8x8xf32>
    %440 = vector.extract_strided_slice %388 {offsets = [16, 0], sizes = [8, 24], strides = [1, 1]} : vector<24x24xf32> to vector<8x24xf32>
    %cst_89 = arith.constant dense<0.000000e+00> : vector<8x24xf32>
    %441 = tpu.matmul %439, %389, %cst_89 {dimension_numbers = #tpu.dot_dimension_numbers<[1], [0], [0], [1], [0, 0, 1, 1], [], []>} : vector<8x8xf32>, vector<8x24xf32>, vector<8x24xf32> -> vector<8x24xf32>
    %442 = vector.broadcast %390 : vector<1x24xf32> to vector<8x24xf32>
    %443 = arith.addf %441, %442 : vector<8x24xf32>
    %444 = vector.extract_strided_slice %440 {offsets = [0, 0], sizes = [8, 16], strides = [1, 1]} : vector<8x24xf32> to vector<8x16xf32>
    %445 = vector.extract_strided_slice %443 {offsets = [0, 0], sizes = [8, 16], strides = [1, 1]} : vector<8x24xf32> to vector<8x16xf32>
    %446 = arith.addf %444, %445 : vector<8x16xf32>
    %447 = arith.negf %446 : vector<8x16xf32>
    %448 = math.exp %447 : vector<8x16xf32>
    %cst_90 = arith.constant 1.000000e+00 : f32
    %449 = vector.broadcast %cst_90 : f32 to vector<8x16xf32>
    %450 = arith.addf %449, %448 : vector<8x16xf32>
    %451 = arith.divf %449, %450 : vector<8x16xf32>
    %452 = vector.extract_strided_slice %451 {offsets = [0, 0], sizes = [8, 8], strides = [1, 1]} : vector<8x16xf32> to vector<8x8xf32>
    %453 = vector.extract_strided_slice %451 {offsets = [0, 8], sizes = [8, 8], strides = [1, 1]} : vector<8x16xf32> to vector<8x8xf32>
    %454 = vector.extract_strided_slice %440 {offsets = [0, 16], sizes = [8, 8], strides = [1, 1]} : vector<8x24xf32> to vector<8x8xf32>
    %455 = vector.extract_strided_slice %443 {offsets = [0, 16], sizes = [8, 8], strides = [1, 1]} : vector<8x24xf32> to vector<8x8xf32>
    %456 = arith.mulf %452, %455 : vector<8x8xf32>
    %457 = arith.addf %454, %456 : vector<8x8xf32>
    %458 = math.tanh %457 : vector<8x8xf32>
    %cst_91 = arith.constant 1.000000e+00 : f32
    %459 = vector.broadcast %cst_91 : f32 to vector<8x8xf32>
    %460 = arith.subf %459, %453 : vector<8x8xf32>
    %461 = arith.mulf %460, %458 : vector<8x8xf32>
    %462 = arith.mulf %453, %439 : vector<8x8xf32>
    %463 = arith.addf %461, %462 : vector<8x8xf32>
    %c0_92 = arith.constant 0 : index
    %c0_93 = arith.constant 0 : index
    %464 = vector.load %arg15[%c0_92, %c0_93] : memref<16x8xf32, #tpu.memory_space<vmem>>, vector<16x8xf32>
    %cst_94 = arith.constant dense<0.000000e+00> : vector<2x8xf32>
    %465 = tpu.matmul %382, %464, %cst_94 {dimension_numbers = #tpu.dot_dimension_numbers<[1], [0], [0], [1], [0, 0, 1, 1], [], []>} : vector<2x16xf32>, vector<16x8xf32>, vector<2x8xf32> -> vector<2x8xf32>
    %c0_95 = arith.constant 0 : index
    %c0_96 = arith.constant 0 : index
    %466 = vector.load %arg17[%c0_95, %c0_96] : memref<1x8xf32, #tpu.memory_space<vmem>>, vector<1x8xf32>
    %467 = vector.broadcast %466 : vector<1x8xf32> to vector<2x8xf32>
    %468 = arith.addf %465, %467 : vector<2x8xf32>
    %c0_97 = arith.constant 0 : index
    %c0_98 = arith.constant 0 : index
    %469 = vector.load %arg16[%c0_97, %c0_98] : memref<32x8xf32, #tpu.memory_space<vmem>>, vector<32x8xf32>
    %470 = vector.extract_strided_slice %463 {offsets = [0, 0], sizes = [2, 8], strides = [1, 1]} : vector<8x8xf32> to vector<2x8xf32>
    %471 = vector.extract_strided_slice %469 {offsets = [0, 0], sizes = [8, 8], strides = [1, 1]} : vector<32x8xf32> to vector<8x8xf32>
    %cst_99 = arith.constant dense<0.000000e+00> : vector<2x8xf32>
    %472 = tpu.matmul %470, %471, %cst_99 {dimension_numbers = #tpu.dot_dimension_numbers<[1], [0], [0], [1], [0, 0, 1, 1], [], []>} : vector<2x8xf32>, vector<8x8xf32>, vector<2x8xf32> -> vector<2x8xf32>
    %473 = arith.addf %468, %472 : vector<2x8xf32>
    %474 = vector.extract_strided_slice %463 {offsets = [2, 0], sizes = [2, 8], strides = [1, 1]} : vector<8x8xf32> to vector<2x8xf32>
    %475 = vector.extract_strided_slice %469 {offsets = [8, 0], sizes = [8, 8], strides = [1, 1]} : vector<32x8xf32> to vector<8x8xf32>
    %cst_100 = arith.constant dense<0.000000e+00> : vector<2x8xf32>
    %476 = tpu.matmul %474, %475, %cst_100 {dimension_numbers = #tpu.dot_dimension_numbers<[1], [0], [0], [1], [0, 0, 1, 1], [], []>} : vector<2x8xf32>, vector<8x8xf32>, vector<2x8xf32> -> vector<2x8xf32>
    %477 = arith.addf %473, %476 : vector<2x8xf32>
    %478 = vector.extract_strided_slice %463 {offsets = [4, 0], sizes = [2, 8], strides = [1, 1]} : vector<8x8xf32> to vector<2x8xf32>
    %479 = vector.extract_strided_slice %469 {offsets = [16, 0], sizes = [8, 8], strides = [1, 1]} : vector<32x8xf32> to vector<8x8xf32>
    %cst_101 = arith.constant dense<0.000000e+00> : vector<2x8xf32>
    %480 = tpu.matmul %478, %479, %cst_101 {dimension_numbers = #tpu.dot_dimension_numbers<[1], [0], [0], [1], [0, 0, 1, 1], [], []>} : vector<2x8xf32>, vector<8x8xf32>, vector<2x8xf32> -> vector<2x8xf32>
    %481 = arith.addf %477, %480 : vector<2x8xf32>
    %482 = vector.extract_strided_slice %463 {offsets = [6, 0], sizes = [2, 8], strides = [1, 1]} : vector<8x8xf32> to vector<2x8xf32>
    %483 = vector.extract_strided_slice %469 {offsets = [24, 0], sizes = [8, 8], strides = [1, 1]} : vector<32x8xf32> to vector<8x8xf32>
    %cst_102 = arith.constant dense<0.000000e+00> : vector<2x8xf32>
    %484 = tpu.matmul %482, %483, %cst_102 {dimension_numbers = #tpu.dot_dimension_numbers<[1], [0], [0], [1], [0, 0, 1, 1], [], []>} : vector<2x8xf32>, vector<8x8xf32>, vector<2x8xf32> -> vector<2x8xf32>
    %485 = arith.addf %481, %484 : vector<2x8xf32>
    %c0_103 = arith.constant 0 : index
    %c0_104 = arith.constant 0 : index
    %486 = vector.load %arg18[%c0_103, %c0_104] : memref<12x8xf32, #tpu.memory_space<vmem>>, vector<12x8xf32>
    %c0_105 = arith.constant 0 : index
    %c0_106 = arith.constant 0 : index
    %487 = vector.load %arg19[%c0_105, %c0_106] : memref<30x8xf32, #tpu.memory_space<vmem>>, vector<30x8xf32>
    %c0_107 = arith.constant 0 : index
    %c0_108 = arith.constant 0 : index
    %488 = vector.load %arg20[%c0_107, %c0_108] : memref<1x8xf32, #tpu.memory_space<vmem>>, vector<1x8xf32>
    %489 = vector.broadcast %488 : vector<1x8xf32> to vector<2x8xf32>
    %490 = arith.addf %485, %489 : vector<2x8xf32>
    %491 = vector.extract_strided_slice %0 {offsets = [26, 0], sizes = [2, 4], strides = [1, 1]} : vector<32x4xf32> to vector<2x4xf32>
    %492 = vector.extract_strided_slice %486 {offsets = [0, 0], sizes = [4, 8], strides = [1, 1]} : vector<12x8xf32> to vector<4x8xf32>
    %cst_109 = arith.constant dense<0.000000e+00> : vector<2x8xf32>
    %493 = tpu.matmul %491, %492, %cst_109 {dimension_numbers = #tpu.dot_dimension_numbers<[1], [0], [0], [1], [0, 0, 1, 1], [], []>} : vector<2x4xf32>, vector<4x8xf32>, vector<2x8xf32> -> vector<2x8xf32>
    %494 = arith.addf %490, %493 : vector<2x8xf32>
    %495 = vector.extract_strided_slice %6 {offsets = [26, 0], sizes = [2, 10], strides = [1, 1]} : vector<32x10xf32> to vector<2x10xf32>
    %496 = vector.extract_strided_slice %487 {offsets = [0, 0], sizes = [10, 8], strides = [1, 1]} : vector<30x8xf32> to vector<10x8xf32>
    %cst_110 = arith.constant dense<0.000000e+00> : vector<2x8xf32>
    %497 = tpu.matmul %495, %496, %cst_110 {dimension_numbers = #tpu.dot_dimension_numbers<[1], [0], [0], [1], [0, 0, 1, 1], [], []>} : vector<2x10xf32>, vector<10x8xf32>, vector<2x8xf32> -> vector<2x8xf32>
    %498 = arith.addf %494, %497 : vector<2x8xf32>
    %499 = vector.extract_strided_slice %0 {offsets = [28, 0], sizes = [2, 4], strides = [1, 1]} : vector<32x4xf32> to vector<2x4xf32>
    %500 = vector.extract_strided_slice %486 {offsets = [4, 0], sizes = [4, 8], strides = [1, 1]} : vector<12x8xf32> to vector<4x8xf32>
    %cst_111 = arith.constant dense<0.000000e+00> : vector<2x8xf32>
    %501 = tpu.matmul %499, %500, %cst_111 {dimension_numbers = #tpu.dot_dimension_numbers<[1], [0], [0], [1], [0, 0, 1, 1], [], []>} : vector<2x4xf32>, vector<4x8xf32>, vector<2x8xf32> -> vector<2x8xf32>
    %502 = arith.addf %498, %501 : vector<2x8xf32>
    %503 = vector.extract_strided_slice %6 {offsets = [28, 0], sizes = [2, 10], strides = [1, 1]} : vector<32x10xf32> to vector<2x10xf32>
    %504 = vector.extract_strided_slice %487 {offsets = [10, 0], sizes = [10, 8], strides = [1, 1]} : vector<30x8xf32> to vector<10x8xf32>
    %cst_112 = arith.constant dense<0.000000e+00> : vector<2x8xf32>
    %505 = tpu.matmul %503, %504, %cst_112 {dimension_numbers = #tpu.dot_dimension_numbers<[1], [0], [0], [1], [0, 0, 1, 1], [], []>} : vector<2x10xf32>, vector<10x8xf32>, vector<2x8xf32> -> vector<2x8xf32>
    %506 = arith.addf %502, %505 : vector<2x8xf32>
    %507 = vector.extract_strided_slice %0 {offsets = [30, 0], sizes = [2, 4], strides = [1, 1]} : vector<32x4xf32> to vector<2x4xf32>
    %508 = vector.extract_strided_slice %486 {offsets = [8, 0], sizes = [4, 8], strides = [1, 1]} : vector<12x8xf32> to vector<4x8xf32>
    %cst_113 = arith.constant dense<0.000000e+00> : vector<2x8xf32>
    %509 = tpu.matmul %507, %508, %cst_113 {dimension_numbers = #tpu.dot_dimension_numbers<[1], [0], [0], [1], [0, 0, 1, 1], [], []>} : vector<2x4xf32>, vector<4x8xf32>, vector<2x8xf32> -> vector<2x8xf32>
    %510 = arith.addf %506, %509 : vector<2x8xf32>
    %511 = vector.extract_strided_slice %6 {offsets = [30, 0], sizes = [2, 10], strides = [1, 1]} : vector<32x10xf32> to vector<2x10xf32>
    %512 = vector.extract_strided_slice %487 {offsets = [20, 0], sizes = [10, 8], strides = [1, 1]} : vector<30x8xf32> to vector<10x8xf32>
    %cst_114 = arith.constant dense<0.000000e+00> : vector<2x8xf32>
    %513 = tpu.matmul %511, %512, %cst_114 {dimension_numbers = #tpu.dot_dimension_numbers<[1], [0], [0], [1], [0, 0, 1, 1], [], []>} : vector<2x10xf32>, vector<10x8xf32>, vector<2x8xf32> -> vector<2x8xf32>
    %514 = arith.addf %510, %513 : vector<2x8xf32>
    %c0_115 = arith.constant 0 : index
    %c0_116 = arith.constant 0 : index
    %515 = vector.load %arg21[%c0_115, %c0_116] : memref<2x8xf32, #tpu.memory_space<vmem>>, vector<2x8xf32>
    tpu.vector_store %arg21[%c0_115, %c0_116], %514 {strides = array<i32>} : memref<2x8xf32, #tpu.memory_space<vmem>>, vector<2x8xf32>,
    return
  }
}

</mosaic_0001>

<llo_original>
// kernel: fwd.1
$region0: #{fwd.1}
  #allocation0 [shape = 'u32[]', space=smem, size = 0x4, offset = 0x4, fixed_abs, tag = 'smem constant byte address 0x4 - core index']
  #allocation1 [shape = 'u32[144,128]{1,0:T(1,128)}', space=vmem, size = 0x12000, scoped, tag = 'internal scratch']
  %s0 = inlined_call_operand.vmem [shape: f32[32,4], index: 0, kind: input, shape index: {}]
  %s1 = inlined_call_operand.vmem [shape: f32[32,5], index: 1, kind: input, shape index: {}]
  %s2 = inlined_call_operand.vmem [shape: f32[5,10], index: 2, kind: input, shape index: {}]
  %s3 = inlined_call_operand.vmem [shape: f32[1,10], index: 3, kind: input, shape index: {}]
  %s4 = inlined_call_operand.vmem [shape: f32[12,8], index: 4, kind: input, shape index: {}]
  %s5 = inlined_call_operand.vmem [shape: f32[30,8], index: 5, kind: input, shape index: {}]
  %s6 = inlined_call_operand.vmem [shape: f32[1,8], index: 6, kind: input, shape index: {}]
  %s7 = inlined_call_operand.vmem [shape: f32[8,48], index: 7, kind: input, shape index: {}]
  %s8 = inlined_call_operand.vmem [shape: f32[16,48], index: 8, kind: input, shape index: {}]
  %s9 = inlined_call_operand.vmem [shape: f32[1,48], index: 9, kind: input, shape index: {}]
  %s10 = inlined_call_operand.vmem [shape: f32[1,48], index: 10, kind: input, shape index: {}]
  %s11 = inlined_call_operand.vmem [shape: f32[8,24], index: 11, kind: input, shape index: {}]
  %s12 = inlined_call_operand.vmem [shape: f32[8,24], index: 12, kind: input, shape index: {}]
  %s13 = inlined_call_operand.vmem [shape: f32[1,24], index: 13, kind: input, shape index: {}]
  %s14 = inlined_call_operand.vmem [shape: f32[1,24], index: 14, kind: input, shape index: {}]
  %s15 = inlined_call_operand.vmem [shape: f32[16,8], index: 15, kind: input, shape index: {}]
  %s16 = inlined_call_operand.vmem [shape: f32[32,8], index: 16, kind: input, shape index: {}]
  %s17 = inlined_call_operand.vmem [shape: f32[1,8], index: 17, kind: input, shape index: {}]
  %s18 = inlined_call_operand.vmem [shape: f32[12,8], index: 18, kind: input, shape index: {}]
  %s19 = inlined_call_operand.vmem [shape: f32[30,8], index: 19, kind: input, shape index: {}]
  %s20 = inlined_call_operand.vmem [shape: f32[1,8], index: 20, kind: input, shape index: {}]
  %s21 = inlined_call_operand.vmem [shape: f32[2,8], index: 21, kind: output, shape index: {}]
  %s22 = sld [smem:[#allocation0]]
  $region94: #{fwd.1} parent=0
    _
  %s24 = ssub.s32 1, %s22
  %s25 = scalar_select 0, %s24, %s22
  // Predicated region
  $region2: #{fwd.1} parent=0 // pred_check
    _
  $region3: #{fwd.1} parent=0 // pred_check_branch
    %27 = sbr.rel (0) target = $region5
  $region4: #{fwd.1} parent=0 // pred_region
    _
  $region5: #{fwd.1} parent=0 // pred_fallthru
    _
  // Predicated region
  $region6: #{fwd.1} parent=0 // pred_check
    _
  $region7: #{fwd.1} parent=0 // pred_check_branch
    %29 = sbr.rel (0) target = $region9
  $region8: #{fwd.1} parent=0 // pred_region
    _
  $region9: #{fwd.1} parent=0 // pred_fallthru
    _
  // Predicated region
  $region10: #{fwd.1} parent=0 // pred_check
    _
  $region11: #{fwd.1} parent=0 // pred_check_branch
    %31 = sbr.rel (0) target = $region13
  $region12: #{fwd.1} parent=0 // pred_region
    _
  $region13: #{fwd.1} parent=0 // pred_fallthru
    _
  // Predicated region
  $region14: #{fwd.1} parent=0 // pred_check
    _
  $region15: #{fwd.1} parent=0 // pred_check_branch
    %33 = sbr.rel (0) target = $region17
  $region16: #{fwd.1} parent=0 // pred_region
    _
  $region17: #{fwd.1} parent=0 // pred_fallthru
    _
  // Predicated region
  $region18: #{fwd.1} parent=0 // pred_check
    _
  $region19: #{fwd.1} parent=0 // pred_check_branch
    %35 = sbr.rel (0) target = $region21
  $region20: #{fwd.1} parent=0 // pred_region
    _
  $region21: #{fwd.1} parent=0 // pred_fallthru
    _
  // Predicated region
  $region22: #{fwd.1} parent=0 // pred_check
    _
  $region23: #{fwd.1} parent=0 // pred_check_branch
    %37 = sbr.rel (0) target = $region25
  $region24: #{fwd.1} parent=0 // pred_region
    _
  $region25: #{fwd.1} parent=0 // pred_fallthru
    _
  // Predicated region
  $region26: #{fwd.1} parent=0 // pred_check
    _
  $region27: #{fwd.1} parent=0 // pred_check_branch
    %39 = sbr.rel (0) target = $region29
  $region28: #{fwd.1} parent=0 // pred_region
    _
  $region29: #{fwd.1} parent=0 // pred_fallthru
    _
  // Predicated region
  $region30: #{fwd.1} parent=0 // pred_check
    _
  $region31: #{fwd.1} parent=0 // pred_check_branch
    %41 = sbr.rel (0) target = $region33
  $region32: #{fwd.1} parent=0 // pred_region
    _
  $region33: #{fwd.1} parent=0 // pred_fallthru
    _
  // Predicated region
  $region34: #{fwd.1} parent=0 // pred_check
    _
  $region35: #{fwd.1} parent=0 // pred_check_branch
    %43 = sbr.rel (0) target = $region37
  $region36: #{fwd.1} parent=0 // pred_region
    _
  $region37: #{fwd.1} parent=0 // pred_fallthru
    _
  // Predicated region
  $region38: #{fwd.1} parent=0 // pred_check
    _
  $region39: #{fwd.1} parent=0 // pred_check_branch
    %45 = sbr.rel (0) target = $region41
  $region40: #{fwd.1} parent=0 // pred_region
    _
  $region41: #{fwd.1} parent=0 // pred_fallthru
    _
  // Predicated region
  $region42: #{fwd.1} parent=0 // pred_check
    _
  $region43: #{fwd.1} parent=0 // pred_check_branch
    %47 = sbr.rel (0) target = $region45
  $region44: #{fwd.1} parent=0 // pred_region
    _
  $region45: #{fwd.1} parent=0 // pred_fallthru
    _
  // Predicated region
  $region46: #{fwd.1} parent=0 // pred_check
    _
  $region47: #{fwd.1} parent=0 // pred_check_branch
    %49 = sbr.rel (0) target = $region49
  $region48: #{fwd.1} parent=0 // pred_region
    _
  $region49: #{fwd.1} parent=0 // pred_fallthru
    _
  // Predicated region
  $region50: #{fwd.1} parent=0 // pred_check
    _
  $region51: #{fwd.1} parent=0 // pred_check_branch
    %51 = sbr.rel (0) target = $region53
  $region52: #{fwd.1} parent=0 // pred_region
    _
  $region53: #{fwd.1} parent=0 // pred_fallthru
    _
  // Predicated region
  $region54: #{fwd.1} parent=0 // pred_check
    _
  $region55: #{fwd.1} parent=0 // pred_check_branch
    %53 = sbr.rel (0) target = $region57
  $region56: #{fwd.1} parent=0 // pred_region
    _
  $region57: #{fwd.1} parent=0 // pred_fallthru
    _
  // Predicated region
  $region58: #{fwd.1} parent=0 // pred_check
    _
  $region59: #{fwd.1} parent=0 // pred_check_branch
    %55 = sbr.rel (0) target = $region61
  $region60: #{fwd.1} parent=0 // pred_region
    _
  $region61: #{fwd.1} parent=0 // pred_fallthru
    _
  // Predicated region
  $region62: #{fwd.1} parent=0 // pred_check
    _
  $region63: #{fwd.1} parent=0 // pred_check_branch
    %57 = sbr.rel (0) target = $region65
  $region64: #{fwd.1} parent=0 // pred_region
    _
  $region65: #{fwd.1} parent=0 // pred_fallthru
    _
  // Predicated region
  $region66: #{fwd.1} parent=0 // pred_check
    _
  $region67: #{fwd.1} parent=0 // pred_check_branch
    %59 = sbr.rel (0) target = $region69
  $region68: #{fwd.1} parent=0 // pred_region
    _
  $region69: #{fwd.1} parent=0 // pred_fallthru
    _
  // Predicated region
  $region70: #{fwd.1} parent=0 // pred_check
    _
  $region71: #{fwd.1} parent=0 // pred_check_branch
    %61 = sbr.rel (0) target = $region73
  $region72: #{fwd.1} parent=0 // pred_region
    _
  $region73: #{fwd.1} parent=0 // pred_fallthru
    _
  // Predicated region
  $region74: #{fwd.1} parent=0 // pred_check
    _
  $region75: #{fwd.1} parent=0 // pred_check_branch
    %63 = sbr.rel (0) target = $region77
  $region76: #{fwd.1} parent=0 // pred_region
    _
  $region77: #{fwd.1} parent=0 // pred_fallthru
    _
  // Predicated region
  $region78: #{fwd.1} parent=0 // pred_check
    _
  $region79: #{fwd.1} parent=0 // pred_check_branch
    %65 = sbr.rel (0) target = $region81
  $region80: #{fwd.1} parent=0 // pred_region
    _
  $region81: #{fwd.1} parent=0 // pred_fallthru
    _
  // Predicated region
  $region82: #{fwd.1} parent=0 // pred_check
    _
  $region83: #{fwd.1} parent=0 // pred_check_branch
    %67 = sbr.rel (0) target = $region85
  $region84: #{fwd.1} parent=0 // pred_region
    _
  $region85: #{fwd.1} parent=0 // pred_fallthru
    _
  %v68 = vld [vmem:[%s0] sm:$0xff]
  %v69 = vld [vmem:[%s0 + $0x8] sm:$0xff]
  %v70 = vld [vmem:[%s0 + $0x10] sm:$0xff]
  %v71 = vld [vmem:[%s0 + $0x18] sm:$0xff]
  %v72 = vld [vmem:[%s1] sm:$0xff]
  %v73 = vld [vmem:[%s1 + $0x8] sm:$0xff]
  %v74 = vld [vmem:[%s1 + $0x10] sm:$0xff]
  %v75 = vld [vmem:[%s1 + $0x18] sm:$0xff]
  %v76 = vld [vmem:[%s2] sm:$0x1f]
  %v77 = vld [vmem:[%s3] sm:$0x1]
  %v79 = vlaneseq
  %v80 = vshrl.u32 %v79, 7
  %v81 = vsub.s32 0, %v80
  %v82 = vrot.slane %v77, %v81
  %vm84 = vcmask 39936
  %v86 = vsel %vm84, %v72, 0
  %v89 = vsel %vm84, %v73, 0
  %v92 = vsel %vm84, %v74, 0
  %v95 = vsel %vm84, %v75, 0
  %vm97 = vcmask 1044480
  %v99 = vsel %vm97, %v76, 0
  %101 = vmatprep.subr.mxu0 0.0
  %102 = vmatpush1.msra.mxu0 0.0
  %103 = vmatprep.subr.mxu0 0.0
  %104 = vmatpush1.msra.mxu0 0.0
  %105 = vmatprep.subr.mxu0 0.0
  %106 = vmatpush1.msra.mxu0 0.0
  %107 = vmatprep.subr.mxu0 0.0
  %108 = vmatpush1.msra.mxu0 0.0
  %109 = vmatprep.subr.mxu0 0.0
  %110 = vmatpush1.msra.mxu0 0.0
  %111 = vmatprep.subr.mxu0 0.0
  %112 = vmatpush1.msra.mxu0 0.0
  %113 = vmatprep.subr.mxu0 0.0
  %114 = vmatpush1.msra.mxu0 0.0
  %115 = vmatprep.subr.mxu0 0.0
  %116 = vmatpush1.msra.mxu0 0.0
  %117 = vmatprep.subr.mxu0 0.0
  %118 = vmatpush1.msra.mxu0 0.0
  %119 = vmatprep.subr.mxu0 0.0
  %120 = vmatpush1.msra.mxu0 0.0
  %121 = vmatprep.subr.mxu0 0.0
  %122 = vmatpush1.msra.mxu0 0.0
  %123 = vmatprep.subr.mxu0 0.0
  %124 = vmatpush1.msra.mxu0 0.0
  %125 = vmatprep.subr.mxu0 0.0
  %126 = vmatpush1.msra.mxu0 0.0
  %127 = vmatprep.subr.mxu0 0.0
  %128 = vmatpush1.msra.mxu0 0.0
  %129 = vmatprep.subr.mxu0 0.0
  %130 = vmatpush1.msra.mxu0 0.0
  %131 = vmatprep.subr.mxu0 0.0
  %132 = vmatpush1.msra.mxu0 %v99
  %133 = vmatprep.subr.mxu0 0.0
  %134 = vmatpush2.msra.mxu0 0.0
  %135 = vmatprep.subr.mxu0 0.0
  %136 = vmatpush2.msra.mxu0 0.0
  %137 = vmatprep.subr.mxu0 0.0
  %138 = vmatpush2.msra.mxu0 0.0
  %139 = vmatprep.subr.mxu0 0.0
  %140 = vmatpush2.msra.mxu0 0.0
  %141 = vmatprep.subr.mxu0 0.0
  %142 = vmatpush2.msra.mxu0 0.0
  %143 = vmatprep.subr.mxu0 0.0
  %144 = vmatpush2.msra.mxu0 0.0
  %145 = vmatprep.subr.mxu0 0.0
  %146 = vmatpush2.msra.mxu0 0.0
  %147 = vmatprep.subr.mxu0 0.0
  %148 = vmatpush2.msra.mxu0 0.0
  %149 = vmatprep.subr.mxu0 0.0
  %150 = vmatpush2.msra.mxu0 0.0
  %151 = vmatprep.subr.mxu0 0.0
  %152 = vmatpush2.msra.mxu0 0.0
  %153 = vmatprep.subr.mxu0 0.0
  %154 = vmatpush2.msra.mxu0 0.0
  %155 = vmatprep.subr.mxu0 0.0
  %156 = vmatpush2.msra.mxu0 0.0
  %157 = vmatprep.subr.mxu0 0.0
  %158 = vmatpush2.msra.mxu0 0.0
  %159 = vmatprep.subr.mxu0 0.0
  %160 = vmatpush2.msra.mxu0 0.0
  %161 = vmatprep.subr.mxu0 0.0
  %162 = vmatpush2.msra.mxu0 0.0
  %163 = vmatprep.subr.mxu0 0.0
  %164 = vmatpush2.msra.mxu0 0.0
  %165 = vmatprep.mubr.f32.mxu0 0.0
  %166 = vmatmul.mubr.f32.gmra.mxu0 %v86
  %v167 = vpop.f32.mrf.mxu0
  %v168 = vadd.f32 %v82, %v167
  %v169 = vpop.f32.mrf.mxu0
  %170 = vmatprep.mubr.f32.mxu0 0.0
  %171 = vmatmul.mubr.f32.gmra.mxu0 %v89
  %v172 = vpop.f32.mrf.mxu0
  %v173 = vadd.f32 %v82, %v172
  %v174 = vpop.f32.mrf.mxu0
  %175 = vmatprep.mubr.f32.mxu0 0.0
  %176 = vmatmul.mubr.f32.gmra.mxu0 %v92
  %v177 = vpop.f32.mrf.mxu0
  %v178 = vadd.f32 %v82, %v177
  %v179 = vpop.f32.mrf.mxu0
  %180 = vmatprep.mubr.f32.mxu0 0.0
  %181 = vmatmul.mubr.f32.gmra.mxu0 %v95
  %v182 = vpop.f32.mrf.mxu0
  %v183 = vadd.f32 %v82, %v182
  %v184 = vpop.f32.mrf.mxu0
  %185 = vdwg.mxu0
  %v186 = vld [vmem:[%s4] sm:$0xff]
  %v187 = vld [vmem:[%s4 + $0x8] sm:$0xf]
  %v188 = vld [vmem:[%s5] sm:$0xff]
  %v189 = vld [vmem:[%s5 + $0x8] sm:$0xff]
  %v190 = vld [vmem:[%s5 + $0x10] sm:$0xff]
  %v191 = vld [vmem:[%s5 + $0x18] sm:$0x3f]
  %v192 = vld [vmem:[%s6] sm:$0x1]
  %v194 = vlaneseq
  %v195 = vshrl.u32 %v194, 7
  %v196 = vsub.s32 0, %v195
  %v197 = vrot.slane %v192, %v196
  %v199 = vadd.f32 %v197, 0.0
  %vm200 = vcmask 31744
  %v202 = vsel %vm200, %v68, 0
  %v205 = vsel %vm200, %v69, 0
  %v208 = vsel %vm200, %v70, 0
  %v211 = vsel %vm200, %v71, 0
  %vm213 = vcmask 1043456
  %v215 = vsel %vm213, %v186, 0
  %217 = vmatprep.subr.mxu0 0.0
  %218 = vmatpush1.msra.mxu0 0.0
  %219 = vmatprep.subr.mxu0 0.0
  %220 = vmatpush1.msra.mxu0 0.0
  %221 = vmatprep.subr.mxu0 0.0
  %222 = vmatpush1.msra.mxu0 0.0
  %223 = vmatprep.subr.mxu0 0.0
  %224 = vmatpush1.msra.mxu0 0.0
  %225 = vmatprep.subr.mxu0 0.0
  %226 = vmatpush1.msra.mxu0 0.0
  %227 = vmatprep.subr.mxu0 0.0
  %228 = vmatpush1.msra.mxu0 0.0
  %229 = vmatprep.subr.mxu0 0.0
  %230 = vmatpush1.msra.mxu0 0.0
  %231 = vmatprep.subr.mxu0 0.0
  %232 = vmatpush1.msra.mxu0 0.0
  %233 = vmatprep.subr.mxu0 0.0
  %234 = vmatpush1.msra.mxu0 0.0
  %235 = vmatprep.subr.mxu0 0.0
  %236 = vmatpush1.msra.mxu0 0.0
  %237 = vmatprep.subr.mxu0 0.0
  %238 = vmatpush1.msra.mxu0 0.0
  %239 = vmatprep.subr.mxu0 0.0
  %240 = vmatpush1.msra.mxu0 0.0
  %241 = vmatprep.subr.mxu0 0.0
  %242 = vmatpush1.msra.mxu0 0.0
  %243 = vmatprep.subr.mxu0 0.0
  %244 = vmatpush1.msra.mxu0 0.0
  %245 = vmatprep.subr.mxu0 0.0
  %246 = vmatpush1.msra.mxu0 0.0
  %247 = vmatprep.subr.mxu0 0.0
  %248 = vmatpush1.msra.mxu0 %v215
  %249 = vmatprep.subr.mxu0 0.0
  %250 = vmatpush2.msra.mxu0 0.0
  %251 = vmatprep.subr.mxu0 0.0
  %252 = vmatpush2.msra.mxu0 0.0
  %253 = vmatprep.subr.mxu0 0.0
  %254 = vmatpush2.msra.mxu0 0.0
  %255 = vmatprep.subr.mxu0 0.0
  %256 = vmatpush2.msra.mxu0 0.0
  %257 = vmatprep.subr.mxu0 0.0
  %258 = vmatpush2.msra.mxu0 0.0
  %259 = vmatprep.subr.mxu0 0.0
  %260 = vmatpush2.msra.mxu0 0.0
  %261 = vmatprep.subr.mxu0 0.0
  %262 = vmatpush2.msra.mxu0 0.0
  %263 = vmatprep.subr.mxu0 0.0
  %264 = vmatpush2.msra.mxu0 0.0
  %265 = vmatprep.subr.mxu0 0.0
  %266 = vmatpush2.msra.mxu0 0.0
  %267 = vmatprep.subr.mxu0 0.0
  %268 = vmatpush2.msra.mxu0 0.0
  %269 = vmatprep.subr.mxu0 0.0
  %270 = vmatpush2.msra.mxu0 0.0
  %271 = vmatprep.subr.mxu0 0.0
  %272 = vmatpush2.msra.mxu0 0.0
  %273 = vmatprep.subr.mxu0 0.0
  %274 = vmatpush2.msra.mxu0 0.0
  %275 = vmatprep.subr.mxu0 0.0
  %276 = vmatpush2.msra.mxu0 0.0
  %277 = vmatprep.subr.mxu0 0.0
  %278 = vmatpush2.msra.mxu0 0.0
  %279 = vmatprep.subr.mxu0 0.0
  %280 = vmatpush2.msra.mxu0 0.0
  %281 = vmatprep.mubr.f32.mxu0 0.0
  %282 = vmatmul.mubr.f32.gmra.mxu0 %v202
  %v283 = vpop.f32.mrf.mxu0
  %v284 = vadd.f32 0.0, %v283
  %v285 = vpop.f32.mrf.mxu0
  %286 = vmatprep.mubr.f32.mxu0 0.0
  %287 = vmatmul.mubr.f32.gmra.mxu0 %v205
  %v288 = vpop.f32.mrf.mxu0
  %v289 = vadd.f32 0.0, %v288
  %v290 = vpop.f32.mrf.mxu0
  %291 = vmatprep.mubr.f32.mxu0 0.0
  %292 = vmatmul.mubr.f32.gmra.mxu0 %v208
  %v293 = vpop.f32.mrf.mxu0
  %v294 = vadd.f32 0.0, %v293
  %v295 = vpop.f32.mrf.mxu0
  %296 = vmatprep.mubr.f32.mxu0 0.0
  %297 = vmatmul.mubr.f32.gmra.mxu0 %v211
  %v298 = vpop.f32.mrf.mxu0
  %v299 = vadd.f32 0.0, %v298
  %v300 = vpop.f32.mrf.mxu0
  %301 = vdwg.mxu0
  %v302 = vadd.f32 %v199, %v284
  %v303 = vadd.f32 %v199, %v289
  %v304 = vadd.f32 %v199, %v294
  %v305 = vadd.f32 %v199, %v299
  %vm306 = vcmask 80896
  %v308 = vsel %vm306, %v168, 0
  %v311 = vsel %vm306, %v173, 0
  %v314 = vsel %vm306, %v178, 0
  %v317 = vsel %vm306, %v183, 0
  %vm319 = vcmask 1041408
  %v321 = vsel %vm319, %v189, 0
  %323 = vmatprep.subr.mxu0 0.0
  %324 = vmatpush1.msra.mxu0 0.0
  %325 = vmatprep.subr.mxu0 0.0
  %326 = vmatpush1.msra.mxu0 0.0
  %327 = vmatprep.subr.mxu0 0.0
  %328 = vmatpush1.msra.mxu0 0.0
  %329 = vmatprep.subr.mxu0 0.0
  %330 = vmatpush1.msra.mxu0 0.0
  %331 = vmatprep.subr.mxu0 0.0
  %332 = vmatpush1.msra.mxu0 0.0
  %333 = vmatprep.subr.mxu0 0.0
  %334 = vmatpush1.msra.mxu0 0.0
  %335 = vmatprep.subr.mxu0 0.0
  %336 = vmatpush1.msra.mxu0 0.0
  %337 = vmatprep.subr.mxu0 0.0
  %338 = vmatpush1.msra.mxu0 0.0
  %339 = vmatprep.subr.mxu0 0.0
  %340 = vmatpush1.msra.mxu0 0.0
  %341 = vmatprep.subr.mxu0 0.0
  %342 = vmatpush1.msra.mxu0 0.0
  %343 = vmatprep.subr.mxu0 0.0
  %344 = vmatpush1.msra.mxu0 0.0
  %345 = vmatprep.subr.mxu0 0.0
  %346 = vmatpush1.msra.mxu0 0.0
  %347 = vmatprep.subr.mxu0 0.0
  %348 = vmatpush1.msra.mxu0 0.0
  %349 = vmatprep.subr.mxu0 0.0
  %350 = vmatpush1.msra.mxu0 0.0
  %351 = vmatprep.subr.mxu0 0.0
  %352 = vmatpush1.msra.mxu0 %v321
  %353 = vmatprep.subr.mxu0 0.0
  %354 = vmatpush1.msra.mxu0 %v188
  %355 = vmatprep.subr.mxu0 0.0
  %356 = vmatpush2.msra.mxu0 0.0
  %357 = vmatprep.subr.mxu0 0.0
  %358 = vmatpush2.msra.mxu0 0.0
  %359 = vmatprep.subr.mxu0 0.0
  %360 = vmatpush2.msra.mxu0 0.0
  %361 = vmatprep.subr.mxu0 0.0
  %362 = vmatpush2.msra.mxu0 0.0
  %363 = vmatprep.subr.mxu0 0.0
  %364 = vmatpush2.msra.mxu0 0.0
  %365 = vmatprep.subr.mxu0 0.0
  %366 = vmatpush2.msra.mxu0 0.0
  %367 = vmatprep.subr.mxu0 0.0
  %368 = vmatpush2.msra.mxu0 0.0
  %369 = vmatprep.subr.mxu0 0.0
  %370 = vmatpush2.msra.mxu0 0.0
  %371 = vmatprep.subr.mxu0 0.0
  %372 = vmatpush2.msra.mxu0 0.0
  %373 = vmatprep.subr.mxu0 0.0
  %374 = vmatpush2.msra.mxu0 0.0
  %375 = vmatprep.subr.mxu0 0.0
  %376 = vmatpush2.msra.mxu0 0.0
  %377 = vmatprep.subr.mxu0 0.0
  %378 = vmatpush2.msra.mxu0 0.0
  %379 = vmatprep.subr.mxu0 0.0
  %380 = vmatpush2.msra.mxu0 0.0
  %381 = vmatprep.subr.mxu0 0.0
  %382 = vmatpush2.msra.mxu0 0.0
  %383 = vmatprep.subr.mxu0 0.0
  %384 = vmatpush2.msra.mxu0 0.0
  %385 = vmatprep.subr.mxu0 0.0
  %386 = vmatpush2.msra.mxu0 0.0
  %387 = vmatprep.mubr.f32.mxu0 0.0
  %388 = vmatmul.mubr.f32.gmra.mxu0 %v308
  %v389 = vpop.f32.mrf.mxu0
  %v390 = vadd.f32 0.0, %v389
  %v391 = vpop.f32.mrf.mxu0
  %392 = vmatprep.mubr.f32.mxu0 0.0
  %393 = vmatmul.mubr.f32.gmra.mxu0 %v311
  %v394 = vpop.f32.mrf.mxu0
  %v395 = vadd.f32 0.0, %v394
  %v396 = vpop.f32.mrf.mxu0
  %397 = vmatprep.mubr.f32.mxu0 0.0
  %398 = vmatmul.mubr.f32.gmra.mxu0 %v314
  %v399 = vpop.f32.mrf.mxu0
  %v400 = vadd.f32 0.0, %v399
  %v401 = vpop.f32.mrf.mxu0
  %402 = vmatprep.mubr.f32.mxu0 0.0
  %403 = vmatmul.mubr.f32.gmra.mxu0 %v317
  %v404 = vpop.f32.mrf.mxu0
  %v405 = vadd.f32 0.0, %v404
  %v406 = vpop.f32.mrf.mxu0
  %407 = vdwg.mxu0
  %v408 = vadd.f32 %v302, %v390
  %v409 = vadd.f32 %v303, %v395
  %v410 = vadd.f32 %v304, %v400
  %v411 = vadd.f32 %v305, %v405
  %vm412 = vcmask 1045504
  %v413 = vrot.slane %v68, 2
  %v414 = vrot.slane %v69, 2
  %v415 = vsel %vm412, %v413, %v414
  %v416 = vrot.slane %v70, 2
  %v417 = vsel %vm412, %v414, %v416
  %v418 = vrot.slane %v71, 2
  %v419 = vsel %vm412, %v416, %v418
  %v420 = vrot.slane %v186, 4
  %v421 = vsel %vm200, %v415, 0
  %v423 = vsel %vm200, %v417, 0
  %v425 = vsel %vm200, %v419, 0
  %v427 = vsel %vm200, %v418, 0
  %v429 = vsel %vm213, %v420, 0
  %431 = vmatprep.subr.mxu0 0.0
  %432 = vmatpush1.msra.mxu0 0.0
  %433 = vmatprep.subr.mxu0 0.0
  %434 = vmatpush1.msra.mxu0 0.0
  %435 = vmatprep.subr.mxu0 0.0
  %436 = vmatpush1.msra.mxu0 0.0
  %437 = vmatprep.subr.mxu0 0.0
  %438 = vmatpush1.msra.mxu0 0.0
  %439 = vmatprep.subr.mxu0 0.0
  %440 = vmatpush1.msra.mxu0 0.0
  %441 = vmatprep.subr.mxu0 0.0
  %442 = vmatpush1.msra.mxu0 0.0
  %443 = vmatprep.subr.mxu0 0.0
  %444 = vmatpush1.msra.mxu0 0.0
  %445 = vmatprep.subr.mxu0 0.0
  %446 = vmatpush1.msra.mxu0 0.0
  %447 = vmatprep.subr.mxu0 0.0
  %448 = vmatpush1.msra.mxu0 0.0
  %449 = vmatprep.subr.mxu0 0.0
  %450 = vmatpush1.msra.mxu0 0.0
  %451 = vmatprep.subr.mxu0 0.0
  %452 = vmatpush1.msra.mxu0 0.0
  %453 = vmatprep.subr.mxu0 0.0
  %454 = vmatpush1.msra.mxu0 0.0
  %455 = vmatprep.subr.mxu0 0.0
  %456 = vmatpush1.msra.mxu0 0.0
  %457 = vmatprep.subr.mxu0 0.0
  %458 = vmatpush1.msra.mxu0 0.0
  %459 = vmatprep.subr.mxu0 0.0
  %460 = vmatpush1.msra.mxu0 0.0
  %461 = vmatprep.subr.mxu0 0.0
  %462 = vmatpush1.msra.mxu0 %v429
  %463 = vmatprep.subr.mxu0 0.0
  %464 = vmatpush2.msra.mxu0 0.0
  %465 = vmatprep.subr.mxu0 0.0
  %466 = vmatpush2.msra.mxu0 0.0
  %467 = vmatprep.subr.mxu0 0.0
  %468 = vmatpush2.msra.mxu0 0.0
  %469 = vmatprep.subr.mxu0 0.0
  %470 = vmatpush2.msra.mxu0 0.0
  %471 = vmatprep.subr.mxu0 0.0
  %472 = vmatpush2.msra.mxu0 0.0
  %473 = vmatprep.subr.mxu0 0.0
  %474 = vmatpush2.msra.mxu0 0.0
  %475 = vmatprep.subr.mxu0 0.0
  %476 = vmatpush2.msra.mxu0 0.0
  %477 = vmatprep.subr.mxu0 0.0
  %478 = vmatpush2.msra.mxu0 0.0
  %479 = vmatprep.subr.mxu0 0.0
  %480 = vmatpush2.msra.mxu0 0.0
  %481 = vmatprep.subr.mxu0 0.0
  %482 = vmatpush2.msra.mxu0 0.0
  %483 = vmatprep.subr.mxu0 0.0
  %484 = vmatpush2.msra.mxu0 0.0
  %485 = vmatprep.subr.mxu0 0.0
  %486 = vmatpush2.msra.mxu0 0.0
  %487 = vmatprep.subr.mxu0 0.0
  %488 = vmatpush2.msra.mxu0 0.0
  %489 = vmatprep.subr.mxu0 0.0
  %490 = vmatpush2.msra.mxu0 0.0
  %491 = vmatprep.subr.mxu0 0.0
  %492 = vmatpush2.msra.mxu0 0.0
  %493 = vmatprep.subr.mxu0 0.0
  %494 = vmatpush2.msra.mxu0 0.0
  %495 = vmatprep.mubr.f32.mxu0 0.0
  %496 = vmatmul.mubr.f32.gmra.mxu0 %v421
  %v497 = vpop.f32.mrf.mxu0
  %v498 = vadd.f32 0.0, %v497
  %v499 = vpop.f32.mrf.mxu0
  %500 = vmatprep.mubr.f32.mxu0 0.0
  %501 = vmatmul.mubr.f32.gmra.mxu0 %v423
  %v502 = vpop.f32.mrf.mxu0
  %v503 = vadd.f32 0.0, %v502
  %v504 = vpop.f32.mrf.mxu0
  %505 = vmatprep.mubr.f32.mxu0 0.0
  %506 = vmatmul.mubr.f32.gmra.mxu0 %v425
  %v507 = vpop.f32.mrf.mxu0
  %v508 = vadd.f32 0.0, %v507
  %v509 = vpop.f32.mrf.mxu0
  %510 = vmatprep.mubr.f32.mxu0 0.0
  %511 = vmatmul.mubr.f32.gmra.mxu0 %v427
  %v512 = vpop.f32.mrf.mxu0
  %v513 = vadd.f32 0.0, %v512
  %v514 = vpop.f32.mrf.mxu0
  %515 = vdwg.mxu0
  %v516 = vadd.f32 %v408, %v498
  %v517 = vadd.f32 %v409, %v503
  %v518 = vadd.f32 %v410, %v508
  %v519 = vadd.f32 %v411, %v513
  %v520 = vrot.slane %v168, 2
  %v521 = vrot.slane %v173, 2
  %v522 = vsel %vm412, %v520, %v521
  %v523 = vrot.slane %v178, 2
  %v524 = vsel %vm412, %v521, %v523
  %v525 = vrot.slane %v183, 2
  %v526 = vsel %vm412, %v523, %v525
  %v528 = vrot.slane %v189, 2
  %v529 = vrot.slane %v190, 2
  %v530 = vsel %vm412, %v528, %v529
  %v532 = vsel %vm306, %v522, 0
  %v534 = vsel %vm306, %v524, 0
  %v536 = vsel %vm306, %v526, 0
  %v538 = vsel %vm306, %v525, 0
  %v540 = vsel %vm319, %v529, 0
  %542 = vmatprep.subr.mxu0 0.0
  %543 = vmatpush1.msra.mxu0 0.0
  %544 = vmatprep.subr.mxu0 0.0
  %545 = vmatpush1.msra.mxu0 0.0
  %546 = vmatprep.subr.mxu0 0.0
  %547 = vmatpush1.msra.mxu0 0.0
  %548 = vmatprep.subr.mxu0 0.0
  %549 = vmatpush1.msra.mxu0 0.0
  %550 = vmatprep.subr.mxu0 0.0
  %551 = vmatpush1.msra.mxu0 0.0
  %552 = vmatprep.subr.mxu0 0.0
  %553 = vmatpush1.msra.mxu0 0.0
  %554 = vmatprep.subr.mxu0 0.0
  %555 = vmatpush1.msra.mxu0 0.0
  %556 = vmatprep.subr.mxu0 0.0
  %557 = vmatpush1.msra.mxu0 0.0
  %558 = vmatprep.subr.mxu0 0.0
  %559 = vmatpush1.msra.mxu0 0.0
  %560 = vmatprep.subr.mxu0 0.0
  %561 = vmatpush1.msra.mxu0 0.0
  %562 = vmatprep.subr.mxu0 0.0
  %563 = vmatpush1.msra.mxu0 0.0
  %564 = vmatprep.subr.mxu0 0.0
  %565 = vmatpush1.msra.mxu0 0.0
  %566 = vmatprep.subr.mxu0 0.0
  %567 = vmatpush1.msra.mxu0 0.0
  %568 = vmatprep.subr.mxu0 0.0
  %569 = vmatpush1.msra.mxu0 0.0
  %570 = vmatprep.subr.mxu0 0.0
  %571 = vmatpush1.msra.mxu0 %v540
  %572 = vmatprep.subr.mxu0 0.0
  %573 = vmatpush1.msra.mxu0 %v530
  %574 = vmatprep.subr.mxu0 0.0
  %575 = vmatpush2.msra.mxu0 0.0
  %576 = vmatprep.subr.mxu0 0.0
  %577 = vmatpush2.msra.mxu0 0.0
  %578 = vmatprep.subr.mxu0 0.0
  %579 = vmatpush2.msra.mxu0 0.0
  %580 = vmatprep.subr.mxu0 0.0
  %581 = vmatpush2.msra.mxu0 0.0
  %582 = vmatprep.subr.mxu0 0.0
  %583 = vmatpush2.msra.mxu0 0.0
  %584 = vmatprep.subr.mxu0 0.0
  %585 = vmatpush2.msra.mxu0 0.0
  %586 = vmatprep.subr.mxu0 0.0
  %587 = vmatpush2.msra.mxu0 0.0
  %588 = vmatprep.subr.mxu0 0.0
  %589 = vmatpush2.msra.mxu0 0.0
  %590 = vmatprep.subr.mxu0 0.0
  %591 = vmatpush2.msra.mxu0 0.0
  %592 = vmatprep.subr.mxu0 0.0
  %593 = vmatpush2.msra.mxu0 0.0
  %594 = vmatprep.subr.mxu0 0.0
  %595 = vmatpush2.msra.mxu0 0.0
  %596 = vmatprep.subr.mxu0 0.0
  %597 = vmatpush2.msra.mxu0 0.0
  %598 = vmatprep.subr.mxu0 0.0
  %599 = vmatpush2.msra.mxu0 0.0
  %600 = vmatprep.subr.mxu0 0.0
  %601 = vmatpush2.msra.mxu0 0.0
  %602 = vmatprep.subr.mxu0 0.0
  %603 = vmatpush2.msra.mxu0 0.0
  %604 = vmatprep.subr.mxu0 0.0
  %605 = vmatpush2.msra.mxu0 0.0
  %606 = vmatprep.mubr.f32.mxu0 0.0
  %607 = vmatmul.mubr.f32.gmra.mxu0 %v532
  %v608 = vpop.f32.mrf.mxu0
  %v609 = vadd.f32 0.0, %v608
  %v610 = vpop.f32.mrf.mxu0
  %611 = vmatprep.mubr.f32.mxu0 0.0
  %612 = vmatmul.mubr.f32.gmra.mxu0 %v534
  %v613 = vpop.f32.mrf.mxu0
  %v614 = vadd.f32 0.0, %v613
  %v615 = vpop.f32.mrf.mxu0
  %616 = vmatprep.mubr.f32.mxu0 0.0
  %617 = vmatmul.mubr.f32.gmra.mxu0 %v536
  %v618 = vpop.f32.mrf.mxu0
  %v619 = vadd.f32 0.0, %v618
  %v620 = vpop.f32.mrf.mxu0
  %621 = vmatprep.mubr.f32.mxu0 0.0
  %622 = vmatmul.mubr.f32.gmra.mxu0 %v538
  %v623 = vpop.f32.mrf.mxu0
  %v624 = vadd.f32 0.0, %v623
  %v625 = vpop.f32.mrf.mxu0
  %626 = vdwg.mxu0
  %v627 = vadd.f32 %v516, %v609
  %v628 = vadd.f32 %v517, %v614
  %v629 = vadd.f32 %v518, %v619
  %v630 = vadd.f32 %v519, %v624
  %v631 = vrot.slane %v68, 4
  %v632 = vrot.slane %v69, 4
  %v633 = vsel %vm213, %v631, %v632
  %v634 = vrot.slane %v70, 4
  %v635 = vsel %vm213, %v632, %v634
  %v636 = vrot.slane %v71, 4
  %v637 = vsel %vm213, %v634, %v636
  %v638 = vsel %vm200, %v633, 0
  %v640 = vsel %vm200, %v635, 0
  %v642 = vsel %vm200, %v637, 0
  %v644 = vsel %vm200, %v636, 0
  %v647 = vsel %vm213, %v187, 0
  %649 = vmatprep.subr.mxu0 0.0
  %650 = vmatpush1.msra.mxu0 0.0
  %651 = vmatprep.subr.mxu0 0.0
  %652 = vmatpush1.msra.mxu0 0.0
  %653 = vmatprep.subr.mxu0 0.0
  %654 = vmatpush1.msra.mxu0 0.0
  %655 = vmatprep.subr.mxu0 0.0
  %656 = vmatpush1.msra.mxu0 0.0
  %657 = vmatprep.subr.mxu0 0.0
  %658 = vmatpush1.msra.mxu0 0.0
  %659 = vmatprep.subr.mxu0 0.0
  %660 = vmatpush1.msra.mxu0 0.0
  %661 = vmatprep.subr.mxu0 0.0
  %662 = vmatpush1.msra.mxu0 0.0
  %663 = vmatprep.subr.mxu0 0.0
  %664 = vmatpush1.msra.mxu0 0.0
  %665 = vmatprep.subr.mxu0 0.0
  %666 = vmatpush1.msra.mxu0 0.0
  %667 = vmatprep.subr.mxu0 0.0
  %668 = vmatpush1.msra.mxu0 0.0
  %669 = vmatprep.subr.mxu0 0.0
  %670 = vmatpush1.msra.mxu0 0.0
  %671 = vmatprep.subr.mxu0 0.0
  %672 = vmatpush1.msra.mxu0 0.0
  %673 = vmatprep.subr.mxu0 0.0
  %674 = vmatpush1.msra.mxu0 0.0
  %675 = vmatprep.subr.mxu0 0.0
  %676 = vmatpush1.msra.mxu0 0.0
  %677 = vmatprep.subr.mxu0 0.0
  %678 = vmatpush1.msra.mxu0 0.0
  %679 = vmatprep.subr.mxu0 0.0
  %680 = vmatpush1.msra.mxu0 %v647
  %681 = vmatprep.subr.mxu0 0.0
  %682 = vmatpush2.msra.mxu0 0.0
  %683 = vmatprep.subr.mxu0 0.0
  %684 = vmatpush2.msra.mxu0 0.0
  %685 = vmatprep.subr.mxu0 0.0
  %686 = vmatpush2.msra.mxu0 0.0
  %687 = vmatprep.subr.mxu0 0.0
  %688 = vmatpush2.msra.mxu0 0.0
  %689 = vmatprep.subr.mxu0 0.0
  %690 = vmatpush2.msra.mxu0 0.0
  %691 = vmatprep.subr.mxu0 0.0
  %692 = vmatpush2.msra.mxu0 0.0
  %693 = vmatprep.subr.mxu0 0.0
  %694 = vmatpush2.msra.mxu0 0.0
  %695 = vmatprep.subr.mxu0 0.0
  %696 = vmatpush2.msra.mxu0 0.0
  %697 = vmatprep.subr.mxu0 0.0
  %698 = vmatpush2.msra.mxu0 0.0
  %699 = vmatprep.subr.mxu0 0.0
  %700 = vmatpush2.msra.mxu0 0.0
  %701 = vmatprep.subr.mxu0 0.0
  %702 = vmatpush2.msra.mxu0 0.0
  %703 = vmatprep.subr.mxu0 0.0
  %704 = vmatpush2.msra.mxu0 0.0
  %705 = vmatprep.subr.mxu0 0.0
  %706 = vmatpush2.msra.mxu0 0.0
  %707 = vmatprep.subr.mxu0 0.0
  %708 = vmatpush2.msra.mxu0 0.0
  %709 = vmatprep.subr.mxu0 0.0
  %710 = vmatpush2.msra.mxu0 0.0
  %711 = vmatprep.subr.mxu0 0.0
  %712 = vmatpush2.msra.mxu0 0.0
  %713 = vmatprep.mubr.f32.mxu0 0.0
  %714 = vmatmul.mubr.f32.gmra.mxu0 %v638
  %v715 = vpop.f32.mrf.mxu0
  %v716 = vadd.f32 0.0, %v715
  %v717 = vpop.f32.mrf.mxu0
  %718 = vmatprep.mubr.f32.mxu0 0.0
  %719 = vmatmul.mubr.f32.gmra.mxu0 %v640
  %v720 = vpop.f32.mrf.mxu0
  %v721 = vadd.f32 0.0, %v720
  %v722 = vpop.f32.mrf.mxu0
  %723 = vmatprep.mubr.f32.mxu0 0.0
  %724 = vmatmul.mubr.f32.gmra.mxu0 %v642
  %v725 = vpop.f32.mrf.mxu0
  %v726 = vadd.f32 0.0, %v725
  %v727 = vpop.f32.mrf.mxu0
  %728 = vmatprep.mubr.f32.mxu0 0.0
  %729 = vmatmul.mubr.f32.gmra.mxu0 %v644
  %v730 = vpop.f32.mrf.mxu0
  %v731 = vadd.f32 0.0, %v730
  %v732 = vpop.f32.mrf.mxu0
  %733 = vdwg.mxu0
  %v734 = vadd.f32 %v627, %v716
  %v735 = vadd.f32 %v628, %v721
  %v736 = vadd.f32 %v629, %v726
  %v737 = vadd.f32 %v630, %v731
  %v738 = vrot.slane %v168, 4
  %v739 = vrot.slane %v173, 4
  %v740 = vsel %vm213, %v738, %v739
  %v741 = vrot.slane %v178, 4
  %v742 = vsel %vm213, %v739, %v741
  %v743 = vrot.slane %v183, 4
  %v744 = vsel %vm213, %v741, %v743
  %v746 = vrot.slane %v190, 4
  %v747 = vrot.slane %v191, 4
  %v748 = vsel %vm213, %v746, %v747
  %v750 = vsel %vm306, %v740, 0
  %v752 = vsel %vm306, %v742, 0
  %v754 = vsel %vm306, %v744, 0
  %v756 = vsel %vm306, %v743, 0
  %v758 = vsel %vm319, %v747, 0
  %760 = vmatprep.subr.mxu0 0.0
  %761 = vmatpush1.msra.mxu0 0.0
  %762 = vmatprep.subr.mxu0 0.0
  %763 = vmatpush1.msra.mxu0 0.0
  %764 = vmatprep.subr.mxu0 0.0
  %765 = vmatpush1.msra.mxu0 0.0
  %766 = vmatprep.subr.mxu0 0.0
  %767 = vmatpush1.msra.mxu0 0.0
  %768 = vmatprep.subr.mxu0 0.0
  %769 = vmatpush1.msra.mxu0 0.0
  %770 = vmatprep.subr.mxu0 0.0
  %771 = vmatpush1.msra.mxu0 0.0
  %772 = vmatprep.subr.mxu0 0.0
  %773 = vmatpush1.msra.mxu0 0.0
  %774 = vmatprep.subr.mxu0 0.0
  %775 = vmatpush1.msra.mxu0 0.0
  %776 = vmatprep.subr.mxu0 0.0
  %777 = vmatpush1.msra.mxu0 0.0
  %778 = vmatprep.subr.mxu0 0.0
  %779 = vmatpush1.msra.mxu0 0.0
  %780 = vmatprep.subr.mxu0 0.0
  %781 = vmatpush1.msra.mxu0 0.0
  %782 = vmatprep.subr.mxu0 0.0
  %783 = vmatpush1.msra.mxu0 0.0
  %784 = vmatprep.subr.mxu0 0.0
  %785 = vmatpush1.msra.mxu0 0.0
  %786 = vmatprep.subr.mxu0 0.0
  %787 = vmatpush1.msra.mxu0 0.0
  %788 = vmatprep.subr.mxu0 0.0
  %789 = vmatpush1.msra.mxu0 %v758
  %790 = vmatprep.subr.mxu0 0.0
  %791 = vmatpush1.msra.mxu0 %v748
  %792 = vmatprep.subr.mxu0 0.0
  %793 = vmatpush2.msra.mxu0 0.0
  %794 = vmatprep.subr.mxu0 0.0
  %795 = vmatpush2.msra.mxu0 0.0
  %796 = vmatprep.subr.mxu0 0.0
  %797 = vmatpush2.msra.mxu0 0.0
  %798 = vmatprep.subr.mxu0 0.0
  %799 = vmatpush2.msra.mxu0 0.0
  %800 = vmatprep.subr.mxu0 0.0
  %801 = vmatpush2.msra.mxu0 0.0
  %802 = vmatprep.subr.mxu0 0.0
  %803 = vmatpush2.msra.mxu0 0.0
  %804 = vmatprep.subr.mxu0 0.0
  %805 = vmatpush2.msra.mxu0 0.0
  %806 = vmatprep.subr.mxu0 0.0
  %807 = vmatpush2.msra.mxu0 0.0
  %808 = vmatprep.subr.mxu0 0.0
  %809 = vmatpush2.msra.mxu0 0.0
  %810 = vmatprep.subr.mxu0 0.0
  %811 = vmatpush2.msra.mxu0 0.0
  %812 = vmatprep.subr.mxu0 0.0
  %813 = vmatpush2.msra.mxu0 0.0
  %814 = vmatprep.subr.mxu0 0.0
  %815 = vmatpush2.msra.mxu0 0.0
  %816 = vmatprep.subr.mxu0 0.0
  %817 = vmatpush2.msra.mxu0 0.0
  %818 = vmatprep.subr.mxu0 0.0
  %819 = vmatpush2.msra.mxu0 0.0
  %820 = vmatprep.subr.mxu0 0.0
  %821 = vmatpush2.msra.mxu0 0.0
  %822 = vmatprep.subr.mxu0 0.0
  %823 = vmatpush2.msra.mxu0 0.0
  %824 = vmatprep.mubr.f32.mxu0 0.0
  %825 = vmatmul.mubr.f32.gmra.mxu0 %v750
  %v826 = vpop.f32.mrf.mxu0
  %v827 = vadd.f32 0.0, %v826
  %v828 = vpop.f32.mrf.mxu0
  %829 = vmatprep.mubr.f32.mxu0 0.0
  %830 = vmatmul.mubr.f32.gmra.mxu0 %v752
  %v831 = vpop.f32.mrf.mxu0
  %v832 = vadd.f32 0.0, %v831
  %v833 = vpop.f32.mrf.mxu0
  %834 = vmatprep.mubr.f32.mxu0 0.0
  %835 = vmatmul.mubr.f32.gmra.mxu0 %v754
  %v836 = vpop.f32.mrf.mxu0
  %v837 = vadd.f32 0.0, %v836
  %v838 = vpop.f32.mrf.mxu0
  %839 = vmatprep.mubr.f32.mxu0 0.0
  %840 = vmatmul.mubr.f32.gmra.mxu0 %v756
  %v841 = vpop.f32.mrf.mxu0
  %v842 = vadd.f32 0.0, %v841
  %v843 = vpop.f32.mrf.mxu0
  %844 = vdwg.mxu0
  %v845 = vadd.f32 %v734, %v827
  %v846 = vadd.f32 %v735, %v832
  %v847 = vadd.f32 %v736, %v837
  %v848 = vadd.f32 %v737, %v842
  %v849 = vmax.f32 %v845, 0.0
  %v850 = vmax.f32 %v846, 0.0
  %v851 = vmax.f32 %v847, 0.0
  %v852 = vmax.f32 %v848, 0.0
  %v853 = vld [vmem:[%s7] sm:$0xff]
  %v854 = vld [vmem:[%s9] sm:$0x1]
  %v856 = vlaneseq
  %v857 = vshrl.u32 %v856, 7
  %v858 = vsub.s32 0, %v857
  %v859 = vrot.slane %v854, %v858
  %vm861 = vcmask 64512
  %v863 = vsel %vm861, %v849, 0
  %v866 = vsel %vm861, %v850, 0
  %v869 = vsel %vm861, %v851, 0
  %v872 = vsel %vm861, %v852, 0
  %874 = vmatprep.subr.mxu0 0.0
  %875 = vmatpush1.msra.mxu0 0.0
  %876 = vmatprep.subr.mxu0 0.0
  %877 = vmatpush1.msra.mxu0 0.0
  %878 = vmatprep.subr.mxu0 0.0
  %879 = vmatpush1.msra.mxu0 0.0
  %880 = vmatprep.subr.mxu0 0.0
  %881 = vmatpush1.msra.mxu0 0.0
  %882 = vmatprep.subr.mxu0 0.0
  %883 = vmatpush1.msra.mxu0 0.0
  %884 = vmatprep.subr.mxu0 0.0
  %885 = vmatpush1.msra.mxu0 0.0
  %886 = vmatprep.subr.mxu0 0.0
  %887 = vmatpush1.msra.mxu0 0.0
  %888 = vmatprep.subr.mxu0 0.0
  %889 = vmatpush1.msra.mxu0 0.0
  %890 = vmatprep.subr.mxu0 0.0
  %891 = vmatpush1.msra.mxu0 0.0
  %892 = vmatprep.subr.mxu0 0.0
  %893 = vmatpush1.msra.mxu0 0.0
  %894 = vmatprep.subr.mxu0 0.0
  %895 = vmatpush1.msra.mxu0 0.0
  %896 = vmatprep.subr.mxu0 0.0
  %897 = vmatpush1.msra.mxu0 0.0
  %898 = vmatprep.subr.mxu0 0.0
  %899 = vmatpush1.msra.mxu0 0.0
  %900 = vmatprep.subr.mxu0 0.0
  %901 = vmatpush1.msra.mxu0 0.0
  %902 = vmatprep.subr.mxu0 0.0
  %903 = vmatpush1.msra.mxu0 0.0
  %904 = vmatprep.subr.mxu0 0.0
  %905 = vmatpush1.msra.mxu0 %v853
  %906 = vmatprep.subr.mxu0 0.0
  %907 = vmatpush2.msra.mxu0 0.0
  %908 = vmatprep.subr.mxu0 0.0
  %909 = vmatpush2.msra.mxu0 0.0
  %910 = vmatprep.subr.mxu0 0.0
  %911 = vmatpush2.msra.mxu0 0.0
  %912 = vmatprep.subr.mxu0 0.0
  %913 = vmatpush2.msra.mxu0 0.0
  %914 = vmatprep.subr.mxu0 0.0
  %915 = vmatpush2.msra.mxu0 0.0
  %916 = vmatprep.subr.mxu0 0.0
  %917 = vmatpush2.msra.mxu0 0.0
  %918 = vmatprep.subr.mxu0 0.0
  %919 = vmatpush2.msra.mxu0 0.0
  %920 = vmatprep.subr.mxu0 0.0
  %921 = vmatpush2.msra.mxu0 0.0
  %922 = vmatprep.subr.mxu0 0.0
  %923 = vmatpush2.msra.mxu0 0.0
  %924 = vmatprep.subr.mxu0 0.0
  %925 = vmatpush2.msra.mxu0 0.0
  %926 = vmatprep.subr.mxu0 0.0
  %927 = vmatpush2.msra.mxu0 0.0
  %928 = vmatprep.subr.mxu0 0.0
  %929 = vmatpush2.msra.mxu0 0.0
  %930 = vmatprep.subr.mxu0 0.0
  %931 = vmatpush2.msra.mxu0 0.0
  %932 = vmatprep.subr.mxu0 0.0
  %933 = vmatpush2.msra.mxu0 0.0
  %934 = vmatprep.subr.mxu0 0.0
  %935 = vmatpush2.msra.mxu0 0.0
  %936 = vmatprep.subr.mxu0 0.0
  %937 = vmatpush2.msra.mxu0 0.0
  %938 = vmatprep.mubr.f32.mxu0 0.0
  %939 = vmatmul.mubr.f32.gmra.mxu0 %v863
  %v940 = vpop.f32.mrf.mxu0
  %v941 = vadd.f32 %v859, %v940
  %v942 = vpop.f32.mrf.mxu0
  %943 = vmatprep.mubr.f32.mxu0 0.0
  %944 = vmatmul.mubr.f32.gmra.mxu0 %v866
  %v945 = vpop.f32.mrf.mxu0
  %v946 = vadd.f32 %v859, %v945
  %v947 = vpop.f32.mrf.mxu0
  %948 = vmatprep.mubr.f32.mxu0 0.0
  %949 = vmatmul.mubr.f32.gmra.mxu0 %v869
  %v950 = vpop.f32.mrf.mxu0
  %v951 = vadd.f32 %v859, %v950
  %v952 = vpop.f32.mrf.mxu0
  %953 = vmatprep.mubr.f32.mxu0 0.0
  %954 = vmatmul.mubr.f32.gmra.mxu0 %v872
  %v955 = vpop.f32.mrf.mxu0
  %v956 = vadd.f32 %v859, %v955
  %v957 = vpop.f32.mrf.mxu0
  %958 = vdwg.mxu0
  %v959 = vld [vmem:[%s8] sm:$0xff]
  %v960 = vld [vmem:[%s8 + $0x8] sm:$0xff]
  %v961 = vld [vmem:[%s10] sm:$0x1]
  %v963 = vlaneseq
  %v964 = vshrl.u32 %v963, 7
  %v965 = vsub.s32 0, %v964
  %v966 = vrot.slane %v961, %v965
  %vm968 = vcmask 130048
  %v970 = vsel %vm968, 0.0, 0
  %972 = vmatprep.subr.mxu0 0.0
  %973 = vmatpush1.msra.mxu0 0.0
  %974 = vmatprep.subr.mxu0 0.0
  %975 = vmatpush1.msra.mxu0 0.0
  %976 = vmatprep.subr.mxu0 0.0
  %977 = vmatpush1.msra.mxu0 0.0
  %978 = vmatprep.subr.mxu0 0.0
  %979 = vmatpush1.msra.mxu0 0.0
  %980 = vmatprep.subr.mxu0 0.0
  %981 = vmatpush1.msra.mxu0 0.0
  %982 = vmatprep.subr.mxu0 0.0
  %983 = vmatpush1.msra.mxu0 0.0
  %984 = vmatprep.subr.mxu0 0.0
  %985 = vmatpush1.msra.mxu0 0.0
  %986 = vmatprep.subr.mxu0 0.0
  %987 = vmatpush1.msra.mxu0 0.0
  %988 = vmatprep.subr.mxu0 0.0
  %989 = vmatpush1.msra.mxu0 0.0
  %990 = vmatprep.subr.mxu0 0.0
  %991 = vmatpush1.msra.mxu0 0.0
  %992 = vmatprep.subr.mxu0 0.0
  %993 = vmatpush1.msra.mxu0 0.0
  %994 = vmatprep.subr.mxu0 0.0
  %995 = vmatpush1.msra.mxu0 0.0
  %996 = vmatprep.subr.mxu0 0.0
  %997 = vmatpush1.msra.mxu0 0.0
  %998 = vmatprep.subr.mxu0 0.0
  %999 = vmatpush1.msra.mxu0 0.0
  %1000 = vmatprep.subr.mxu0 0.0
  %1001 = vmatpush1.msra.mxu0 %v960
  %1002 = vmatprep.subr.mxu0 0.0
  %1003 = vmatpush1.msra.mxu0 %v959
  %1004 = vmatprep.subr.mxu0 0.0
  %1005 = vmatpush2.msra.mxu0 0.0
  %1006 = vmatprep.subr.mxu0 0.0
  %1007 = vmatpush2.msra.mxu0 0.0
  %1008 = vmatprep.subr.mxu0 0.0
  %1009 = vmatpush2.msra.mxu0 0.0
  %1010 = vmatprep.subr.mxu0 0.0
  %1011 = vmatpush2.msra.mxu0 0.0
  %1012 = vmatprep.subr.mxu0 0.0
  %1013 = vmatpush2.msra.mxu0 0.0
  %1014 = vmatprep.subr.mxu0 0.0
  %1015 = vmatpush2.msra.mxu0 0.0
  %1016 = vmatprep.subr.mxu0 0.0
  %1017 = vmatpush2.msra.mxu0 0.0
  %1018 = vmatprep.subr.mxu0 0.0
  %1019 = vmatpush2.msra.mxu0 0.0
  %1020 = vmatprep.subr.mxu0 0.0
  %1021 = vmatpush2.msra.mxu0 0.0
  %1022 = vmatprep.subr.mxu0 0.0
  %1023 = vmatpush2.msra.mxu0 0.0
  %1024 = vmatprep.subr.mxu0 0.0
  %1025 = vmatpush2.msra.mxu0 0.0
  %1026 = vmatprep.subr.mxu0 0.0
  %1027 = vmatpush2.msra.mxu0 0.0
  %1028 = vmatprep.subr.mxu0 0.0
  %1029 = vmatpush2.msra.mxu0 0.0
  %1030 = vmatprep.subr.mxu0 0.0
  %1031 = vmatpush2.msra.mxu0 0.0
  %1032 = vmatprep.subr.mxu0 0.0
  %1033 = vmatpush2.msra.mxu0 0.0
  %1034 = vmatprep.subr.mxu0 0.0
  %1035 = vmatpush2.msra.mxu0 0.0
  %1036 = vmatprep.mubr.f32.mxu0 0.0
  %1037 = vmatmul.mubr.f32.gmra.mxu0 %v970
  %v1038 = vpop.f32.mrf.mxu0
  %v1039 = vadd.f32 %v966, %v1038
  %v1040 = vpop.f32.mrf.mxu0
  %1041 = vdwg.mxu0
  %v1042 = vadd.f32 %v941, %v1039
  %v1043 = vxor.u32 %v1042, 2147483648
  %v1044 = vmul.f32 %v1043, 1.442695
  %v1045 = vpow.pop %v1044
  %v1046 = vadd.f32 %v1045, 1.0
  %v1047 = vrcp.pop %v1046
  %v1048 = vmul.f32 1.0, %v1047
  %1050 = vrot.lane.b32.xlu0 %v1039, 96
  %v1051 = vpop.permute.xlu0 %1050
  %v1053 = vmul.f32 %v1048, %v1051
  %1055 = vrot.lane.b32.xlu0 %v1053, 32
  %v1056 = vpop.permute.xlu0 %1055
  %v1058 = vadd.f32 %v941, %v1056
  %v1059 = vtanh.pop %v1058
  %v1060 = vsub.f32 1.0, %v1048
  %1062 = vrot.lane.b32.xlu0 %v1059, 112
  %v1063 = vpop.permute.xlu0 %1062
  %v1065 = vmul.f32 %v1060, %v1063
  %v1066 = vmul.f32 %v1048, 0.0
  %v1067 = vadd.f32 %v1065, %v1066
  %1069 = vrot.lane.b32.xlu0 %v1067, 112
  %v1070 = vpop.permute.xlu0 %1069
  %v1071 = vsel %vm968, %v1070, 0
  %1073 = vmatprep.subr.mxu0 0.0
  %1074 = vmatpush1.msra.mxu0 0.0
  %1075 = vmatprep.subr.mxu0 0.0
  %1076 = vmatpush1.msra.mxu0 0.0
  %1077 = vmatprep.subr.mxu0 0.0
  %1078 = vmatpush1.msra.mxu0 0.0
  %1079 = vmatprep.subr.mxu0 0.0
  %1080 = vmatpush1.msra.mxu0 0.0
  %1081 = vmatprep.subr.mxu0 0.0
  %1082 = vmatpush1.msra.mxu0 0.0
  %1083 = vmatprep.subr.mxu0 0.0
  %1084 = vmatpush1.msra.mxu0 0.0
  %1085 = vmatprep.subr.mxu0 0.0
  %1086 = vmatpush1.msra.mxu0 0.0
  %1087 = vmatprep.subr.mxu0 0.0
  %1088 = vmatpush1.msra.mxu0 0.0
  %1089 = vmatprep.subr.mxu0 0.0
  %1090 = vmatpush1.msra.mxu0 0.0
  %1091 = vmatprep.subr.mxu0 0.0
  %1092 = vmatpush1.msra.mxu0 0.0
  %1093 = vmatprep.subr.mxu0 0.0
  %1094 = vmatpush1.msra.mxu0 0.0
  %1095 = vmatprep.subr.mxu0 0.0
  %1096 = vmatpush1.msra.mxu0 0.0
  %1097 = vmatprep.subr.mxu0 0.0
  %1098 = vmatpush1.msra.mxu0 0.0
  %1099 = vmatprep.subr.mxu0 0.0
  %1100 = vmatpush1.msra.mxu0 0.0
  %1101 = vmatprep.subr.mxu0 0.0
  %1102 = vmatpush1.msra.mxu0 %v960
  %1103 = vmatprep.subr.mxu0 0.0
  %1104 = vmatpush1.msra.mxu0 %v959
  %1105 = vmatprep.subr.mxu0 0.0
  %1106 = vmatpush2.msra.mxu0 0.0
  %1107 = vmatprep.subr.mxu0 0.0
  %1108 = vmatpush2.msra.mxu0 0.0
  %1109 = vmatprep.subr.mxu0 0.0
  %1110 = vmatpush2.msra.mxu0 0.0
  %1111 = vmatprep.subr.mxu0 0.0
  %1112 = vmatpush2.msra.mxu0 0.0
  %1113 = vmatprep.subr.mxu0 0.0
  %1114 = vmatpush2.msra.mxu0 0.0
  %1115 = vmatprep.subr.mxu0 0.0
  %1116 = vmatpush2.msra.mxu0 0.0
  %1117 = vmatprep.subr.mxu0 0.0
  %1118 = vmatpush2.msra.mxu0 0.0
  %1119 = vmatprep.subr.mxu0 0.0
  %1120 = vmatpush2.msra.mxu0 0.0
  %1121 = vmatprep.subr.mxu0 0.0
  %1122 = vmatpush2.msra.mxu0 0.0
  %1123 = vmatprep.subr.mxu0 0.0
  %1124 = vmatpush2.msra.mxu0 0.0
  %1125 = vmatprep.subr.mxu0 0.0
  %1126 = vmatpush2.msra.mxu0 0.0
  %1127 = vmatprep.subr.mxu0 0.0
  %1128 = vmatpush2.msra.mxu0 0.0
  %1129 = vmatprep.subr.mxu0 0.0
  %1130 = vmatpush2.msra.mxu0 0.0
  %1131 = vmatprep.subr.mxu0 0.0
  %1132 = vmatpush2.msra.mxu0 0.0
  %1133 = vmatprep.subr.mxu0 0.0
  %1134 = vmatpush2.msra.mxu0 0.0
  %1135 = vmatprep.subr.mxu0 0.0
  %1136 = vmatpush2.msra.mxu0 0.0
  %1137 = vmatprep.mubr.f32.mxu0 0.0
  %1138 = vmatmul.mubr.f32.gmra.mxu0 %v1071
  %v1139 = vpop.f32.mrf.mxu0
  %v1140 = vadd.f32 %v966, %v1139
  %v1141 = vpop.f32.mrf.mxu0
  %1142 = vdwg.mxu0
  %v1144 = vrot.slane %v1140, 6
  %v1146 = vadd.f32 %v941, %v1144
  %v1147 = vxor.u32 %v1146, 2147483648
  %v1148 = vmul.f32 %v1147, 1.442695
  %v1149 = vpow.pop %v1148
  %v1150 = vadd.f32 %v1149, 1.0
  %v1151 = vrcp.pop %v1150
  %v1152 = vmul.f32 1.0, %v1151
  %1153 = vrot.lane.b32.xlu0 %v1144, 96
  %v1154 = vpop.permute.xlu0 %1153
  %v1156 = vmul.f32 %v1152, %v1154
  %1158 = vrot.lane.b32.xlu0 %v1156, 32
  %v1159 = vpop.permute.xlu0 %1158
  %v1161 = vadd.f32 %v941, %v1159
  %v1162 = vtanh.pop %v1161
  %v1163 = vsub.f32 1.0, %v1152
  %1165 = vrot.lane.b32.xlu0 %v1162, 112
  %v1166 = vpop.permute.xlu0 %1165
  %v1168 = vmul.f32 %v1163, %v1166
  %v1169 = vrot.slane %v1067, 6
  %v1171 = vmul.f32 %v1152, %v1169
  %v1172 = vadd.f32 %v1168, %v1171
  %v1174 = vrot.slane %v1172, 2
  %1175 = vrot.lane.b32.xlu0 %v1174, 112
  %v1176 = vpop.permute.xlu0 %1175
  %v1177 = vsel %vm968, %v1176, 0
  %1179 = vmatprep.subr.mxu0 0.0
  %1180 = vmatpush1.msra.mxu0 0.0
  %1181 = vmatprep.subr.mxu0 0.0
  %1182 = vmatpush1.msra.mxu0 0.0
  %1183 = vmatprep.subr.mxu0 0.0
  %1184 = vmatpush1.msra.mxu0 0.0
  %1185 = vmatprep.subr.mxu0 0.0
  %1186 = vmatpush1.msra.mxu0 0.0
  %1187 = vmatprep.subr.mxu0 0.0
  %1188 = vmatpush1.msra.mxu0 0.0
  %1189 = vmatprep.subr.mxu0 0.0
  %1190 = vmatpush1.msra.mxu0 0.0
  %1191 = vmatprep.subr.mxu0 0.0
  %1192 = vmatpush1.msra.mxu0 0.0
  %1193 = vmatprep.subr.mxu0 0.0
  %1194 = vmatpush1.msra.mxu0 0.0
  %1195 = vmatprep.subr.mxu0 0.0
  %1196 = vmatpush1.msra.mxu0 0.0
  %1197 = vmatprep.subr.mxu0 0.0
  %1198 = vmatpush1.msra.mxu0 0.0
  %1199 = vmatprep.subr.mxu0 0.0
  %1200 = vmatpush1.msra.mxu0 0.0
  %1201 = vmatprep.subr.mxu0 0.0
  %1202 = vmatpush1.msra.mxu0 0.0
  %1203 = vmatprep.subr.mxu0 0.0
  %1204 = vmatpush1.msra.mxu0 0.0
  %1205 = vmatprep.subr.mxu0 0.0
  %1206 = vmatpush1.msra.mxu0 0.0
  %1207 = vmatprep.subr.mxu0 0.0
  %1208 = vmatpush1.msra.mxu0 %v960
  %1209 = vmatprep.subr.mxu0 0.0
  %1210 = vmatpush1.msra.mxu0 %v959
  %1211 = vmatprep.subr.mxu0 0.0
  %1212 = vmatpush2.msra.mxu0 0.0
  %1213 = vmatprep.subr.mxu0 0.0
  %1214 = vmatpush2.msra.mxu0 0.0
  %1215 = vmatprep.subr.mxu0 0.0
  %1216 = vmatpush2.msra.mxu0 0.0
  %1217 = vmatprep.subr.mxu0 0.0
  %1218 = vmatpush2.msra.mxu0 0.0
  %1219 = vmatprep.subr.mxu0 0.0
  %1220 = vmatpush2.msra.mxu0 0.0
  %1221 = vmatprep.subr.mxu0 0.0
  %1222 = vmatpush2.msra.mxu0 0.0
  %1223 = vmatprep.subr.mxu0 0.0
  %1224 = vmatpush2.msra.mxu0 0.0
  %1225 = vmatprep.subr.mxu0 0.0
  %1226 = vmatpush2.msra.mxu0 0.0
  %1227 = vmatprep.subr.mxu0 0.0
  %1228 = vmatpush2.msra.mxu0 0.0
  %1229 = vmatprep.subr.mxu0 0.0
  %1230 = vmatpush2.msra.mxu0 0.0
  %1231 = vmatprep.subr.mxu0 0.0
  %1232 = vmatpush2.msra.mxu0 0.0
  %1233 = vmatprep.subr.mxu0 0.0
  %1234 = vmatpush2.msra.mxu0 0.0
  %1235 = vmatprep.subr.mxu0 0.0
  %1236 = vmatpush2.msra.mxu0 0.0
  %1237 = vmatprep.subr.mxu0 0.0
  %1238 = vmatpush2.msra.mxu0 0.0
  %1239 = vmatprep.subr.mxu0 0.0
  %1240 = vmatpush2.msra.mxu0 0.0
  %1241 = vmatprep.subr.mxu0 0.0
  %1242 = vmatpush2.msra.mxu0 0.0
  %1243 = vmatprep.mubr.f32.mxu0 0.0
  %1244 = vmatmul.mubr.f32.gmra.mxu0 %v1177
  %v1245 = vpop.f32.mrf.mxu0
  %v1246 = vadd.f32 %v966, %v1245
  %v1247 = vpop.f32.mrf.mxu0
  %1248 = vdwg.mxu0
  %v1250 = vrot.slane %v1246, 4
  %v1252 = vadd.f32 %v941, %v1250
  %v1253 = vxor.u32 %v1252, 2147483648
  %v1254 = vmul.f32 %v1253, 1.442695
  %v1255 = vpow.pop %v1254
  %v1256 = vadd.f32 %v1255, 1.0
  %v1257 = vrcp.pop %v1256
  %v1258 = vmul.f32 1.0, %v1257
  %1259 = vrot.lane.b32.xlu0 %v1250, 96
  %v1260 = vpop.permute.xlu0 %1259
  %v1262 = vmul.f32 %v1258, %v1260
  %1264 = vrot.lane.b32.xlu0 %v1262, 32
  %v1265 = vpop.permute.xlu0 %1264
  %v1267 = vadd.f32 %v941, %v1265
  %v1268 = vtanh.pop %v1267
  %v1269 = vsub.f32 1.0, %v1258
  %1271 = vrot.lane.b32.xlu0 %v1268, 112
  %v1272 = vpop.permute.xlu0 %1271
  %v1274 = vmul.f32 %v1269, %v1272
  %v1275 = vrot.slane %v1172, 6
  %v1277 = vmul.f32 %v1258, %v1275
  %v1278 = vadd.f32 %v1274, %v1277
  %v1280 = vrot.slane %v1278, 4
  %1281 = vrot.lane.b32.xlu0 %v1280, 112
  %v1282 = vpop.permute.xlu0 %1281
  %v1283 = vsel %vm968, %v1282, 0
  %1285 = vmatprep.subr.mxu0 0.0
  %1286 = vmatpush1.msra.mxu0 0.0
  %1287 = vmatprep.subr.mxu0 0.0
  %1288 = vmatpush1.msra.mxu0 0.0
  %1289 = vmatprep.subr.mxu0 0.0
  %1290 = vmatpush1.msra.mxu0 0.0
  %1291 = vmatprep.subr.mxu0 0.0
  %1292 = vmatpush1.msra.mxu0 0.0
  %1293 = vmatprep.subr.mxu0 0.0
  %1294 = vmatpush1.msra.mxu0 0.0
  %1295 = vmatprep.subr.mxu0 0.0
  %1296 = vmatpush1.msra.mxu0 0.0
  %1297 = vmatprep.subr.mxu0 0.0
  %1298 = vmatpush1.msra.mxu0 0.0
  %1299 = vmatprep.subr.mxu0 0.0
  %1300 = vmatpush1.msra.mxu0 0.0
  %1301 = vmatprep.subr.mxu0 0.0
  %1302 = vmatpush1.msra.mxu0 0.0
  %1303 = vmatprep.subr.mxu0 0.0
  %1304 = vmatpush1.msra.mxu0 0.0
  %1305 = vmatprep.subr.mxu0 0.0
  %1306 = vmatpush1.msra.mxu0 0.0
  %1307 = vmatprep.subr.mxu0 0.0
  %1308 = vmatpush1.msra.mxu0 0.0
  %1309 = vmatprep.subr.mxu0 0.0
  %1310 = vmatpush1.msra.mxu0 0.0
  %1311 = vmatprep.subr.mxu0 0.0
  %1312 = vmatpush1.msra.mxu0 0.0
  %1313 = vmatprep.subr.mxu0 0.0
  %1314 = vmatpush1.msra.mxu0 %v960
  %1315 = vmatprep.subr.mxu0 0.0
  %1316 = vmatpush1.msra.mxu0 %v959
  %1317 = vmatprep.subr.mxu0 0.0
  %1318 = vmatpush2.msra.mxu0 0.0
  %1319 = vmatprep.subr.mxu0 0.0
  %1320 = vmatpush2.msra.mxu0 0.0
  %1321 = vmatprep.subr.mxu0 0.0
  %1322 = vmatpush2.msra.mxu0 0.0
  %1323 = vmatprep.subr.mxu0 0.0
  %1324 = vmatpush2.msra.mxu0 0.0
  %1325 = vmatprep.subr.mxu0 0.0
  %1326 = vmatpush2.msra.mxu0 0.0
  %1327 = vmatprep.subr.mxu0 0.0
  %1328 = vmatpush2.msra.mxu0 0.0
  %1329 = vmatprep.subr.mxu0 0.0
  %1330 = vmatpush2.msra.mxu0 0.0
  %1331 = vmatprep.subr.mxu0 0.0
  %1332 = vmatpush2.msra.mxu0 0.0
  %1333 = vmatprep.subr.mxu0 0.0
  %1334 = vmatpush2.msra.mxu0 0.0
  %1335 = vmatprep.subr.mxu0 0.0
  %1336 = vmatpush2.msra.mxu0 0.0
  %1337 = vmatprep.subr.mxu0 0.0
  %1338 = vmatpush2.msra.mxu0 0.0
  %1339 = vmatprep.subr.mxu0 0.0
  %1340 = vmatpush2.msra.mxu0 0.0
  %1341 = vmatprep.subr.mxu0 0.0
  %1342 = vmatpush2.msra.mxu0 0.0
  %1343 = vmatprep.subr.mxu0 0.0
  %1344 = vmatpush2.msra.mxu0 0.0
  %1345 = vmatprep.subr.mxu0 0.0
  %1346 = vmatpush2.msra.mxu0 0.0
  %1347 = vmatprep.subr.mxu0 0.0
  %1348 = vmatpush2.msra.mxu0 0.0
  %1349 = vmatprep.mubr.f32.mxu0 0.0
  %1350 = vmatmul.mubr.f32.gmra.mxu0 %v1283
  %v1351 = vpop.f32.mrf.mxu0
  %v1352 = vadd.f32 %v966, %v1351
  %v1353 = vpop.f32.mrf.mxu0
  %1354 = vdwg.mxu0
  %v1356 = vrot.slane %v1352, 2
  %v1358 = vadd.f32 %v941, %v1356
  %v1359 = vxor.u32 %v1358, 2147483648
  %v1360 = vmul.f32 %v1359, 1.442695
  %v1361 = vpow.pop %v1360
  %v1362 = vadd.f32 %v1361, 1.0
  %v1363 = vrcp.pop %v1362
  %v1364 = vmul.f32 1.0, %v1363
  %1365 = vrot.lane.b32.xlu0 %v1356, 96
  %v1366 = vpop.permute.xlu0 %1365
  %v1368 = vmul.f32 %v1364, %v1366
  %1370 = vrot.lane.b32.xlu0 %v1368, 32
  %v1371 = vpop.permute.xlu0 %1370
  %v1373 = vadd.f32 %v941, %v1371
  %v1374 = vtanh.pop %v1373
  %v1375 = vsub.f32 1.0, %v1364
  %1377 = vrot.lane.b32.xlu0 %v1374, 112
  %v1378 = vpop.permute.xlu0 %1377
  %v1380 = vmul.f32 %v1375, %v1378
  %v1381 = vrot.slane %v1278, 6
  %v1383 = vmul.f32 %v1364, %v1381
  %v1384 = vadd.f32 %v1380, %v1383
  %v1386 = vrot.slane %v1384, 6
  %1387 = vrot.lane.b32.xlu0 %v1386, 112
  %v1388 = vpop.permute.xlu0 %1387
  %v1389 = vsel %vm968, %v1388, 0
  %1391 = vmatprep.subr.mxu0 0.0
  %1392 = vmatpush1.msra.mxu0 0.0
  %1393 = vmatprep.subr.mxu0 0.0
  %1394 = vmatpush1.msra.mxu0 0.0
  %1395 = vmatprep.subr.mxu0 0.0
  %1396 = vmatpush1.msra.mxu0 0.0
  %1397 = vmatprep.subr.mxu0 0.0
  %1398 = vmatpush1.msra.mxu0 0.0
  %1399 = vmatprep.subr.mxu0 0.0
  %1400 = vmatpush1.msra.mxu0 0.0
  %1401 = vmatprep.subr.mxu0 0.0
  %1402 = vmatpush1.msra.mxu0 0.0
  %1403 = vmatprep.subr.mxu0 0.0
  %1404 = vmatpush1.msra.mxu0 0.0
  %1405 = vmatprep.subr.mxu0 0.0
  %1406 = vmatpush1.msra.mxu0 0.0
  %1407 = vmatprep.subr.mxu0 0.0
  %1408 = vmatpush1.msra.mxu0 0.0
  %1409 = vmatprep.subr.mxu0 0.0
  %1410 = vmatpush1.msra.mxu0 0.0
  %1411 = vmatprep.subr.mxu0 0.0
  %1412 = vmatpush1.msra.mxu0 0.0
  %1413 = vmatprep.subr.mxu0 0.0
  %1414 = vmatpush1.msra.mxu0 0.0
  %1415 = vmatprep.subr.mxu0 0.0
  %1416 = vmatpush1.msra.mxu0 0.0
  %1417 = vmatprep.subr.mxu0 0.0
  %1418 = vmatpush1.msra.mxu0 0.0
  %1419 = vmatprep.subr.mxu0 0.0
  %1420 = vmatpush1.msra.mxu0 %v960
  %1421 = vmatprep.subr.mxu0 0.0
  %1422 = vmatpush1.msra.mxu0 %v959
  %1423 = vmatprep.subr.mxu0 0.0
  %1424 = vmatpush2.msra.mxu0 0.0
  %1425 = vmatprep.subr.mxu0 0.0
  %1426 = vmatpush2.msra.mxu0 0.0
  %1427 = vmatprep.subr.mxu0 0.0
  %1428 = vmatpush2.msra.mxu0 0.0
  %1429 = vmatprep.subr.mxu0 0.0
  %1430 = vmatpush2.msra.mxu0 0.0
  %1431 = vmatprep.subr.mxu0 0.0
  %1432 = vmatpush2.msra.mxu0 0.0
  %1433 = vmatprep.subr.mxu0 0.0
  %1434 = vmatpush2.msra.mxu0 0.0
  %1435 = vmatprep.subr.mxu0 0.0
  %1436 = vmatpush2.msra.mxu0 0.0
  %1437 = vmatprep.subr.mxu0 0.0
  %1438 = vmatpush2.msra.mxu0 0.0
  %1439 = vmatprep.subr.mxu0 0.0
  %1440 = vmatpush2.msra.mxu0 0.0
  %1441 = vmatprep.subr.mxu0 0.0
  %1442 = vmatpush2.msra.mxu0 0.0
  %1443 = vmatprep.subr.mxu0 0.0
  %1444 = vmatpush2.msra.mxu0 0.0
  %1445 = vmatprep.subr.mxu0 0.0
  %1446 = vmatpush2.msra.mxu0 0.0
  %1447 = vmatprep.subr.mxu0 0.0
  %1448 = vmatpush2.msra.mxu0 0.0
  %1449 = vmatprep.subr.mxu0 0.0
  %1450 = vmatpush2.msra.mxu0 0.0
  %1451 = vmatprep.subr.mxu0 0.0
  %1452 = vmatpush2.msra.mxu0 0.0
  %1453 = vmatprep.subr.mxu0 0.0
  %1454 = vmatpush2.msra.mxu0 0.0
  %1455 = vmatprep.mubr.f32.mxu0 0.0
  %1456 = vmatmul.mubr.f32.gmra.mxu0 %v1389
  %v1457 = vpop.f32.mrf.mxu0
  %v1458 = vadd.f32 %v966, %v1457
  %v1459 = vpop.f32.mrf.mxu0
  %1460 = vdwg.mxu0
  %v1461 = vadd.f32 %v946, %v1458
  %v1462 = vxor.u32 %v1461, 2147483648
  %v1463 = vmul.f32 %v1462, 1.442695
  %v1464 = vpow.pop %v1463
  %v1465 = vadd.f32 %v1464, 1.0
  %v1466 = vrcp.pop %v1465
  %v1467 = vmul.f32 1.0, %v1466
  %1469 = vrot.lane.b32.xlu0 %v1458, 96
  %v1470 = vpop.permute.xlu0 %1469
  %v1472 = vmul.f32 %v1467, %v1470
  %1474 = vrot.lane.b32.xlu0 %v1472, 32
  %v1475 = vpop.permute.xlu0 %1474
  %v1477 = vadd.f32 %v946, %v1475
  %v1478 = vtanh.pop %v1477
  %v1479 = vsub.f32 1.0, %v1467
  %1481 = vrot.lane.b32.xlu0 %v1478, 112
  %v1482 = vpop.permute.xlu0 %1481
  %v1484 = vmul.f32 %v1479, %v1482
  %v1486 = vmul.f32 %v1467, %v1386
  %v1487 = vadd.f32 %v1484, %v1486
  %1489 = vrot.lane.b32.xlu0 %v1487, 112
  %v1490 = vpop.permute.xlu0 %1489
  %v1491 = vsel %vm968, %v1490, 0
  %1493 = vmatprep.subr.mxu0 0.0
  %1494 = vmatpush1.msra.mxu0 0.0
  %1495 = vmatprep.subr.mxu0 0.0
  %1496 = vmatpush1.msra.mxu0 0.0
  %1497 = vmatprep.subr.mxu0 0.0
  %1498 = vmatpush1.msra.mxu0 0.0
  %1499 = vmatprep.subr.mxu0 0.0
  %1500 = vmatpush1.msra.mxu0 0.0
  %1501 = vmatprep.subr.mxu0 0.0
  %1502 = vmatpush1.msra.mxu0 0.0
  %1503 = vmatprep.subr.mxu0 0.0
  %1504 = vmatpush1.msra.mxu0 0.0
  %1505 = vmatprep.subr.mxu0 0.0
  %1506 = vmatpush1.msra.mxu0 0.0
  %1507 = vmatprep.subr.mxu0 0.0
  %1508 = vmatpush1.msra.mxu0 0.0
  %1509 = vmatprep.subr.mxu0 0.0
  %1510 = vmatpush1.msra.mxu0 0.0
  %1511 = vmatprep.subr.mxu0 0.0
  %1512 = vmatpush1.msra.mxu0 0.0
  %1513 = vmatprep.subr.mxu0 0.0
  %1514 = vmatpush1.msra.mxu0 0.0
  %1515 = vmatprep.subr.mxu0 0.0
  %1516 = vmatpush1.msra.mxu0 0.0
  %1517 = vmatprep.subr.mxu0 0.0
  %1518 = vmatpush1.msra.mxu0 0.0
  %1519 = vmatprep.subr.mxu0 0.0
  %1520 = vmatpush1.msra.mxu0 0.0
  %1521 = vmatprep.subr.mxu0 0.0
  %1522 = vmatpush1.msra.mxu0 %v960
  %1523 = vmatprep.subr.mxu0 0.0
  %1524 = vmatpush1.msra.mxu0 %v959
  %1525 = vmatprep.subr.mxu0 0.0
  %1526 = vmatpush2.msra.mxu0 0.0
  %1527 = vmatprep.subr.mxu0 0.0
  %1528 = vmatpush2.msra.mxu0 0.0
  %1529 = vmatprep.subr.mxu0 0.0
  %1530 = vmatpush2.msra.mxu0 0.0
  %1531 = vmatprep.subr.mxu0 0.0
  %1532 = vmatpush2.msra.mxu0 0.0
  %1533 = vmatprep.subr.mxu0 0.0
  %1534 = vmatpush2.msra.mxu0 0.0
  %1535 = vmatprep.subr.mxu0 0.0
  %1536 = vmatpush2.msra.mxu0 0.0
  %1537 = vmatprep.subr.mxu0 0.0
  %1538 = vmatpush2.msra.mxu0 0.0
  %1539 = vmatprep.subr.mxu0 0.0
  %1540 = vmatpush2.msra.mxu0 0.0
  %1541 = vmatprep.subr.mxu0 0.0
  %1542 = vmatpush2.msra.mxu0 0.0
  %1543 = vmatprep.subr.mxu0 0.0
  %1544 = vmatpush2.msra.mxu0 0.0
  %1545 = vmatprep.subr.mxu0 0.0
  %1546 = vmatpush2.msra.mxu0 0.0
  %1547 = vmatprep.subr.mxu0 0.0
  %1548 = vmatpush2.msra.mxu0 0.0
  %1549 = vmatprep.subr.mxu0 0.0
  %1550 = vmatpush2.msra.mxu0 0.0
  %1551 = vmatprep.subr.mxu0 0.0
  %1552 = vmatpush2.msra.mxu0 0.0
  %1553 = vmatprep.subr.mxu0 0.0
  %1554 = vmatpush2.msra.mxu0 0.0
  %1555 = vmatprep.subr.mxu0 0.0
  %1556 = vmatpush2.msra.mxu0 0.0
  %1557 = vmatprep.mubr.f32.mxu0 0.0
  %1558 = vmatmul.mubr.f32.gmra.mxu0 %v1491
  %v1559 = vpop.f32.mrf.mxu0
  %v1560 = vadd.f32 %v966, %v1559
  %v1561 = vpop.f32.mrf.mxu0
  %1562 = vdwg.mxu0
  %v1564 = vrot.slane %v1560, 6
  %v1566 = vadd.f32 %v946, %v1564
  %v1567 = vxor.u32 %v1566, 2147483648
  %v1568 = vmul.f32 %v1567, 1.442695
  %v1569 = vpow.pop %v1568
  %v1570 = vadd.f32 %v1569, 1.0
  %v1571 = vrcp.pop %v1570
  %v1572 = vmul.f32 1.0, %v1571
  %1573 = vrot.lane.b32.xlu0 %v1564, 96
  %v1574 = vpop.permute.xlu0 %1573
  %v1576 = vmul.f32 %v1572, %v1574
  %1578 = vrot.lane.b32.xlu0 %v1576, 32
  %v1579 = vpop.permute.xlu0 %1578
  %v1581 = vadd.f32 %v946, %v1579
  %v1582 = vtanh.pop %v1581
  %v1583 = vsub.f32 1.0, %v1572
  %1585 = vrot.lane.b32.xlu0 %v1582, 112
  %v1586 = vpop.permute.xlu0 %1585
  %v1588 = vmul.f32 %v1583, %v1586
  %v1589 = vrot.slane %v1487, 6
  %v1591 = vmul.f32 %v1572, %v1589
  %v1592 = vadd.f32 %v1588, %v1591
  %v1594 = vrot.slane %v1592, 2
  %1595 = vrot.lane.b32.xlu0 %v1594, 112
  %v1596 = vpop.permute.xlu0 %1595
  %v1597 = vsel %vm968, %v1596, 0
  %1599 = vmatprep.subr.mxu0 0.0
  %1600 = vmatpush1.msra.mxu0 0.0
  %1601 = vmatprep.subr.mxu0 0.0
  %1602 = vmatpush1.msra.mxu0 0.0
  %1603 = vmatprep.subr.mxu0 0.0
  %1604 = vmatpush1.msra.mxu0 0.0
  %1605 = vmatprep.subr.mxu0 0.0
  %1606 = vmatpush1.msra.mxu0 0.0
  %1607 = vmatprep.subr.mxu0 0.0
  %1608 = vmatpush1.msra.mxu0 0.0
  %1609 = vmatprep.subr.mxu0 0.0
  %1610 = vmatpush1.msra.mxu0 0.0
  %1611 = vmatprep.subr.mxu0 0.0
  %1612 = vmatpush1.msra.mxu0 0.0
  %1613 = vmatprep.subr.mxu0 0.0
  %1614 = vmatpush1.msra.mxu0 0.0
  %1615 = vmatprep.subr.mxu0 0.0
  %1616 = vmatpush1.msra.mxu0 0.0
  %1617 = vmatprep.subr.mxu0 0.0
  %1618 = vmatpush1.msra.mxu0 0.0
  %1619 = vmatprep.subr.mxu0 0.0
  %1620 = vmatpush1.msra.mxu0 0.0
  %1621 = vmatprep.subr.mxu0 0.0
  %1622 = vmatpush1.msra.mxu0 0.0
  %1623 = vmatprep.subr.mxu0 0.0
  %1624 = vmatpush1.msra.mxu0 0.0
  %1625 = vmatprep.subr.mxu0 0.0
  %1626 = vmatpush1.msra.mxu0 0.0
  %1627 = vmatprep.subr.mxu0 0.0
  %1628 = vmatpush1.msra.mxu0 %v960
  %1629 = vmatprep.subr.mxu0 0.0
  %1630 = vmatpush1.msra.mxu0 %v959
  %1631 = vmatprep.subr.mxu0 0.0
  %1632 = vmatpush2.msra.mxu0 0.0
  %1633 = vmatprep.subr.mxu0 0.0
  %1634 = vmatpush2.msra.mxu0 0.0
  %1635 = vmatprep.subr.mxu0 0.0
  %1636 = vmatpush2.msra.mxu0 0.0
  %1637 = vmatprep.subr.mxu0 0.0
  %1638 = vmatpush2.msra.mxu0 0.0
  %1639 = vmatprep.subr.mxu0 0.0
  %1640 = vmatpush2.msra.mxu0 0.0
  %1641 = vmatprep.subr.mxu0 0.0
  %1642 = vmatpush2.msra.mxu0 0.0
  %1643 = vmatprep.subr.mxu0 0.0
  %1644 = vmatpush2.msra.mxu0 0.0
  %1645 = vmatprep.subr.mxu0 0.0
  %1646 = vmatpush2.msra.mxu0 0.0
  %1647 = vmatprep.subr.mxu0 0.0
  %1648 = vmatpush2.msra.mxu0 0.0
  %1649 = vmatprep.subr.mxu0 0.0
  %1650 = vmatpush2.msra.mxu0 0.0
  %1651 = vmatprep.subr.mxu0 0.0
  %1652 = vmatpush2.msra.mxu0 0.0
  %1653 = vmatprep.subr.mxu0 0.0
  %1654 = vmatpush2.msra.mxu0 0.0
  %1655 = vmatprep.subr.mxu0 0.0
  %1656 = vmatpush2.msra.mxu0 0.0
  %1657 = vmatprep.subr.mxu0 0.0
  %1658 = vmatpush2.msra.mxu0 0.0
  %1659 = vmatprep.subr.mxu0 0.0
  %1660 = vmatpush2.msra.mxu0 0.0
  %1661 = vmatprep.subr.mxu0 0.0
  %1662 = vmatpush2.msra.mxu0 0.0
  %1663 = vmatprep.mubr.f32.mxu0 0.0
  %1664 = vmatmul.mubr.f32.gmra.mxu0 %v1597
  %v1665 = vpop.f32.mrf.mxu0
  %v1666 = vadd.f32 %v966, %v1665
  %v1667 = vpop.f32.mrf.mxu0
  %1668 = vdwg.mxu0
  %v1670 = vrot.slane %v1666, 4
  %v1672 = vadd.f32 %v946, %v1670
  %v1673 = vxor.u32 %v1672, 2147483648
  %v1674 = vmul.f32 %v1673, 1.442695
  %v1675 = vpow.pop %v1674
  %v1676 = vadd.f32 %v1675, 1.0
  %v1677 = vrcp.pop %v1676
  %v1678 = vmul.f32 1.0, %v1677
  %1679 = vrot.lane.b32.xlu0 %v1670, 96
  %v1680 = vpop.permute.xlu0 %1679
  %v1682 = vmul.f32 %v1678, %v1680
  %1684 = vrot.lane.b32.xlu0 %v1682, 32
  %v1685 = vpop.permute.xlu0 %1684
  %v1687 = vadd.f32 %v946, %v1685
  %v1688 = vtanh.pop %v1687
  %v1689 = vsub.f32 1.0, %v1678
  %1691 = vrot.lane.b32.xlu0 %v1688, 112
  %v1692 = vpop.permute.xlu0 %1691
  %v1694 = vmul.f32 %v1689, %v1692
  %v1695 = vrot.slane %v1592, 6
  %v1697 = vmul.f32 %v1678, %v1695
  %v1698 = vadd.f32 %v1694, %v1697
  %v1700 = vrot.slane %v1698, 4
  %1701 = vrot.lane.b32.xlu0 %v1700, 112
  %v1702 = vpop.permute.xlu0 %1701
  %v1703 = vsel %vm968, %v1702, 0
  %1705 = vmatprep.subr.mxu0 0.0
  %1706 = vmatpush1.msra.mxu0 0.0
  %1707 = vmatprep.subr.mxu0 0.0
  %1708 = vmatpush1.msra.mxu0 0.0
  %1709 = vmatprep.subr.mxu0 0.0
  %1710 = vmatpush1.msra.mxu0 0.0
  %1711 = vmatprep.subr.mxu0 0.0
  %1712 = vmatpush1.msra.mxu0 0.0
  %1713 = vmatprep.subr.mxu0 0.0
  %1714 = vmatpush1.msra.mxu0 0.0
  %1715 = vmatprep.subr.mxu0 0.0
  %1716 = vmatpush1.msra.mxu0 0.0
  %1717 = vmatprep.subr.mxu0 0.0
  %1718 = vmatpush1.msra.mxu0 0.0
  %1719 = vmatprep.subr.mxu0 0.0
  %1720 = vmatpush1.msra.mxu0 0.0
  %1721 = vmatprep.subr.mxu0 0.0
  %1722 = vmatpush1.msra.mxu0 0.0
  %1723 = vmatprep.subr.mxu0 0.0
  %1724 = vmatpush1.msra.mxu0 0.0
  %1725 = vmatprep.subr.mxu0 0.0
  %1726 = vmatpush1.msra.mxu0 0.0
  %1727 = vmatprep.subr.mxu0 0.0
  %1728 = vmatpush1.msra.mxu0 0.0
  %1729 = vmatprep.subr.mxu0 0.0
  %1730 = vmatpush1.msra.mxu0 0.0
  %1731 = vmatprep.subr.mxu0 0.0
  %1732 = vmatpush1.msra.mxu0 0.0
  %1733 = vmatprep.subr.mxu0 0.0
  %1734 = vmatpush1.msra.mxu0 %v960
  %1735 = vmatprep.subr.mxu0 0.0
  %1736 = vmatpush1.msra.mxu0 %v959
  %1737 = vmatprep.subr.mxu0 0.0
  %1738 = vmatpush2.msra.mxu0 0.0
  %1739 = vmatprep.subr.mxu0 0.0
  %1740 = vmatpush2.msra.mxu0 0.0
  %1741 = vmatprep.subr.mxu0 0.0
  %1742 = vmatpush2.msra.mxu0 0.0
  %1743 = vmatprep.subr.mxu0 0.0
  %1744 = vmatpush2.msra.mxu0 0.0
  %1745 = vmatprep.subr.mxu0 0.0
  %1746 = vmatpush2.msra.mxu0 0.0
  %1747 = vmatprep.subr.mxu0 0.0
  %1748 = vmatpush2.msra.mxu0 0.0
  %1749 = vmatprep.subr.mxu0 0.0
  %1750 = vmatpush2.msra.mxu0 0.0
  %1751 = vmatprep.subr.mxu0 0.0
  %1752 = vmatpush2.msra.mxu0 0.0
  %1753 = vmatprep.subr.mxu0 0.0
  %1754 = vmatpush2.msra.mxu0 0.0
  %1755 = vmatprep.subr.mxu0 0.0
  %1756 = vmatpush2.msra.mxu0 0.0
  %1757 = vmatprep.subr.mxu0 0.0
  %1758 = vmatpush2.msra.mxu0 0.0
  %1759 = vmatprep.subr.mxu0 0.0
  %1760 = vmatpush2.msra.mxu0 0.0
  %1761 = vmatprep.subr.mxu0 0.0
  %1762 = vmatpush2.msra.mxu0 0.0
  %1763 = vmatprep.subr.mxu0 0.0
  %1764 = vmatpush2.msra.mxu0 0.0
  %1765 = vmatprep.subr.mxu0 0.0
  %1766 = vmatpush2.msra.mxu0 0.0
  %1767 = vmatprep.subr.mxu0 0.0
  %1768 = vmatpush2.msra.mxu0 0.0
  %1769 = vmatprep.mubr.f32.mxu0 0.0
  %1770 = vmatmul.mubr.f32.gmra.mxu0 %v1703
  %v1771 = vpop.f32.mrf.mxu0
  %v1772 = vadd.f32 %v966, %v1771
  %v1773 = vpop.f32.mrf.mxu0
  %1774 = vdwg.mxu0
  %v1776 = vrot.slane %v1772, 2
  %v1778 = vadd.f32 %v946, %v1776
  %v1779 = vxor.u32 %v1778, 2147483648
  %v1780 = vmul.f32 %v1779, 1.442695
  %v1781 = vpow.pop %v1780
  %v1782 = vadd.f32 %v1781, 1.0
  %v1783 = vrcp.pop %v1782
  %v1784 = vmul.f32 1.0, %v1783
  %1785 = vrot.lane.b32.xlu0 %v1776, 96
  %v1786 = vpop.permute.xlu0 %1785
  %v1788 = vmul.f32 %v1784, %v1786
  %1790 = vrot.lane.b32.xlu0 %v1788, 32
  %v1791 = vpop.permute.xlu0 %1790
  %v1793 = vadd.f32 %v946, %v1791
  %v1794 = vtanh.pop %v1793
  %v1795 = vsub.f32 1.0, %v1784
  %1797 = vrot.lane.b32.xlu0 %v1794, 112
  %v1798 = vpop.permute.xlu0 %1797
  %v1800 = vmul.f32 %v1795, %v1798
  %v1801 = vrot.slane %v1698, 6
  %v1803 = vmul.f32 %v1784, %v1801
  %v1804 = vadd.f32 %v1800, %v1803
  %v1806 = vrot.slane %v1804, 6
  %1807 = vrot.lane.b32.xlu0 %v1806, 112
  %v1808 = vpop.permute.xlu0 %1807
  %v1809 = vsel %vm968, %v1808, 0
  %1811 = vmatprep.subr.mxu0 0.0
  %1812 = vmatpush1.msra.mxu0 0.0
  %1813 = vmatprep.subr.mxu0 0.0
  %1814 = vmatpush1.msra.mxu0 0.0
  %1815 = vmatprep.subr.mxu0 0.0
  %1816 = vmatpush1.msra.mxu0 0.0
  %1817 = vmatprep.subr.mxu0 0.0
  %1818 = vmatpush1.msra.mxu0 0.0
  %1819 = vmatprep.subr.mxu0 0.0
  %1820 = vmatpush1.msra.mxu0 0.0
  %1821 = vmatprep.subr.mxu0 0.0
  %1822 = vmatpush1.msra.mxu0 0.0
  %1823 = vmatprep.subr.mxu0 0.0
  %1824 = vmatpush1.msra.mxu0 0.0
  %1825 = vmatprep.subr.mxu0 0.0
  %1826 = vmatpush1.msra.mxu0 0.0
  %1827 = vmatprep.subr.mxu0 0.0
  %1828 = vmatpush1.msra.mxu0 0.0
  %1829 = vmatprep.subr.mxu0 0.0
  %1830 = vmatpush1.msra.mxu0 0.0
  %1831 = vmatprep.subr.mxu0 0.0
  %1832 = vmatpush1.msra.mxu0 0.0
  %1833 = vmatprep.subr.mxu0 0.0
  %1834 = vmatpush1.msra.mxu0 0.0
  %1835 = vmatprep.subr.mxu0 0.0
  %1836 = vmatpush1.msra.mxu0 0.0
  %1837 = vmatprep.subr.mxu0 0.0
  %1838 = vmatpush1.msra.mxu0 0.0
  %1839 = vmatprep.subr.mxu0 0.0
  %1840 = vmatpush1.msra.mxu0 %v960
  %1841 = vmatprep.subr.mxu0 0.0
  %1842 = vmatpush1.msra.mxu0 %v959
  %1843 = vmatprep.subr.mxu0 0.0
  %1844 = vmatpush2.msra.mxu0 0.0
  %1845 = vmatprep.subr.mxu0 0.0
  %1846 = vmatpush2.msra.mxu0 0.0
  %1847 = vmatprep.subr.mxu0 0.0
  %1848 = vmatpush2.msra.mxu0 0.0
  %1849 = vmatprep.subr.mxu0 0.0
  %1850 = vmatpush2.msra.mxu0 0.0
  %1851 = vmatprep.subr.mxu0 0.0
  %1852 = vmatpush2.msra.mxu0 0.0
  %1853 = vmatprep.subr.mxu0 0.0
  %1854 = vmatpush2.msra.mxu0 0.0
  %1855 = vmatprep.subr.mxu0 0.0
  %1856 = vmatpush2.msra.mxu0 0.0
  %1857 = vmatprep.subr.mxu0 0.0
  %1858 = vmatpush2.msra.mxu0 0.0
  %1859 = vmatprep.subr.mxu0 0.0
  %1860 = vmatpush2.msra.mxu0 0.0
  %1861 = vmatprep.subr.mxu0 0.0
  %1862 = vmatpush2.msra.mxu0 0.0
  %1863 = vmatprep.subr.mxu0 0.0
  %1864 = vmatpush2.msra.mxu0 0.0
  %1865 = vmatprep.subr.mxu0 0.0
  %1866 = vmatpush2.msra.mxu0 0.0
  %1867 = vmatprep.subr.mxu0 0.0
  %1868 = vmatpush2.msra.mxu0 0.0
  %1869 = vmatprep.subr.mxu0 0.0
  %1870 = vmatpush2.msra.mxu0 0.0
  %1871 = vmatprep.subr.mxu0 0.0
  %1872 = vmatpush2.msra.mxu0 0.0
  %1873 = vmatprep.subr.mxu0 0.0
  %1874 = vmatpush2.msra.mxu0 0.0
  %1875 = vmatprep.mubr.f32.mxu0 0.0
  %1876 = vmatmul.mubr.f32.gmra.mxu0 %v1809
  %v1877 = vpop.f32.mrf.mxu0
  %v1878 = vadd.f32 %v966, %v1877
  %v1879 = vpop.f32.mrf.mxu0
  %1880 = vdwg.mxu0
  %v1881 = vadd.f32 %v951, %v1878
  %v1882 = vxor.u32 %v1881, 2147483648
  %v1883 = vmul.f32 %v1882, 1.442695
  %v1884 = vpow.pop %v1883
  %v1885 = vadd.f32 %v1884, 1.0
  %v1886 = vrcp.pop %v1885
  %v1887 = vmul.f32 1.0, %v1886
  %1889 = vrot.lane.b32.xlu0 %v1878, 96
  %v1890 = vpop.permute.xlu0 %1889
  %v1892 = vmul.f32 %v1887, %v1890
  %1894 = vrot.lane.b32.xlu0 %v1892, 32
  %v1895 = vpop.permute.xlu0 %1894
  %v1897 = vadd.f32 %v951, %v1895
  %v1898 = vtanh.pop %v1897
  %v1899 = vsub.f32 1.0, %v1887
  %1901 = vrot.lane.b32.xlu0 %v1898, 112
  %v1902 = vpop.permute.xlu0 %1901
  %v1904 = vmul.f32 %v1899, %v1902
  %v1906 = vmul.f32 %v1887, %v1806
  %v1907 = vadd.f32 %v1904, %v1906
  %1909 = vrot.lane.b32.xlu0 %v1907, 112
  %v1910 = vpop.permute.xlu0 %1909
  %v1911 = vsel %vm968, %v1910, 0
  %1913 = vmatprep.subr.mxu0 0.0
  %1914 = vmatpush1.msra.mxu0 0.0
  %1915 = vmatprep.subr.mxu0 0.0
  %1916 = vmatpush1.msra.mxu0 0.0
  %1917 = vmatprep.subr.mxu0 0.0
  %1918 = vmatpush1.msra.mxu0 0.0
  %1919 = vmatprep.subr.mxu0 0.0
  %1920 = vmatpush1.msra.mxu0 0.0
  %1921 = vmatprep.subr.mxu0 0.0
  %1922 = vmatpush1.msra.mxu0 0.0
  %1923 = vmatprep.subr.mxu0 0.0
  %1924 = vmatpush1.msra.mxu0 0.0
  %1925 = vmatprep.subr.mxu0 0.0
  %1926 = vmatpush1.msra.mxu0 0.0
  %1927 = vmatprep.subr.mxu0 0.0
  %1928 = vmatpush1.msra.mxu0 0.0
  %1929 = vmatprep.subr.mxu0 0.0
  %1930 = vmatpush1.msra.mxu0 0.0
  %1931 = vmatprep.subr.mxu0 0.0
  %1932 = vmatpush1.msra.mxu0 0.0
  %1933 = vmatprep.subr.mxu0 0.0
  %1934 = vmatpush1.msra.mxu0 0.0
  %1935 = vmatprep.subr.mxu0 0.0
  %1936 = vmatpush1.msra.mxu0 0.0
  %1937 = vmatprep.subr.mxu0 0.0
  %1938 = vmatpush1.msra.mxu0 0.0
  %1939 = vmatprep.subr.mxu0 0.0
  %1940 = vmatpush1.msra.mxu0 0.0
  %1941 = vmatprep.subr.mxu0 0.0
  %1942 = vmatpush1.msra.mxu0 %v960
  %1943 = vmatprep.subr.mxu0 0.0
  %1944 = vmatpush1.msra.mxu0 %v959
  %1945 = vmatprep.subr.mxu0 0.0
  %1946 = vmatpush2.msra.mxu0 0.0
  %1947 = vmatprep.subr.mxu0 0.0
  %1948 = vmatpush2.msra.mxu0 0.0
  %1949 = vmatprep.subr.mxu0 0.0
  %1950 = vmatpush2.msra.mxu0 0.0
  %1951 = vmatprep.subr.mxu0 0.0
  %1952 = vmatpush2.msra.mxu0 0.0
  %1953 = vmatprep.subr.mxu0 0.0
  %1954 = vmatpush2.msra.mxu0 0.0
  %1955 = vmatprep.subr.mxu0 0.0
  %1956 = vmatpush2.msra.mxu0 0.0
  %1957 = vmatprep.subr.mxu0 0.0
  %1958 = vmatpush2.msra.mxu0 0.0
  %1959 = vmatprep.subr.mxu0 0.0
  %1960 = vmatpush2.msra.mxu0 0.0
  %1961 = vmatprep.subr.mxu0 0.0
  %1962 = vmatpush2.msra.mxu0 0.0
  %1963 = vmatprep.subr.mxu0 0.0
  %1964 = vmatpush2.msra.mxu0 0.0
  %1965 = vmatprep.subr.mxu0 0.0
  %1966 = vmatpush2.msra.mxu0 0.0
  %1967 = vmatprep.subr.mxu0 0.0
  %1968 = vmatpush2.msra.mxu0 0.0
  %1969 = vmatprep.subr.mxu0 0.0
  %1970 = vmatpush2.msra.mxu0 0.0
  %1971 = vmatprep.subr.mxu0 0.0
  %1972 = vmatpush2.msra.mxu0 0.0
  %1973 = vmatprep.subr.mxu0 0.0
  %1974 = vmatpush2.msra.mxu0 0.0
  %1975 = vmatprep.subr.mxu0 0.0
  %1976 = vmatpush2.msra.mxu0 0.0
  %1977 = vmatprep.mubr.f32.mxu0 0.0
  %1978 = vmatmul.mubr.f32.gmra.mxu0 %v1911
  %v1979 = vpop.f32.mrf.mxu0
  %v1980 = vadd.f32 %v966, %v1979
  %v1981 = vpop.f32.mrf.mxu0
  %1982 = vdwg.mxu0
  %v1984 = vrot.slane %v1980, 6
  %v1986 = vadd.f32 %v951, %v1984
  %v1987 = vxor.u32 %v1986, 2147483648
  %v1988 = vmul.f32 %v1987, 1.442695
  %v1989 = vpow.pop %v1988
  %v1990 = vadd.f32 %v1989, 1.0
  %v1991 = vrcp.pop %v1990
  %v1992 = vmul.f32 1.0, %v1991
  %1993 = vrot.lane.b32.xlu0 %v1984, 96
  %v1994 = vpop.permute.xlu0 %1993
  %v1996 = vmul.f32 %v1992, %v1994
  %1998 = vrot.lane.b32.xlu0 %v1996, 32
  %v1999 = vpop.permute.xlu0 %1998
  %v2001 = vadd.f32 %v951, %v1999
  %v2002 = vtanh.pop %v2001
  %v2003 = vsub.f32 1.0, %v1992
  %2005 = vrot.lane.b32.xlu0 %v2002, 112
  %v2006 = vpop.permute.xlu0 %2005
  %v2008 = vmul.f32 %v2003, %v2006
  %v2009 = vrot.slane %v1907, 6
  %v2011 = vmul.f32 %v1992, %v2009
  %v2012 = vadd.f32 %v2008, %v2011
  %v2014 = vrot.slane %v2012, 2
  %2015 = vrot.lane.b32.xlu0 %v2014, 112
  %v2016 = vpop.permute.xlu0 %2015
  %v2017 = vsel %vm968, %v2016, 0
  %2019 = vmatprep.subr.mxu0 0.0
  %2020 = vmatpush1.msra.mxu0 0.0
  %2021 = vmatprep.subr.mxu0 0.0
  %2022 = vmatpush1.msra.mxu0 0.0
  %2023 = vmatprep.subr.mxu0 0.0
  %2024 = vmatpush1.msra.mxu0 0.0
  %2025 = vmatprep.subr.mxu0 0.0
  %2026 = vmatpush1.msra.mxu0 0.0
  %2027 = vmatprep.subr.mxu0 0.0
  %2028 = vmatpush1.msra.mxu0 0.0
  %2029 = vmatprep.subr.mxu0 0.0
  %2030 = vmatpush1.msra.mxu0 0.0
  %2031 = vmatprep.subr.mxu0 0.0
  %2032 = vmatpush1.msra.mxu0 0.0
  %2033 = vmatprep.subr.mxu0 0.0
  %2034 = vmatpush1.msra.mxu0 0.0
  %2035 = vmatprep.subr.mxu0 0.0
  %2036 = vmatpush1.msra.mxu0 0.0
  %2037 = vmatprep.subr.mxu0 0.0
  %2038 = vmatpush1.msra.mxu0 0.0
  %2039 = vmatprep.subr.mxu0 0.0
  %2040 = vmatpush1.msra.mxu0 0.0
  %2041 = vmatprep.subr.mxu0 0.0
  %2042 = vmatpush1.msra.mxu0 0.0
  %2043 = vmatprep.subr.mxu0 0.0
  %2044 = vmatpush1.msra.mxu0 0.0
  %2045 = vmatprep.subr.mxu0 0.0
  %2046 = vmatpush1.msra.mxu0 0.0
  %2047 = vmatprep.subr.mxu0 0.0
  %2048 = vmatpush1.msra.mxu0 %v960
  %2049 = vmatprep.subr.mxu0 0.0
  %2050 = vmatpush1.msra.mxu0 %v959
  %2051 = vmatprep.subr.mxu0 0.0
  %2052 = vmatpush2.msra.mxu0 0.0
  %2053 = vmatprep.subr.mxu0 0.0
  %2054 = vmatpush2.msra.mxu0 0.0
  %2055 = vmatprep.subr.mxu0 0.0
  %2056 = vmatpush2.msra.mxu0 0.0
  %2057 = vmatprep.subr.mxu0 0.0
  %2058 = vmatpush2.msra.mxu0 0.0
  %2059 = vmatprep.subr.mxu0 0.0
  %2060 = vmatpush2.msra.mxu0 0.0
  %2061 = vmatprep.subr.mxu0 0.0
  %2062 = vmatpush2.msra.mxu0 0.0
  %2063 = vmatprep.subr.mxu0 0.0
  %2064 = vmatpush2.msra.mxu0 0.0
  %2065 = vmatprep.subr.mxu0 0.0
  %2066 = vmatpush2.msra.mxu0 0.0
  %2067 = vmatprep.subr.mxu0 0.0
  %2068 = vmatpush2.msra.mxu0 0.0
  %2069 = vmatprep.subr.mxu0 0.0
  %2070 = vmatpush2.msra.mxu0 0.0
  %2071 = vmatprep.subr.mxu0 0.0
  %2072 = vmatpush2.msra.mxu0 0.0
  %2073 = vmatprep.subr.mxu0 0.0
  %2074 = vmatpush2.msra.mxu0 0.0
  %2075 = vmatprep.subr.mxu0 0.0
  %2076 = vmatpush2.msra.mxu0 0.0
  %2077 = vmatprep.subr.mxu0 0.0
  %2078 = vmatpush2.msra.mxu0 0.0
  %2079 = vmatprep.subr.mxu0 0.0
  %2080 = vmatpush2.msra.mxu0 0.0
  %2081 = vmatprep.subr.mxu0 0.0
  %2082 = vmatpush2.msra.mxu0 0.0
  %2083 = vmatprep.mubr.f32.mxu0 0.0
  %2084 = vmatmul.mubr.f32.gmra.mxu0 %v2017
  %v2085 = vpop.f32.mrf.mxu0
  %v2086 = vadd.f32 %v966, %v2085
  %v2087 = vpop.f32.mrf.mxu0
  %2088 = vdwg.mxu0
  %v2090 = vrot.slane %v2086, 4
  %v2092 = vadd.f32 %v951, %v2090
  %v2093 = vxor.u32 %v2092, 2147483648
  %v2094 = vmul.f32 %v2093, 1.442695
  %v2095 = vpow.pop %v2094
  %v2096 = vadd.f32 %v2095, 1.0
  %v2097 = vrcp.pop %v2096
  %v2098 = vmul.f32 1.0, %v2097
  %2099 = vrot.lane.b32.xlu0 %v2090, 96
  %v2100 = vpop.permute.xlu0 %2099
  %v2102 = vmul.f32 %v2098, %v2100
  %2104 = vrot.lane.b32.xlu0 %v2102, 32
  %v2105 = vpop.permute.xlu0 %2104
  %v2107 = vadd.f32 %v951, %v2105
  %v2108 = vtanh.pop %v2107
  %v2109 = vsub.f32 1.0, %v2098
  %2111 = vrot.lane.b32.xlu0 %v2108, 112
  %v2112 = vpop.permute.xlu0 %2111
  %v2114 = vmul.f32 %v2109, %v2112
  %v2115 = vrot.slane %v2012, 6
  %v2117 = vmul.f32 %v2098, %v2115
  %v2118 = vadd.f32 %v2114, %v2117
  %v2120 = vrot.slane %v2118, 4
  %2121 = vrot.lane.b32.xlu0 %v2120, 112
  %v2122 = vpop.permute.xlu0 %2121
  %v2123 = vsel %vm968, %v2122, 0
  %2125 = vmatprep.subr.mxu0 0.0
  %2126 = vmatpush1.msra.mxu0 0.0
  %2127 = vmatprep.subr.mxu0 0.0
  %2128 = vmatpush1.msra.mxu0 0.0
  %2129 = vmatprep.subr.mxu0 0.0
  %2130 = vmatpush1.msra.mxu0 0.0
  %2131 = vmatprep.subr.mxu0 0.0
  %2132 = vmatpush1.msra.mxu0 0.0
  %2133 = vmatprep.subr.mxu0 0.0
  %2134 = vmatpush1.msra.mxu0 0.0
  %2135 = vmatprep.subr.mxu0 0.0
  %2136 = vmatpush1.msra.mxu0 0.0
  %2137 = vmatprep.subr.mxu0 0.0
  %2138 = vmatpush1.msra.mxu0 0.0
  %2139 = vmatprep.subr.mxu0 0.0
  %2140 = vmatpush1.msra.mxu0 0.0
  %2141 = vmatprep.subr.mxu0 0.0
  %2142 = vmatpush1.msra.mxu0 0.0
  %2143 = vmatprep.subr.mxu0 0.0
  %2144 = vmatpush1.msra.mxu0 0.0
  %2145 = vmatprep.subr.mxu0 0.0
  %2146 = vmatpush1.msra.mxu0 0.0
  %2147 = vmatprep.subr.mxu0 0.0
  %2148 = vmatpush1.msra.mxu0 0.0
  %2149 = vmatprep.subr.mxu0 0.0
  %2150 = vmatpush1.msra.mxu0 0.0
  %2151 = vmatprep.subr.mxu0 0.0
  %2152 = vmatpush1.msra.mxu0 0.0
  %2153 = vmatprep.subr.mxu0 0.0
  %2154 = vmatpush1.msra.mxu0 %v960
  %2155 = vmatprep.subr.mxu0 0.0
  %2156 = vmatpush1.msra.mxu0 %v959
  %2157 = vmatprep.subr.mxu0 0.0
  %2158 = vmatpush2.msra.mxu0 0.0
  %2159 = vmatprep.subr.mxu0 0.0
  %2160 = vmatpush2.msra.mxu0 0.0
  %2161 = vmatprep.subr.mxu0 0.0
  %2162 = vmatpush2.msra.mxu0 0.0
  %2163 = vmatprep.subr.mxu0 0.0
  %2164 = vmatpush2.msra.mxu0 0.0
  %2165 = vmatprep.subr.mxu0 0.0
  %2166 = vmatpush2.msra.mxu0 0.0
  %2167 = vmatprep.subr.mxu0 0.0
  %2168 = vmatpush2.msra.mxu0 0.0
  %2169 = vmatprep.subr.mxu0 0.0
  %2170 = vmatpush2.msra.mxu0 0.0
  %2171 = vmatprep.subr.mxu0 0.0
  %2172 = vmatpush2.msra.mxu0 0.0
  %2173 = vmatprep.subr.mxu0 0.0
  %2174 = vmatpush2.msra.mxu0 0.0
  %2175 = vmatprep.subr.mxu0 0.0
  %2176 = vmatpush2.msra.mxu0 0.0
  %2177 = vmatprep.subr.mxu0 0.0
  %2178 = vmatpush2.msra.mxu0 0.0
  %2179 = vmatprep.subr.mxu0 0.0
  %2180 = vmatpush2.msra.mxu0 0.0
  %2181 = vmatprep.subr.mxu0 0.0
  %2182 = vmatpush2.msra.mxu0 0.0
  %2183 = vmatprep.subr.mxu0 0.0
  %2184 = vmatpush2.msra.mxu0 0.0
  %2185 = vmatprep.subr.mxu0 0.0
  %2186 = vmatpush2.msra.mxu0 0.0
  %2187 = vmatprep.subr.mxu0 0.0
  %2188 = vmatpush2.msra.mxu0 0.0
  %2189 = vmatprep.mubr.f32.mxu0 0.0
  %2190 = vmatmul.mubr.f32.gmra.mxu0 %v2123
  %v2191 = vpop.f32.mrf.mxu0
  %v2192 = vadd.f32 %v966, %v2191
  %v2193 = vpop.f32.mrf.mxu0
  %2194 = vdwg.mxu0
  %v2196 = vrot.slane %v2192, 2
  %v2198 = vadd.f32 %v951, %v2196
  %v2199 = vxor.u32 %v2198, 2147483648
  %v2200 = vmul.f32 %v2199, 1.442695
  %v2201 = vpow.pop %v2200
  %v2202 = vadd.f32 %v2201, 1.0
  %v2203 = vrcp.pop %v2202
  %v2204 = vmul.f32 1.0, %v2203
  %2205 = vrot.lane.b32.xlu0 %v2196, 96
  %v2206 = vpop.permute.xlu0 %2205
  %v2208 = vmul.f32 %v2204, %v2206
  %2210 = vrot.lane.b32.xlu0 %v2208, 32
  %v2211 = vpop.permute.xlu0 %2210
  %v2213 = vadd.f32 %v951, %v2211
  %v2214 = vtanh.pop %v2213
  %v2215 = vsub.f32 1.0, %v2204
  %2217 = vrot.lane.b32.xlu0 %v2214, 112
  %v2218 = vpop.permute.xlu0 %2217
  %v2220 = vmul.f32 %v2215, %v2218
  %v2221 = vrot.slane %v2118, 6
  %v2223 = vmul.f32 %v2204, %v2221
  %v2224 = vadd.f32 %v2220, %v2223
  %v2226 = vrot.slane %v2224, 6
  %2227 = vrot.lane.b32.xlu0 %v2226, 112
  %v2228 = vpop.permute.xlu0 %2227
  %v2229 = vsel %vm968, %v2228, 0
  %2231 = vmatprep.subr.mxu0 0.0
  %2232 = vmatpush1.msra.mxu0 0.0
  %2233 = vmatprep.subr.mxu0 0.0
  %2234 = vmatpush1.msra.mxu0 0.0
  %2235 = vmatprep.subr.mxu0 0.0
  %2236 = vmatpush1.msra.mxu0 0.0
  %2237 = vmatprep.subr.mxu0 0.0
  %2238 = vmatpush1.msra.mxu0 0.0
  %2239 = vmatprep.subr.mxu0 0.0
  %2240 = vmatpush1.msra.mxu0 0.0
  %2241 = vmatprep.subr.mxu0 0.0
  %2242 = vmatpush1.msra.mxu0 0.0
  %2243 = vmatprep.subr.mxu0 0.0
  %2244 = vmatpush1.msra.mxu0 0.0
  %2245 = vmatprep.subr.mxu0 0.0
  %2246 = vmatpush1.msra.mxu0 0.0
  %2247 = vmatprep.subr.mxu0 0.0
  %2248 = vmatpush1.msra.mxu0 0.0
  %2249 = vmatprep.subr.mxu0 0.0
  %2250 = vmatpush1.msra.mxu0 0.0
  %2251 = vmatprep.subr.mxu0 0.0
  %2252 = vmatpush1.msra.mxu0 0.0
  %2253 = vmatprep.subr.mxu0 0.0
  %2254 = vmatpush1.msra.mxu0 0.0
  %2255 = vmatprep.subr.mxu0 0.0
  %2256 = vmatpush1.msra.mxu0 0.0
  %2257 = vmatprep.subr.mxu0 0.0
  %2258 = vmatpush1.msra.mxu0 0.0
  %2259 = vmatprep.subr.mxu0 0.0
  %2260 = vmatpush1.msra.mxu0 %v960
  %2261 = vmatprep.subr.mxu0 0.0
  %2262 = vmatpush1.msra.mxu0 %v959
  %2263 = vmatprep.subr.mxu0 0.0
  %2264 = vmatpush2.msra.mxu0 0.0
  %2265 = vmatprep.subr.mxu0 0.0
  %2266 = vmatpush2.msra.mxu0 0.0
  %2267 = vmatprep.subr.mxu0 0.0
  %2268 = vmatpush2.msra.mxu0 0.0
  %2269 = vmatprep.subr.mxu0 0.0
  %2270 = vmatpush2.msra.mxu0 0.0
  %2271 = vmatprep.subr.mxu0 0.0
  %2272 = vmatpush2.msra.mxu0 0.0
  %2273 = vmatprep.subr.mxu0 0.0
  %2274 = vmatpush2.msra.mxu0 0.0
  %2275 = vmatprep.subr.mxu0 0.0
  %2276 = vmatpush2.msra.mxu0 0.0
  %2277 = vmatprep.subr.mxu0 0.0
  %2278 = vmatpush2.msra.mxu0 0.0
  %2279 = vmatprep.subr.mxu0 0.0
  %2280 = vmatpush2.msra.mxu0 0.0
  %2281 = vmatprep.subr.mxu0 0.0
  %2282 = vmatpush2.msra.mxu0 0.0
  %2283 = vmatprep.subr.mxu0 0.0
  %2284 = vmatpush2.msra.mxu0 0.0
  %2285 = vmatprep.subr.mxu0 0.0
  %2286 = vmatpush2.msra.mxu0 0.0
  %2287 = vmatprep.subr.mxu0 0.0
  %2288 = vmatpush2.msra.mxu0 0.0
  %2289 = vmatprep.subr.mxu0 0.0
  %2290 = vmatpush2.msra.mxu0 0.0
  %2291 = vmatprep.subr.mxu0 0.0
  %2292 = vmatpush2.msra.mxu0 0.0
  %2293 = vmatprep.subr.mxu0 0.0
  %2294 = vmatpush2.msra.mxu0 0.0
  %2295 = vmatprep.mubr.f32.mxu0 0.0
  %2296 = vmatmul.mubr.f32.gmra.mxu0 %v2229
  %v2297 = vpop.f32.mrf.mxu0
  %v2298 = vadd.f32 %v966, %v2297
  %v2299 = vpop.f32.mrf.mxu0
  %2300 = vdwg.mxu0
  %v2301 = vadd.f32 %v956, %v2298
  %v2302 = vxor.u32 %v2301, 2147483648
  %v2303 = vmul.f32 %v2302, 1.442695
  %v2304 = vpow.pop %v2303
  %v2305 = vadd.f32 %v2304, 1.0
  %v2306 = vrcp.pop %v2305
  %v2307 = vmul.f32 1.0, %v2306
  %2309 = vrot.lane.b32.xlu0 %v2298, 96
  %v2310 = vpop.permute.xlu0 %2309
  %v2312 = vmul.f32 %v2307, %v2310
  %2314 = vrot.lane.b32.xlu0 %v2312, 32
  %v2315 = vpop.permute.xlu0 %2314
  %v2317 = vadd.f32 %v956, %v2315
  %v2318 = vtanh.pop %v2317
  %v2319 = vsub.f32 1.0, %v2307
  %2321 = vrot.lane.b32.xlu0 %v2318, 112
  %v2322 = vpop.permute.xlu0 %2321
  %v2324 = vmul.f32 %v2319, %v2322
  %v2326 = vmul.f32 %v2307, %v2226
  %v2327 = vadd.f32 %v2324, %v2326
  %2329 = vrot.lane.b32.xlu0 %v2327, 112
  %v2330 = vpop.permute.xlu0 %2329
  %v2331 = vsel %vm968, %v2330, 0
  %2333 = vmatprep.subr.mxu0 0.0
  %2334 = vmatpush1.msra.mxu0 0.0
  %2335 = vmatprep.subr.mxu0 0.0
  %2336 = vmatpush1.msra.mxu0 0.0
  %2337 = vmatprep.subr.mxu0 0.0
  %2338 = vmatpush1.msra.mxu0 0.0
  %2339 = vmatprep.subr.mxu0 0.0
  %2340 = vmatpush1.msra.mxu0 0.0
  %2341 = vmatprep.subr.mxu0 0.0
  %2342 = vmatpush1.msra.mxu0 0.0
  %2343 = vmatprep.subr.mxu0 0.0
  %2344 = vmatpush1.msra.mxu0 0.0
  %2345 = vmatprep.subr.mxu0 0.0
  %2346 = vmatpush1.msra.mxu0 0.0
  %2347 = vmatprep.subr.mxu0 0.0
  %2348 = vmatpush1.msra.mxu0 0.0
  %2349 = vmatprep.subr.mxu0 0.0
  %2350 = vmatpush1.msra.mxu0 0.0
  %2351 = vmatprep.subr.mxu0 0.0
  %2352 = vmatpush1.msra.mxu0 0.0
  %2353 = vmatprep.subr.mxu0 0.0
  %2354 = vmatpush1.msra.mxu0 0.0
  %2355 = vmatprep.subr.mxu0 0.0
  %2356 = vmatpush1.msra.mxu0 0.0
  %2357 = vmatprep.subr.mxu0 0.0
  %2358 = vmatpush1.msra.mxu0 0.0
  %2359 = vmatprep.subr.mxu0 0.0
  %2360 = vmatpush1.msra.mxu0 0.0
  %2361 = vmatprep.subr.mxu0 0.0
  %2362 = vmatpush1.msra.mxu0 %v960
  %2363 = vmatprep.subr.mxu0 0.0
  %2364 = vmatpush1.msra.mxu0 %v959
  %2365 = vmatprep.subr.mxu0 0.0
  %2366 = vmatpush2.msra.mxu0 0.0
  %2367 = vmatprep.subr.mxu0 0.0
  %2368 = vmatpush2.msra.mxu0 0.0
  %2369 = vmatprep.subr.mxu0 0.0
  %2370 = vmatpush2.msra.mxu0 0.0
  %2371 = vmatprep.subr.mxu0 0.0
  %2372 = vmatpush2.msra.mxu0 0.0
  %2373 = vmatprep.subr.mxu0 0.0
  %2374 = vmatpush2.msra.mxu0 0.0
  %2375 = vmatprep.subr.mxu0 0.0
  %2376 = vmatpush2.msra.mxu0 0.0
  %2377 = vmatprep.subr.mxu0 0.0
  %2378 = vmatpush2.msra.mxu0 0.0
  %2379 = vmatprep.subr.mxu0 0.0
  %2380 = vmatpush2.msra.mxu0 0.0
  %2381 = vmatprep.subr.mxu0 0.0
  %2382 = vmatpush2.msra.mxu0 0.0
  %2383 = vmatprep.subr.mxu0 0.0
  %2384 = vmatpush2.msra.mxu0 0.0
  %2385 = vmatprep.subr.mxu0 0.0
  %2386 = vmatpush2.msra.mxu0 0.0
  %2387 = vmatprep.subr.mxu0 0.0
  %2388 = vmatpush2.msra.mxu0 0.0
  %2389 = vmatprep.subr.mxu0 0.0
  %2390 = vmatpush2.msra.mxu0 0.0
  %2391 = vmatprep.subr.mxu0 0.0
  %2392 = vmatpush2.msra.mxu0 0.0
  %2393 = vmatprep.subr.mxu0 0.0
  %2394 = vmatpush2.msra.mxu0 0.0
  %2395 = vmatprep.subr.mxu0 0.0
  %2396 = vmatpush2.msra.mxu0 0.0
  %2397 = vmatprep.mubr.f32.mxu0 0.0
  %2398 = vmatmul.mubr.f32.gmra.mxu0 %v2331
  %v2399 = vpop.f32.mrf.mxu0
  %v2400 = vadd.f32 %v966, %v2399
  %v2401 = vpop.f32.mrf.mxu0
  %2402 = vdwg.mxu0
  %v2404 = vrot.slane %v2400, 6
  %v2406 = vadd.f32 %v956, %v2404
  %v2407 = vxor.u32 %v2406, 2147483648
  %v2408 = vmul.f32 %v2407, 1.442695
  %v2409 = vpow.pop %v2408
  %v2410 = vadd.f32 %v2409, 1.0
  %v2411 = vrcp.pop %v2410
  %v2412 = vmul.f32 1.0, %v2411
  %2413 = vrot.lane.b32.xlu0 %v2404, 96
  %v2414 = vpop.permute.xlu0 %2413
  %v2416 = vmul.f32 %v2412, %v2414
  %2418 = vrot.lane.b32.xlu0 %v2416, 32
  %v2419 = vpop.permute.xlu0 %2418
  %v2421 = vadd.f32 %v956, %v2419
  %v2422 = vtanh.pop %v2421
  %v2423 = vsub.f32 1.0, %v2412
  %2425 = vrot.lane.b32.xlu0 %v2422, 112
  %v2426 = vpop.permute.xlu0 %2425
  %v2428 = vmul.f32 %v2423, %v2426
  %v2429 = vrot.slane %v2327, 6
  %v2431 = vmul.f32 %v2412, %v2429
  %v2432 = vadd.f32 %v2428, %v2431
  %v2433 = vld [vmem:[%s11] sm:$0xff]
  %v2434 = vld [vmem:[%s13] sm:$0x1]
  %v2436 = vlaneseq
  %v2437 = vshrl.u32 %v2436, 7
  %v2438 = vsub.s32 0, %v2437
  %v2439 = vrot.slane %v2434, %v2438
  %v2441 = vrot.slane %v849, 4
  %v2442 = vrot.slane %v850, 4
  %v2443 = vsel %vm213, %v2441, %v2442
  %v2444 = vrot.slane %v851, 4
  %v2445 = vsel %vm213, %v2442, %v2444
  %v2446 = vrot.slane %v852, 4
  %v2447 = vsel %vm213, %v2444, %v2446
  %v2448 = vsel %vm861, %v2443, 0
  %v2450 = vsel %vm861, %v2445, 0
  %v2452 = vsel %vm861, %v2447, 0
  %2454 = vmatprep.subr.mxu0 0.0
  %2455 = vmatpush1.msra.mxu0 0.0
  %2456 = vmatprep.subr.mxu0 0.0
  %2457 = vmatpush1.msra.mxu0 0.0
  %2458 = vmatprep.subr.mxu0 0.0
  %2459 = vmatpush1.msra.mxu0 0.0
  %2460 = vmatprep.subr.mxu0 0.0
  %2461 = vmatpush1.msra.mxu0 0.0
  %2462 = vmatprep.subr.mxu0 0.0
  %2463 = vmatpush1.msra.mxu0 0.0
  %2464 = vmatprep.subr.mxu0 0.0
  %2465 = vmatpush1.msra.mxu0 0.0
  %2466 = vmatprep.subr.mxu0 0.0
  %2467 = vmatpush1.msra.mxu0 0.0
  %2468 = vmatprep.subr.mxu0 0.0
  %2469 = vmatpush1.msra.mxu0 0.0
  %2470 = vmatprep.subr.mxu0 0.0
  %2471 = vmatpush1.msra.mxu0 0.0
  %2472 = vmatprep.subr.mxu0 0.0
  %2473 = vmatpush1.msra.mxu0 0.0
  %2474 = vmatprep.subr.mxu0 0.0
  %2475 = vmatpush1.msra.mxu0 0.0
  %2476 = vmatprep.subr.mxu0 0.0
  %2477 = vmatpush1.msra.mxu0 0.0
  %2478 = vmatprep.subr.mxu0 0.0
  %2479 = vmatpush1.msra.mxu0 0.0
  %2480 = vmatprep.subr.mxu0 0.0
  %2481 = vmatpush1.msra.mxu0 0.0
  %2482 = vmatprep.subr.mxu0 0.0
  %2483 = vmatpush1.msra.mxu0 0.0
  %2484 = vmatprep.subr.mxu0 0.0
  %2485 = vmatpush1.msra.mxu0 %v2433
  %2486 = vmatprep.subr.mxu0 0.0
  %2487 = vmatpush2.msra.mxu0 0.0
  %2488 = vmatprep.subr.mxu0 0.0
  %2489 = vmatpush2.msra.mxu0 0.0
  %2490 = vmatprep.subr.mxu0 0.0
  %2491 = vmatpush2.msra.mxu0 0.0
  %2492 = vmatprep.subr.mxu0 0.0
  %2493 = vmatpush2.msra.mxu0 0.0
  %2494 = vmatprep.subr.mxu0 0.0
  %2495 = vmatpush2.msra.mxu0 0.0
  %2496 = vmatprep.subr.mxu0 0.0
  %2497 = vmatpush2.msra.mxu0 0.0
  %2498 = vmatprep.subr.mxu0 0.0
  %2499 = vmatpush2.msra.mxu0 0.0
  %2500 = vmatprep.subr.mxu0 0.0
  %2501 = vmatpush2.msra.mxu0 0.0
  %2502 = vmatprep.subr.mxu0 0.0
  %2503 = vmatpush2.msra.mxu0 0.0
  %2504 = vmatprep.subr.mxu0 0.0
  %2505 = vmatpush2.msra.mxu0 0.0
  %2506 = vmatprep.subr.mxu0 0.0
  %2507 = vmatpush2.msra.mxu0 0.0
  %2508 = vmatprep.subr.mxu0 0.0
  %2509 = vmatpush2.msra.mxu0 0.0
  %2510 = vmatprep.subr.mxu0 0.0
  %2511 = vmatpush2.msra.mxu0 0.0
  %2512 = vmatprep.subr.mxu0 0.0
  %2513 = vmatpush2.msra.mxu0 0.0
  %2514 = vmatprep.subr.mxu0 0.0
  %2515 = vmatpush2.msra.mxu0 0.0
  %2516 = vmatprep.subr.mxu0 0.0
  %2517 = vmatpush2.msra.mxu0 0.0
  %2518 = vmatprep.mubr.f32.mxu0 0.0
  %2519 = vmatmul.mubr.f32.gmra.mxu0 %v2448
  %v2520 = vpop.f32.mrf.mxu0
  %v2521 = vadd.f32 %v2439, %v2520
  %v2522 = vpop.f32.mrf.mxu0
  %2523 = vmatprep.mubr.f32.mxu0 0.0
  %2524 = vmatmul.mubr.f32.gmra.mxu0 %v2450
  %v2525 = vpop.f32.mrf.mxu0
  %v2526 = vadd.f32 %v2439, %v2525
  %v2527 = vpop.f32.mrf.mxu0
  %2528 = vmatprep.mubr.f32.mxu0 0.0
  %2529 = vmatmul.mubr.f32.gmra.mxu0 %v2452
  %v2530 = vpop.f32.mrf.mxu0
  %v2531 = vadd.f32 %v2439, %v2530
  %v2532 = vpop.f32.mrf.mxu0
  %2533 = vdwg.mxu0
  %v2534 = vld [vmem:[%s12] sm:$0xff]
  %v2535 = vld [vmem:[%s14] sm:$0x1]
  %v2537 = vlaneseq
  %v2538 = vshrl.u32 %v2537, 7
  %v2539 = vsub.s32 0, %v2538
  %v2540 = vrot.slane %v2535, %v2539
  %v2542 = vsel %vm861, 0.0, 0
  %2544 = vmatprep.subr.mxu0 0.0
  %2545 = vmatpush1.msra.mxu0 0.0
  %2546 = vmatprep.subr.mxu0 0.0
  %2547 = vmatpush1.msra.mxu0 0.0
  %2548 = vmatprep.subr.mxu0 0.0
  %2549 = vmatpush1.msra.mxu0 0.0
  %2550 = vmatprep.subr.mxu0 0.0
  %2551 = vmatpush1.msra.mxu0 0.0
  %2552 = vmatprep.subr.mxu0 0.0
  %2553 = vmatpush1.msra.mxu0 0.0
  %2554 = vmatprep.subr.mxu0 0.0
  %2555 = vmatpush1.msra.mxu0 0.0
  %2556 = vmatprep.subr.mxu0 0.0
  %2557 = vmatpush1.msra.mxu0 0.0
  %2558 = vmatprep.subr.mxu0 0.0
  %2559 = vmatpush1.msra.mxu0 0.0
  %2560 = vmatprep.subr.mxu0 0.0
  %2561 = vmatpush1.msra.mxu0 0.0
  %2562 = vmatprep.subr.mxu0 0.0
  %2563 = vmatpush1.msra.mxu0 0.0
  %2564 = vmatprep.subr.mxu0 0.0
  %2565 = vmatpush1.msra.mxu0 0.0
  %2566 = vmatprep.subr.mxu0 0.0
  %2567 = vmatpush1.msra.mxu0 0.0
  %2568 = vmatprep.subr.mxu0 0.0
  %2569 = vmatpush1.msra.mxu0 0.0
  %2570 = vmatprep.subr.mxu0 0.0
  %2571 = vmatpush1.msra.mxu0 0.0
  %2572 = vmatprep.subr.mxu0 0.0
  %2573 = vmatpush1.msra.mxu0 0.0
  %2574 = vmatprep.subr.mxu0 0.0
  %2575 = vmatpush1.msra.mxu0 %v2534
  %2576 = vmatprep.subr.mxu0 0.0
  %2577 = vmatpush2.msra.mxu0 0.0
  %2578 = vmatprep.subr.mxu0 0.0
  %2579 = vmatpush2.msra.mxu0 0.0
  %2580 = vmatprep.subr.mxu0 0.0
  %2581 = vmatpush2.msra.mxu0 0.0
  %2582 = vmatprep.subr.mxu0 0.0
  %2583 = vmatpush2.msra.mxu0 0.0
  %2584 = vmatprep.subr.mxu0 0.0
  %2585 = vmatpush2.msra.mxu0 0.0
  %2586 = vmatprep.subr.mxu0 0.0
  %2587 = vmatpush2.msra.mxu0 0.0
  %2588 = vmatprep.subr.mxu0 0.0
  %2589 = vmatpush2.msra.mxu0 0.0
  %2590 = vmatprep.subr.mxu0 0.0
  %2591 = vmatpush2.msra.mxu0 0.0
  %2592 = vmatprep.subr.mxu0 0.0
  %2593 = vmatpush2.msra.mxu0 0.0
  %2594 = vmatprep.subr.mxu0 0.0
  %2595 = vmatpush2.msra.mxu0 0.0
  %2596 = vmatprep.subr.mxu0 0.0
  %2597 = vmatpush2.msra.mxu0 0.0
  %2598 = vmatprep.subr.mxu0 0.0
  %2599 = vmatpush2.msra.mxu0 0.0
  %2600 = vmatprep.subr.mxu0 0.0
  %2601 = vmatpush2.msra.mxu0 0.0
  %2602 = vmatprep.subr.mxu0 0.0
  %2603 = vmatpush2.msra.mxu0 0.0
  %2604 = vmatprep.subr.mxu0 0.0
  %2605 = vmatpush2.msra.mxu0 0.0
  %2606 = vmatprep.subr.mxu0 0.0
  %2607 = vmatpush2.msra.mxu0 0.0
  %2608 = vmatprep.mubr.f32.mxu0 0.0
  %2609 = vmatmul.mubr.f32.gmra.mxu0 %v2542
  %v2610 = vpop.f32.mrf.mxu0
  %v2611 = vadd.f32 %v2540, %v2610
  %v2612 = vpop.f32.mrf.mxu0
  %2613 = vdwg.mxu0
  %v2614 = vadd.f32 %v2521, %v2611
  %v2615 = vxor.u32 %v2614, 2147483648
  %v2616 = vmul.f32 %v2615, 1.442695
  %v2617 = vpow.pop %v2616
  %v2618 = vadd.f32 %v2617, 1.0
  %v2619 = vrcp.pop %v2618
  %v2620 = vmul.f32 1.0, %v2619
  %2622 = vrot.lane.b32.xlu0 %v2611, 112
  %v2623 = vpop.permute.xlu0 %2622
  %v2625 = vmul.f32 %v2620, %v2623
  %2627 = vrot.lane.b32.xlu0 %v2625, 16
  %v2628 = vpop.permute.xlu0 %2627
  %v2630 = vadd.f32 %v2521, %v2628
  %v2631 = vtanh.pop %v2630
  %v2632 = vsub.f32 1.0, %v2620
  %2634 = vrot.lane.b32.xlu0 %v2631, 120
  %v2635 = vpop.permute.xlu0 %2634
  %v2637 = vmul.f32 %v2632, %v2635
  %v2638 = vmul.f32 %v2620, 0.0
  %v2639 = vadd.f32 %v2637, %v2638
  %2641 = vrot.lane.b32.xlu0 %v2639, 120
  %v2642 = vpop.permute.xlu0 %2641
  %v2643 = vsel %vm861, %v2642, 0
  %2645 = vmatprep.subr.mxu0 0.0
  %2646 = vmatpush1.msra.mxu0 0.0
  %2647 = vmatprep.subr.mxu0 0.0
  %2648 = vmatpush1.msra.mxu0 0.0
  %2649 = vmatprep.subr.mxu0 0.0
  %2650 = vmatpush1.msra.mxu0 0.0
  %2651 = vmatprep.subr.mxu0 0.0
  %2652 = vmatpush1.msra.mxu0 0.0
  %2653 = vmatprep.subr.mxu0 0.0
  %2654 = vmatpush1.msra.mxu0 0.0
  %2655 = vmatprep.subr.mxu0 0.0
  %2656 = vmatpush1.msra.mxu0 0.0
  %2657 = vmatprep.subr.mxu0 0.0
  %2658 = vmatpush1.msra.mxu0 0.0
  %2659 = vmatprep.subr.mxu0 0.0
  %2660 = vmatpush1.msra.mxu0 0.0
  %2661 = vmatprep.subr.mxu0 0.0
  %2662 = vmatpush1.msra.mxu0 0.0
  %2663 = vmatprep.subr.mxu0 0.0
  %2664 = vmatpush1.msra.mxu0 0.0
  %2665 = vmatprep.subr.mxu0 0.0
  %2666 = vmatpush1.msra.mxu0 0.0
  %2667 = vmatprep.subr.mxu0 0.0
  %2668 = vmatpush1.msra.mxu0 0.0
  %2669 = vmatprep.subr.mxu0 0.0
  %2670 = vmatpush1.msra.mxu0 0.0
  %2671 = vmatprep.subr.mxu0 0.0
  %2672 = vmatpush1.msra.mxu0 0.0
  %2673 = vmatprep.subr.mxu0 0.0
  %2674 = vmatpush1.msra.mxu0 0.0
  %2675 = vmatprep.subr.mxu0 0.0
  %2676 = vmatpush1.msra.mxu0 %v2534
  %2677 = vmatprep.subr.mxu0 0.0
  %2678 = vmatpush2.msra.mxu0 0.0
  %2679 = vmatprep.subr.mxu0 0.0
  %2680 = vmatpush2.msra.mxu0 0.0
  %2681 = vmatprep.subr.mxu0 0.0
  %2682 = vmatpush2.msra.mxu0 0.0
  %2683 = vmatprep.subr.mxu0 0.0
  %2684 = vmatpush2.msra.mxu0 0.0
  %2685 = vmatprep.subr.mxu0 0.0
  %2686 = vmatpush2.msra.mxu0 0.0
  %2687 = vmatprep.subr.mxu0 0.0
  %2688 = vmatpush2.msra.mxu0 0.0
  %2689 = vmatprep.subr.mxu0 0.0
  %2690 = vmatpush2.msra.mxu0 0.0
  %2691 = vmatprep.subr.mxu0 0.0
  %2692 = vmatpush2.msra.mxu0 0.0
  %2693 = vmatprep.subr.mxu0 0.0
  %2694 = vmatpush2.msra.mxu0 0.0
  %2695 = vmatprep.subr.mxu0 0.0
  %2696 = vmatpush2.msra.mxu0 0.0
  %2697 = vmatprep.subr.mxu0 0.0
  %2698 = vmatpush2.msra.mxu0 0.0
  %2699 = vmatprep.subr.mxu0 0.0
  %2700 = vmatpush2.msra.mxu0 0.0
  %2701 = vmatprep.subr.mxu0 0.0
  %2702 = vmatpush2.msra.mxu0 0.0
  %2703 = vmatprep.subr.mxu0 0.0
  %2704 = vmatpush2.msra.mxu0 0.0
  %2705 = vmatprep.subr.mxu0 0.0
  %2706 = vmatpush2.msra.mxu0 0.0
  %2707 = vmatprep.subr.mxu0 0.0
  %2708 = vmatpush2.msra.mxu0 0.0
  %2709 = vmatprep.mubr.f32.mxu0 0.0
  %2710 = vmatmul.mubr.f32.gmra.mxu0 %v2643
  %v2711 = vpop.f32.mrf.mxu0
  %v2712 = vadd.f32 %v2540, %v2711
  %v2713 = vpop.f32.mrf.mxu0
  %2714 = vdwg.mxu0
  %v2715 = vadd.f32 %v2526, %v2712
  %v2716 = vxor.u32 %v2715, 2147483648
  %v2717 = vmul.f32 %v2716, 1.442695
  %v2718 = vpow.pop %v2717
  %v2719 = vadd.f32 %v2718, 1.0
  %v2720 = vrcp.pop %v2719
  %v2721 = vmul.f32 1.0, %v2720
  %2723 = vrot.lane.b32.xlu0 %v2712, 112
  %v2724 = vpop.permute.xlu0 %2723
  %v2726 = vmul.f32 %v2721, %v2724
  %2728 = vrot.lane.b32.xlu0 %v2726, 16
  %v2729 = vpop.permute.xlu0 %2728
  %v2731 = vadd.f32 %v2526, %v2729
  %v2732 = vtanh.pop %v2731
  %v2733 = vsub.f32 1.0, %v2721
  %2735 = vrot.lane.b32.xlu0 %v2732, 120
  %v2736 = vpop.permute.xlu0 %2735
  %v2738 = vmul.f32 %v2733, %v2736
  %v2739 = vmul.f32 %v2721, %v2639
  %v2740 = vadd.f32 %v2738, %v2739
  %2742 = vrot.lane.b32.xlu0 %v2740, 120
  %v2743 = vpop.permute.xlu0 %2742
  %v2744 = vsel %vm861, %v2743, 0
  %2746 = vmatprep.subr.mxu0 0.0
  %2747 = vmatpush1.msra.mxu0 0.0
  %2748 = vmatprep.subr.mxu0 0.0
  %2749 = vmatpush1.msra.mxu0 0.0
  %2750 = vmatprep.subr.mxu0 0.0
  %2751 = vmatpush1.msra.mxu0 0.0
  %2752 = vmatprep.subr.mxu0 0.0
  %2753 = vmatpush1.msra.mxu0 0.0
  %2754 = vmatprep.subr.mxu0 0.0
  %2755 = vmatpush1.msra.mxu0 0.0
  %2756 = vmatprep.subr.mxu0 0.0
  %2757 = vmatpush1.msra.mxu0 0.0
  %2758 = vmatprep.subr.mxu0 0.0
  %2759 = vmatpush1.msra.mxu0 0.0
  %2760 = vmatprep.subr.mxu0 0.0
  %2761 = vmatpush1.msra.mxu0 0.0
  %2762 = vmatprep.subr.mxu0 0.0
  %2763 = vmatpush1.msra.mxu0 0.0
  %2764 = vmatprep.subr.mxu0 0.0
  %2765 = vmatpush1.msra.mxu0 0.0
  %2766 = vmatprep.subr.mxu0 0.0
  %2767 = vmatpush1.msra.mxu0 0.0
  %2768 = vmatprep.subr.mxu0 0.0
  %2769 = vmatpush1.msra.mxu0 0.0
  %2770 = vmatprep.subr.mxu0 0.0
  %2771 = vmatpush1.msra.mxu0 0.0
  %2772 = vmatprep.subr.mxu0 0.0
  %2773 = vmatpush1.msra.mxu0 0.0
  %2774 = vmatprep.subr.mxu0 0.0
  %2775 = vmatpush1.msra.mxu0 0.0
  %2776 = vmatprep.subr.mxu0 0.0
  %2777 = vmatpush1.msra.mxu0 %v2534
  %2778 = vmatprep.subr.mxu0 0.0
  %2779 = vmatpush2.msra.mxu0 0.0
  %2780 = vmatprep.subr.mxu0 0.0
  %2781 = vmatpush2.msra.mxu0 0.0
  %2782 = vmatprep.subr.mxu0 0.0
  %2783 = vmatpush2.msra.mxu0 0.0
  %2784 = vmatprep.subr.mxu0 0.0
  %2785 = vmatpush2.msra.mxu0 0.0
  %2786 = vmatprep.subr.mxu0 0.0
  %2787 = vmatpush2.msra.mxu0 0.0
  %2788 = vmatprep.subr.mxu0 0.0
  %2789 = vmatpush2.msra.mxu0 0.0
  %2790 = vmatprep.subr.mxu0 0.0
  %2791 = vmatpush2.msra.mxu0 0.0
  %2792 = vmatprep.subr.mxu0 0.0
  %2793 = vmatpush2.msra.mxu0 0.0
  %2794 = vmatprep.subr.mxu0 0.0
  %2795 = vmatpush2.msra.mxu0 0.0
  %2796 = vmatprep.subr.mxu0 0.0
  %2797 = vmatpush2.msra.mxu0 0.0
  %2798 = vmatprep.subr.mxu0 0.0
  %2799 = vmatpush2.msra.mxu0 0.0
  %2800 = vmatprep.subr.mxu0 0.0
  %2801 = vmatpush2.msra.mxu0 0.0
  %2802 = vmatprep.subr.mxu0 0.0
  %2803 = vmatpush2.msra.mxu0 0.0
  %2804 = vmatprep.subr.mxu0 0.0
  %2805 = vmatpush2.msra.mxu0 0.0
  %2806 = vmatprep.subr.mxu0 0.0
  %2807 = vmatpush2.msra.mxu0 0.0
  %2808 = vmatprep.subr.mxu0 0.0
  %2809 = vmatpush2.msra.mxu0 0.0
  %2810 = vmatprep.mubr.f32.mxu0 0.0
  %2811 = vmatmul.mubr.f32.gmra.mxu0 %v2744
  %v2812 = vpop.f32.mrf.mxu0
  %v2813 = vadd.f32 %v2540, %v2812
  %v2814 = vpop.f32.mrf.mxu0
  %2815 = vdwg.mxu0
  %v2816 = vadd.f32 %v2531, %v2813
  %v2817 = vxor.u32 %v2816, 2147483648
  %v2818 = vmul.f32 %v2817, 1.442695
  %v2819 = vpow.pop %v2818
  %v2820 = vadd.f32 %v2819, 1.0
  %v2821 = vrcp.pop %v2820
  %v2822 = vmul.f32 1.0, %v2821
  %2824 = vrot.lane.b32.xlu0 %v2813, 112
  %v2825 = vpop.permute.xlu0 %2824
  %v2827 = vmul.f32 %v2822, %v2825
  %2829 = vrot.lane.b32.xlu0 %v2827, 16
  %v2830 = vpop.permute.xlu0 %2829
  %v2832 = vadd.f32 %v2531, %v2830
  %v2833 = vtanh.pop %v2832
  %v2834 = vsub.f32 1.0, %v2822
  %2836 = vrot.lane.b32.xlu0 %v2833, 120
  %v2837 = vpop.permute.xlu0 %2836
  %v2839 = vmul.f32 %v2834, %v2837
  %v2840 = vmul.f32 %v2822, %v2740
  %v2841 = vadd.f32 %v2839, %v2840
  %v2842 = vld [vmem:[%s15] sm:$0xff]
  %v2843 = vld [vmem:[%s15 + $0x8] sm:$0xff]
  %v2844 = vld [vmem:[%s17] sm:$0x1]
  %v2846 = vlaneseq
  %v2847 = vshrl.u32 %v2846, 7
  %v2848 = vsub.s32 0, %v2847
  %v2849 = vrot.slane %v2844, %v2848
  %v2852 = vrot.slane %v2432, 2
  %2853 = vrot.lane.b32.xlu0 %v2852, 112
  %v2854 = vpop.permute.xlu0 %2853
  %v2855 = vsel %vm968, %v2854, 0
  %2857 = vmatprep.subr.mxu0 0.0
  %2858 = vmatpush1.msra.mxu0 0.0
  %2859 = vmatprep.subr.mxu0 0.0
  %2860 = vmatpush1.msra.mxu0 0.0
  %2861 = vmatprep.subr.mxu0 0.0
  %2862 = vmatpush1.msra.mxu0 0.0
  %2863 = vmatprep.subr.mxu0 0.0
  %2864 = vmatpush1.msra.mxu0 0.0
  %2865 = vmatprep.subr.mxu0 0.0
  %2866 = vmatpush1.msra.mxu0 0.0
  %2867 = vmatprep.subr.mxu0 0.0
  %2868 = vmatpush1.msra.mxu0 0.0
  %2869 = vmatprep.subr.mxu0 0.0
  %2870 = vmatpush1.msra.mxu0 0.0
  %2871 = vmatprep.subr.mxu0 0.0
  %2872 = vmatpush1.msra.mxu0 0.0
  %2873 = vmatprep.subr.mxu0 0.0
  %2874 = vmatpush1.msra.mxu0 0.0
  %2875 = vmatprep.subr.mxu0 0.0
  %2876 = vmatpush1.msra.mxu0 0.0
  %2877 = vmatprep.subr.mxu0 0.0
  %2878 = vmatpush1.msra.mxu0 0.0
  %2879 = vmatprep.subr.mxu0 0.0
  %2880 = vmatpush1.msra.mxu0 0.0
  %2881 = vmatprep.subr.mxu0 0.0
  %2882 = vmatpush1.msra.mxu0 0.0
  %2883 = vmatprep.subr.mxu0 0.0
  %2884 = vmatpush1.msra.mxu0 0.0
  %2885 = vmatprep.subr.mxu0 0.0
  %2886 = vmatpush1.msra.mxu0 %v2843
  %2887 = vmatprep.subr.mxu0 0.0
  %2888 = vmatpush1.msra.mxu0 %v2842
  %2889 = vmatprep.subr.mxu0 0.0
  %2890 = vmatpush2.msra.mxu0 0.0
  %2891 = vmatprep.subr.mxu0 0.0
  %2892 = vmatpush2.msra.mxu0 0.0
  %2893 = vmatprep.subr.mxu0 0.0
  %2894 = vmatpush2.msra.mxu0 0.0
  %2895 = vmatprep.subr.mxu0 0.0
  %2896 = vmatpush2.msra.mxu0 0.0
  %2897 = vmatprep.subr.mxu0 0.0
  %2898 = vmatpush2.msra.mxu0 0.0
  %2899 = vmatprep.subr.mxu0 0.0
  %2900 = vmatpush2.msra.mxu0 0.0
  %2901 = vmatprep.subr.mxu0 0.0
  %2902 = vmatpush2.msra.mxu0 0.0
  %2903 = vmatprep.subr.mxu0 0.0
  %2904 = vmatpush2.msra.mxu0 0.0
  %2905 = vmatprep.subr.mxu0 0.0
  %2906 = vmatpush2.msra.mxu0 0.0
  %2907 = vmatprep.subr.mxu0 0.0
  %2908 = vmatpush2.msra.mxu0 0.0
  %2909 = vmatprep.subr.mxu0 0.0
  %2910 = vmatpush2.msra.mxu0 0.0
  %2911 = vmatprep.subr.mxu0 0.0
  %2912 = vmatpush2.msra.mxu0 0.0
  %2913 = vmatprep.subr.mxu0 0.0
  %2914 = vmatpush2.msra.mxu0 0.0
  %2915 = vmatprep.subr.mxu0 0.0
  %2916 = vmatpush2.msra.mxu0 0.0
  %2917 = vmatprep.subr.mxu0 0.0
  %2918 = vmatpush2.msra.mxu0 0.0
  %2919 = vmatprep.subr.mxu0 0.0
  %2920 = vmatpush2.msra.mxu0 0.0
  %2921 = vmatprep.mubr.f32.mxu0 0.0
  %2922 = vmatmul.mubr.f32.gmra.mxu0 %v2855
  %v2923 = vpop.f32.mrf.mxu0
  %v2924 = vadd.f32 %v2849, %v2923
  %v2925 = vpop.f32.mrf.mxu0
  %2926 = vdwg.mxu0
  %v2927 = vld [vmem:[%s16] sm:$0xff]
  %v2928 = vld [vmem:[%s16 + $0x8] sm:$0xff]
  %v2929 = vld [vmem:[%s16 + $0x10] sm:$0xff]
  %v2930 = vld [vmem:[%s16 + $0x18] sm:$0xff]
  %2932 = vrot.lane.b32.xlu0 %v2841, 120
  %v2933 = vpop.permute.xlu0 %2932
  %v2934 = vsel %vm861, %v2933, 0
  %2936 = vmatprep.subr.mxu0 0.0
  %2937 = vmatpush1.msra.mxu0 0.0
  %2938 = vmatprep.subr.mxu0 0.0
  %2939 = vmatpush1.msra.mxu0 0.0
  %2940 = vmatprep.subr.mxu0 0.0
  %2941 = vmatpush1.msra.mxu0 0.0
  %2942 = vmatprep.subr.mxu0 0.0
  %2943 = vmatpush1.msra.mxu0 0.0
  %2944 = vmatprep.subr.mxu0 0.0
  %2945 = vmatpush1.msra.mxu0 0.0
  %2946 = vmatprep.subr.mxu0 0.0
  %2947 = vmatpush1.msra.mxu0 0.0
  %2948 = vmatprep.subr.mxu0 0.0
  %2949 = vmatpush1.msra.mxu0 0.0
  %2950 = vmatprep.subr.mxu0 0.0
  %2951 = vmatpush1.msra.mxu0 0.0
  %2952 = vmatprep.subr.mxu0 0.0
  %2953 = vmatpush1.msra.mxu0 0.0
  %2954 = vmatprep.subr.mxu0 0.0
  %2955 = vmatpush1.msra.mxu0 0.0
  %2956 = vmatprep.subr.mxu0 0.0
  %2957 = vmatpush1.msra.mxu0 0.0
  %2958 = vmatprep.subr.mxu0 0.0
  %2959 = vmatpush1.msra.mxu0 0.0
  %2960 = vmatprep.subr.mxu0 0.0
  %2961 = vmatpush1.msra.mxu0 0.0
  %2962 = vmatprep.subr.mxu0 0.0
  %2963 = vmatpush1.msra.mxu0 0.0
  %2964 = vmatprep.subr.mxu0 0.0
  %2965 = vmatpush1.msra.mxu0 0.0
  %2966 = vmatprep.subr.mxu0 0.0
  %2967 = vmatpush1.msra.mxu0 %v2927
  %2968 = vmatprep.subr.mxu0 0.0
  %2969 = vmatpush2.msra.mxu0 0.0
  %2970 = vmatprep.subr.mxu0 0.0
  %2971 = vmatpush2.msra.mxu0 0.0
  %2972 = vmatprep.subr.mxu0 0.0
  %2973 = vmatpush2.msra.mxu0 0.0
  %2974 = vmatprep.subr.mxu0 0.0
  %2975 = vmatpush2.msra.mxu0 0.0
  %2976 = vmatprep.subr.mxu0 0.0
  %2977 = vmatpush2.msra.mxu0 0.0
  %2978 = vmatprep.subr.mxu0 0.0
  %2979 = vmatpush2.msra.mxu0 0.0
  %2980 = vmatprep.subr.mxu0 0.0
  %2981 = vmatpush2.msra.mxu0 0.0
  %2982 = vmatprep.subr.mxu0 0.0
  %2983 = vmatpush2.msra.mxu0 0.0
  %2984 = vmatprep.subr.mxu0 0.0
  %2985 = vmatpush2.msra.mxu0 0.0
  %2986 = vmatprep.subr.mxu0 0.0
  %2987 = vmatpush2.msra.mxu0 0.0
  %2988 = vmatprep.subr.mxu0 0.0
  %2989 = vmatpush2.msra.mxu0 0.0
  %2990 = vmatprep.subr.mxu0 0.0
  %2991 = vmatpush2.msra.mxu0 0.0
  %2992 = vmatprep.subr.mxu0 0.0
  %2993 = vmatpush2.msra.mxu0 0.0
  %2994 = vmatprep.subr.mxu0 0.0
  %2995 = vmatpush2.msra.mxu0 0.0
  %2996 = vmatprep.subr.mxu0 0.0
  %2997 = vmatpush2.msra.mxu0 0.0
  %2998 = vmatprep.subr.mxu0 0.0
  %2999 = vmatpush2.msra.mxu0 0.0
  %3000 = vmatprep.mubr.f32.mxu0 0.0
  %3001 = vmatmul.mubr.f32.gmra.mxu0 %v2934
  %v3002 = vpop.f32.mrf.mxu0
  %v3003 = vadd.f32 0.0, %v3002
  %v3004 = vpop.f32.mrf.mxu0
  %3005 = vdwg.mxu0
  %v3006 = vadd.f32 %v2924, %v3003
  %v3007 = vrot.slane %v2841, 2
  %3008 = vrot.lane.b32.xlu0 %v3007, 120
  %v3009 = vpop.permute.xlu0 %3008
  %v3010 = vsel %vm861, %v3009, 0
  %3012 = vmatprep.subr.mxu0 0.0
  %3013 = vmatpush1.msra.mxu0 0.0
  %3014 = vmatprep.subr.mxu0 0.0
  %3015 = vmatpush1.msra.mxu0 0.0
  %3016 = vmatprep.subr.mxu0 0.0
  %3017 = vmatpush1.msra.mxu0 0.0
  %3018 = vmatprep.subr.mxu0 0.0
  %3019 = vmatpush1.msra.mxu0 0.0
  %3020 = vmatprep.subr.mxu0 0.0
  %3021 = vmatpush1.msra.mxu0 0.0
  %3022 = vmatprep.subr.mxu0 0.0
  %3023 = vmatpush1.msra.mxu0 0.0
  %3024 = vmatprep.subr.mxu0 0.0
  %3025 = vmatpush1.msra.mxu0 0.0
  %3026 = vmatprep.subr.mxu0 0.0
  %3027 = vmatpush1.msra.mxu0 0.0
  %3028 = vmatprep.subr.mxu0 0.0
  %3029 = vmatpush1.msra.mxu0 0.0
  %3030 = vmatprep.subr.mxu0 0.0
  %3031 = vmatpush1.msra.mxu0 0.0
  %3032 = vmatprep.subr.mxu0 0.0
  %3033 = vmatpush1.msra.mxu0 0.0
  %3034 = vmatprep.subr.mxu0 0.0
  %3035 = vmatpush1.msra.mxu0 0.0
  %3036 = vmatprep.subr.mxu0 0.0
  %3037 = vmatpush1.msra.mxu0 0.0
  %3038 = vmatprep.subr.mxu0 0.0
  %3039 = vmatpush1.msra.mxu0 0.0
  %3040 = vmatprep.subr.mxu0 0.0
  %3041 = vmatpush1.msra.mxu0 0.0
  %3042 = vmatprep.subr.mxu0 0.0
  %3043 = vmatpush1.msra.mxu0 %v2928
  %3044 = vmatprep.subr.mxu0 0.0
  %3045 = vmatpush2.msra.mxu0 0.0
  %3046 = vmatprep.subr.mxu0 0.0
  %3047 = vmatpush2.msra.mxu0 0.0
  %3048 = vmatprep.subr.mxu0 0.0
  %3049 = vmatpush2.msra.mxu0 0.0
  %3050 = vmatprep.subr.mxu0 0.0
  %3051 = vmatpush2.msra.mxu0 0.0
  %3052 = vmatprep.subr.mxu0 0.0
  %3053 = vmatpush2.msra.mxu0 0.0
  %3054 = vmatprep.subr.mxu0 0.0
  %3055 = vmatpush2.msra.mxu0 0.0
  %3056 = vmatprep.subr.mxu0 0.0
  %3057 = vmatpush2.msra.mxu0 0.0
  %3058 = vmatprep.subr.mxu0 0.0
  %3059 = vmatpush2.msra.mxu0 0.0
  %3060 = vmatprep.subr.mxu0 0.0
  %3061 = vmatpush2.msra.mxu0 0.0
  %3062 = vmatprep.subr.mxu0 0.0
  %3063 = vmatpush2.msra.mxu0 0.0
  %3064 = vmatprep.subr.mxu0 0.0
  %3065 = vmatpush2.msra.mxu0 0.0
  %3066 = vmatprep.subr.mxu0 0.0
  %3067 = vmatpush2.msra.mxu0 0.0
  %3068 = vmatprep.subr.mxu0 0.0
  %3069 = vmatpush2.msra.mxu0 0.0
  %3070 = vmatprep.subr.mxu0 0.0
  %3071 = vmatpush2.msra.mxu0 0.0
  %3072 = vmatprep.subr.mxu0 0.0
  %3073 = vmatpush2.msra.mxu0 0.0
  %3074 = vmatprep.subr.mxu0 0.0
  %3075 = vmatpush2.msra.mxu0 0.0
  %3076 = vmatprep.mubr.f32.mxu0 0.0
  %3077 = vmatmul.mubr.f32.gmra.mxu0 %v3010
  %v3078 = vpop.f32.mrf.mxu0
  %v3079 = vadd.f32 0.0, %v3078
  %v3080 = vpop.f32.mrf.mxu0
  %3081 = vdwg.mxu0
  %v3082 = vadd.f32 %v3006, %v3079
  %v3083 = vrot.slane %v2841, 4
  %3084 = vrot.lane.b32.xlu0 %v3083, 120
  %v3085 = vpop.permute.xlu0 %3084
  %v3086 = vsel %vm861, %v3085, 0
  %3088 = vmatprep.subr.mxu0 0.0
  %3089 = vmatpush1.msra.mxu0 0.0
  %3090 = vmatprep.subr.mxu0 0.0
  %3091 = vmatpush1.msra.mxu0 0.0
  %3092 = vmatprep.subr.mxu0 0.0
  %3093 = vmatpush1.msra.mxu0 0.0
  %3094 = vmatprep.subr.mxu0 0.0
  %3095 = vmatpush1.msra.mxu0 0.0
  %3096 = vmatprep.subr.mxu0 0.0
  %3097 = vmatpush1.msra.mxu0 0.0
  %3098 = vmatprep.subr.mxu0 0.0
  %3099 = vmatpush1.msra.mxu0 0.0
  %3100 = vmatprep.subr.mxu0 0.0
  %3101 = vmatpush1.msra.mxu0 0.0
  %3102 = vmatprep.subr.mxu0 0.0
  %3103 = vmatpush1.msra.mxu0 0.0
  %3104 = vmatprep.subr.mxu0 0.0
  %3105 = vmatpush1.msra.mxu0 0.0
  %3106 = vmatprep.subr.mxu0 0.0
  %3107 = vmatpush1.msra.mxu0 0.0
  %3108 = vmatprep.subr.mxu0 0.0
  %3109 = vmatpush1.msra.mxu0 0.0
  %3110 = vmatprep.subr.mxu0 0.0
  %3111 = vmatpush1.msra.mxu0 0.0
  %3112 = vmatprep.subr.mxu0 0.0
  %3113 = vmatpush1.msra.mxu0 0.0
  %3114 = vmatprep.subr.mxu0 0.0
  %3115 = vmatpush1.msra.mxu0 0.0
  %3116 = vmatprep.subr.mxu0 0.0
  %3117 = vmatpush1.msra.mxu0 0.0
  %3118 = vmatprep.subr.mxu0 0.0
  %3119 = vmatpush1.msra.mxu0 %v2929
  %3120 = vmatprep.subr.mxu0 0.0
  %3121 = vmatpush2.msra.mxu0 0.0
  %3122 = vmatprep.subr.mxu0 0.0
  %3123 = vmatpush2.msra.mxu0 0.0
  %3124 = vmatprep.subr.mxu0 0.0
  %3125 = vmatpush2.msra.mxu0 0.0
  %3126 = vmatprep.subr.mxu0 0.0
  %3127 = vmatpush2.msra.mxu0 0.0
  %3128 = vmatprep.subr.mxu0 0.0
  %3129 = vmatpush2.msra.mxu0 0.0
  %3130 = vmatprep.subr.mxu0 0.0
  %3131 = vmatpush2.msra.mxu0 0.0
  %3132 = vmatprep.subr.mxu0 0.0
  %3133 = vmatpush2.msra.mxu0 0.0
  %3134 = vmatprep.subr.mxu0 0.0
  %3135 = vmatpush2.msra.mxu0 0.0
  %3136 = vmatprep.subr.mxu0 0.0
  %3137 = vmatpush2.msra.mxu0 0.0
  %3138 = vmatprep.subr.mxu0 0.0
  %3139 = vmatpush2.msra.mxu0 0.0
  %3140 = vmatprep.subr.mxu0 0.0
  %3141 = vmatpush2.msra.mxu0 0.0
  %3142 = vmatprep.subr.mxu0 0.0
  %3143 = vmatpush2.msra.mxu0 0.0
  %3144 = vmatprep.subr.mxu0 0.0
  %3145 = vmatpush2.msra.mxu0 0.0
  %3146 = vmatprep.subr.mxu0 0.0
  %3147 = vmatpush2.msra.mxu0 0.0
  %3148 = vmatprep.subr.mxu0 0.0
  %3149 = vmatpush2.msra.mxu0 0.0
  %3150 = vmatprep.subr.mxu0 0.0
  %3151 = vmatpush2.msra.mxu0 0.0
  %3152 = vmatprep.mubr.f32.mxu0 0.0
  %3153 = vmatmul.mubr.f32.gmra.mxu0 %v3086
  %v3154 = vpop.f32.mrf.mxu0
  %v3155 = vadd.f32 0.0, %v3154
  %v3156 = vpop.f32.mrf.mxu0
  %3157 = vdwg.mxu0
  %v3158 = vadd.f32 %v3082, %v3155
  %v3159 = vrot.slane %v2841, 6
  %3160 = vrot.lane.b32.xlu0 %v3159, 120
  %v3161 = vpop.permute.xlu0 %3160
  %v3162 = vsel %vm861, %v3161, 0
  %3164 = vmatprep.subr.mxu0 0.0
  %3165 = vmatpush1.msra.mxu0 0.0
  %3166 = vmatprep.subr.mxu0 0.0
  %3167 = vmatpush1.msra.mxu0 0.0
  %3168 = vmatprep.subr.mxu0 0.0
  %3169 = vmatpush1.msra.mxu0 0.0
  %3170 = vmatprep.subr.mxu0 0.0
  %3171 = vmatpush1.msra.mxu0 0.0
  %3172 = vmatprep.subr.mxu0 0.0
  %3173 = vmatpush1.msra.mxu0 0.0
  %3174 = vmatprep.subr.mxu0 0.0
  %3175 = vmatpush1.msra.mxu0 0.0
  %3176 = vmatprep.subr.mxu0 0.0
  %3177 = vmatpush1.msra.mxu0 0.0
  %3178 = vmatprep.subr.mxu0 0.0
  %3179 = vmatpush1.msra.mxu0 0.0
  %3180 = vmatprep.subr.mxu0 0.0
  %3181 = vmatpush1.msra.mxu0 0.0
  %3182 = vmatprep.subr.mxu0 0.0
  %3183 = vmatpush1.msra.mxu0 0.0
  %3184 = vmatprep.subr.mxu0 0.0
  %3185 = vmatpush1.msra.mxu0 0.0
  %3186 = vmatprep.subr.mxu0 0.0
  %3187 = vmatpush1.msra.mxu0 0.0
  %3188 = vmatprep.subr.mxu0 0.0
  %3189 = vmatpush1.msra.mxu0 0.0
  %3190 = vmatprep.subr.mxu0 0.0
  %3191 = vmatpush1.msra.mxu0 0.0
  %3192 = vmatprep.subr.mxu0 0.0
  %3193 = vmatpush1.msra.mxu0 0.0
  %3194 = vmatprep.subr.mxu0 0.0
  %3195 = vmatpush1.msra.mxu0 %v2930
  %3196 = vmatprep.subr.mxu0 0.0
  %3197 = vmatpush2.msra.mxu0 0.0
  %3198 = vmatprep.subr.mxu0 0.0
  %3199 = vmatpush2.msra.mxu0 0.0
  %3200 = vmatprep.subr.mxu0 0.0
  %3201 = vmatpush2.msra.mxu0 0.0
  %3202 = vmatprep.subr.mxu0 0.0
  %3203 = vmatpush2.msra.mxu0 0.0
  %3204 = vmatprep.subr.mxu0 0.0
  %3205 = vmatpush2.msra.mxu0 0.0
  %3206 = vmatprep.subr.mxu0 0.0
  %3207 = vmatpush2.msra.mxu0 0.0
  %3208 = vmatprep.subr.mxu0 0.0
  %3209 = vmatpush2.msra.mxu0 0.0
  %3210 = vmatprep.subr.mxu0 0.0
  %3211 = vmatpush2.msra.mxu0 0.0
  %3212 = vmatprep.subr.mxu0 0.0
  %3213 = vmatpush2.msra.mxu0 0.0
  %3214 = vmatprep.subr.mxu0 0.0
  %3215 = vmatpush2.msra.mxu0 0.0
  %3216 = vmatprep.subr.mxu0 0.0
  %3217 = vmatpush2.msra.mxu0 0.0
  %3218 = vmatprep.subr.mxu0 0.0
  %3219 = vmatpush2.msra.mxu0 0.0
  %3220 = vmatprep.subr.mxu0 0.0
  %3221 = vmatpush2.msra.mxu0 0.0
  %3222 = vmatprep.subr.mxu0 0.0
  %3223 = vmatpush2.msra.mxu0 0.0
  %3224 = vmatprep.subr.mxu0 0.0
  %3225 = vmatpush2.msra.mxu0 0.0
  %3226 = vmatprep.subr.mxu0 0.0
  %3227 = vmatpush2.msra.mxu0 0.0
  %3228 = vmatprep.mubr.f32.mxu0 0.0
  %3229 = vmatmul.mubr.f32.gmra.mxu0 %v3162
  %v3230 = vpop.f32.mrf.mxu0
  %v3231 = vadd.f32 0.0, %v3230
  %v3232 = vpop.f32.mrf.mxu0
  %3233 = vdwg.mxu0
  %v3234 = vadd.f32 %v3158, %v3231
  %v3235 = vld [vmem:[%s18] sm:$0xff]
  %v3236 = vld [vmem:[%s18 + $0x8] sm:$0xf]
  %v3237 = vld [vmem:[%s19] sm:$0xff]
  %v3238 = vld [vmem:[%s19 + $0x8] sm:$0xff]
  %v3239 = vld [vmem:[%s19 + $0x10] sm:$0xff]
  %v3240 = vld [vmem:[%s19 + $0x18] sm:$0x3f]
  %v3241 = vld [vmem:[%s20] sm:$0x1]
  %v3243 = vlaneseq
  %v3244 = vshrl.u32 %v3243, 7
  %v3245 = vsub.s32 0, %v3244
  %v3246 = vrot.slane %v3241, %v3245
  %v3248 = vadd.f32 %v3234, %v3246
  %v3250 = vsel %vm213, %v3235, 0
  %3252 = vmatprep.subr.mxu0 0.0
  %3253 = vmatpush1.msra.mxu0 0.0
  %3254 = vmatprep.subr.mxu0 0.0
  %3255 = vmatpush1.msra.mxu0 0.0
  %3256 = vmatprep.subr.mxu0 0.0
  %3257 = vmatpush1.msra.mxu0 0.0
  %3258 = vmatprep.subr.mxu0 0.0
  %3259 = vmatpush1.msra.mxu0 0.0
  %3260 = vmatprep.subr.mxu0 0.0
  %3261 = vmatpush1.msra.mxu0 0.0
  %3262 = vmatprep.subr.mxu0 0.0
  %3263 = vmatpush1.msra.mxu0 0.0
  %3264 = vmatprep.subr.mxu0 0.0
  %3265 = vmatpush1.msra.mxu0 0.0
  %3266 = vmatprep.subr.mxu0 0.0
  %3267 = vmatpush1.msra.mxu0 0.0
  %3268 = vmatprep.subr.mxu0 0.0
  %3269 = vmatpush1.msra.mxu0 0.0
  %3270 = vmatprep.subr.mxu0 0.0
  %3271 = vmatpush1.msra.mxu0 0.0
  %3272 = vmatprep.subr.mxu0 0.0
  %3273 = vmatpush1.msra.mxu0 0.0
  %3274 = vmatprep.subr.mxu0 0.0
  %3275 = vmatpush1.msra.mxu0 0.0
  %3276 = vmatprep.subr.mxu0 0.0
  %3277 = vmatpush1.msra.mxu0 0.0
  %3278 = vmatprep.subr.mxu0 0.0
  %3279 = vmatpush1.msra.mxu0 0.0
  %3280 = vmatprep.subr.mxu0 0.0
  %3281 = vmatpush1.msra.mxu0 0.0
  %3282 = vmatprep.subr.mxu0 0.0
  %3283 = vmatpush1.msra.mxu0 %v3250
  %3284 = vmatprep.subr.mxu0 0.0
  %3285 = vmatpush2.msra.mxu0 0.0
  %3286 = vmatprep.subr.mxu0 0.0
  %3287 = vmatpush2.msra.mxu0 0.0
  %3288 = vmatprep.subr.mxu0 0.0
  %3289 = vmatpush2.msra.mxu0 0.0
  %3290 = vmatprep.subr.mxu0 0.0
  %3291 = vmatpush2.msra.mxu0 0.0
  %3292 = vmatprep.subr.mxu0 0.0
  %3293 = vmatpush2.msra.mxu0 0.0
  %3294 = vmatprep.subr.mxu0 0.0
  %3295 = vmatpush2.msra.mxu0 0.0
  %3296 = vmatprep.subr.mxu0 0.0
  %3297 = vmatpush2.msra.mxu0 0.0
  %3298 = vmatprep.subr.mxu0 0.0
  %3299 = vmatpush2.msra.mxu0 0.0
  %3300 = vmatprep.subr.mxu0 0.0
  %3301 = vmatpush2.msra.mxu0 0.0
  %3302 = vmatprep.subr.mxu0 0.0
  %3303 = vmatpush2.msra.mxu0 0.0
  %3304 = vmatprep.subr.mxu0 0.0
  %3305 = vmatpush2.msra.mxu0 0.0
  %3306 = vmatprep.subr.mxu0 0.0
  %3307 = vmatpush2.msra.mxu0 0.0
  %3308 = vmatprep.subr.mxu0 0.0
  %3309 = vmatpush2.msra.mxu0 0.0
  %3310 = vmatprep.subr.mxu0 0.0
  %3311 = vmatpush2.msra.mxu0 0.0
  %3312 = vmatprep.subr.mxu0 0.0
  %3313 = vmatpush2.msra.mxu0 0.0
  %3314 = vmatprep.subr.mxu0 0.0
  %3315 = vmatpush2.msra.mxu0 0.0
  %3316 = vmatprep.mubr.f32.mxu0 0.0
  %3317 = vmatmul.mubr.f32.gmra.mxu0 %v427
  %v3318 = vpop.f32.mrf.mxu0
  %v3319 = vadd.f32 0.0, %v3318
  %v3320 = vpop.f32.mrf.mxu0
  %3321 = vdwg.mxu0
  %v3322 = vadd.f32 %v3248, %v3319
  %v3324 = vsel %vm319, %v3238, 0
  %3326 = vmatprep.subr.mxu0 0.0
  %3327 = vmatpush1.msra.mxu0 0.0
  %3328 = vmatprep.subr.mxu0 0.0
  %3329 = vmatpush1.msra.mxu0 0.0
  %3330 = vmatprep.subr.mxu0 0.0
  %3331 = vmatpush1.msra.mxu0 0.0
  %3332 = vmatprep.subr.mxu0 0.0
  %3333 = vmatpush1.msra.mxu0 0.0
  %3334 = vmatprep.subr.mxu0 0.0
  %3335 = vmatpush1.msra.mxu0 0.0
  %3336 = vmatprep.subr.mxu0 0.0
  %3337 = vmatpush1.msra.mxu0 0.0
  %3338 = vmatprep.subr.mxu0 0.0
  %3339 = vmatpush1.msra.mxu0 0.0
  %3340 = vmatprep.subr.mxu0 0.0
  %3341 = vmatpush1.msra.mxu0 0.0
  %3342 = vmatprep.subr.mxu0 0.0
  %3343 = vmatpush1.msra.mxu0 0.0
  %3344 = vmatprep.subr.mxu0 0.0
  %3345 = vmatpush1.msra.mxu0 0.0
  %3346 = vmatprep.subr.mxu0 0.0
  %3347 = vmatpush1.msra.mxu0 0.0
  %3348 = vmatprep.subr.mxu0 0.0
  %3349 = vmatpush1.msra.mxu0 0.0
  %3350 = vmatprep.subr.mxu0 0.0
  %3351 = vmatpush1.msra.mxu0 0.0
  %3352 = vmatprep.subr.mxu0 0.0
  %3353 = vmatpush1.msra.mxu0 0.0
  %3354 = vmatprep.subr.mxu0 0.0
  %3355 = vmatpush1.msra.mxu0 %v3324
  %3356 = vmatprep.subr.mxu0 0.0
  %3357 = vmatpush1.msra.mxu0 %v3237
  %3358 = vmatprep.subr.mxu0 0.0
  %3359 = vmatpush2.msra.mxu0 0.0
  %3360 = vmatprep.subr.mxu0 0.0
  %3361 = vmatpush2.msra.mxu0 0.0
  %3362 = vmatprep.subr.mxu0 0.0
  %3363 = vmatpush2.msra.mxu0 0.0
  %3364 = vmatprep.subr.mxu0 0.0
  %3365 = vmatpush2.msra.mxu0 0.0
  %3366 = vmatprep.subr.mxu0 0.0
  %3367 = vmatpush2.msra.mxu0 0.0
  %3368 = vmatprep.subr.mxu0 0.0
  %3369 = vmatpush2.msra.mxu0 0.0
  %3370 = vmatprep.subr.mxu0 0.0
  %3371 = vmatpush2.msra.mxu0 0.0
  %3372 = vmatprep.subr.mxu0 0.0
  %3373 = vmatpush2.msra.mxu0 0.0
  %3374 = vmatprep.subr.mxu0 0.0
  %3375 = vmatpush2.msra.mxu0 0.0
  %3376 = vmatprep.subr.mxu0 0.0
  %3377 = vmatpush2.msra.mxu0 0.0
  %3378 = vmatprep.subr.mxu0 0.0
  %3379 = vmatpush2.msra.mxu0 0.0
  %3380 = vmatprep.subr.mxu0 0.0
  %3381 = vmatpush2.msra.mxu0 0.0
  %3382 = vmatprep.subr.mxu0 0.0
  %3383 = vmatpush2.msra.mxu0 0.0
  %3384 = vmatprep.subr.mxu0 0.0
  %3385 = vmatpush2.msra.mxu0 0.0
  %3386 = vmatprep.subr.mxu0 0.0
  %3387 = vmatpush2.msra.mxu0 0.0
  %3388 = vmatprep.subr.mxu0 0.0
  %3389 = vmatpush2.msra.mxu0 0.0
  %3390 = vmatprep.mubr.f32.mxu0 0.0
  %3391 = vmatmul.mubr.f32.gmra.mxu0 %v538
  %v3392 = vpop.f32.mrf.mxu0
  %v3393 = vadd.f32 0.0, %v3392
  %v3394 = vpop.f32.mrf.mxu0
  %3395 = vdwg.mxu0
  %v3396 = vadd.f32 %v3322, %v3393
  %v3397 = vrot.slane %v3235, 4
  %v3398 = vsel %vm213, %v3397, 0
  %3400 = vmatprep.subr.mxu0 0.0
  %3401 = vmatpush1.msra.mxu0 0.0
  %3402 = vmatprep.subr.mxu0 0.0
  %3403 = vmatpush1.msra.mxu0 0.0
  %3404 = vmatprep.subr.mxu0 0.0
  %3405 = vmatpush1.msra.mxu0 0.0
  %3406 = vmatprep.subr.mxu0 0.0
  %3407 = vmatpush1.msra.mxu0 0.0
  %3408 = vmatprep.subr.mxu0 0.0
  %3409 = vmatpush1.msra.mxu0 0.0
  %3410 = vmatprep.subr.mxu0 0.0
  %3411 = vmatpush1.msra.mxu0 0.0
  %3412 = vmatprep.subr.mxu0 0.0
  %3413 = vmatpush1.msra.mxu0 0.0
  %3414 = vmatprep.subr.mxu0 0.0
  %3415 = vmatpush1.msra.mxu0 0.0
  %3416 = vmatprep.subr.mxu0 0.0
  %3417 = vmatpush1.msra.mxu0 0.0
  %3418 = vmatprep.subr.mxu0 0.0
  %3419 = vmatpush1.msra.mxu0 0.0
  %3420 = vmatprep.subr.mxu0 0.0
  %3421 = vmatpush1.msra.mxu0 0.0
  %3422 = vmatprep.subr.mxu0 0.0
  %3423 = vmatpush1.msra.mxu0 0.0
  %3424 = vmatprep.subr.mxu0 0.0
  %3425 = vmatpush1.msra.mxu0 0.0
  %3426 = vmatprep.subr.mxu0 0.0
  %3427 = vmatpush1.msra.mxu0 0.0
  %3428 = vmatprep.subr.mxu0 0.0
  %3429 = vmatpush1.msra.mxu0 0.0
  %3430 = vmatprep.subr.mxu0 0.0
  %3431 = vmatpush1.msra.mxu0 %v3398
  %3432 = vmatprep.subr.mxu0 0.0
  %3433 = vmatpush2.msra.mxu0 0.0
  %3434 = vmatprep.subr.mxu0 0.0
  %3435 = vmatpush2.msra.mxu0 0.0
  %3436 = vmatprep.subr.mxu0 0.0
  %3437 = vmatpush2.msra.mxu0 0.0
  %3438 = vmatprep.subr.mxu0 0.0
  %3439 = vmatpush2.msra.mxu0 0.0
  %3440 = vmatprep.subr.mxu0 0.0
  %3441 = vmatpush2.msra.mxu0 0.0
  %3442 = vmatprep.subr.mxu0 0.0
  %3443 = vmatpush2.msra.mxu0 0.0
  %3444 = vmatprep.subr.mxu0 0.0
  %3445 = vmatpush2.msra.mxu0 0.0
  %3446 = vmatprep.subr.mxu0 0.0
  %3447 = vmatpush2.msra.mxu0 0.0
  %3448 = vmatprep.subr.mxu0 0.0
  %3449 = vmatpush2.msra.mxu0 0.0
  %3450 = vmatprep.subr.mxu0 0.0
  %3451 = vmatpush2.msra.mxu0 0.0
  %3452 = vmatprep.subr.mxu0 0.0
  %3453 = vmatpush2.msra.mxu0 0.0
  %3454 = vmatprep.subr.mxu0 0.0
  %3455 = vmatpush2.msra.mxu0 0.0
  %3456 = vmatprep.subr.mxu0 0.0
  %3457 = vmatpush2.msra.mxu0 0.0
  %3458 = vmatprep.subr.mxu0 0.0
  %3459 = vmatpush2.msra.mxu0 0.0
  %3460 = vmatprep.subr.mxu0 0.0
  %3461 = vmatpush2.msra.mxu0 0.0
  %3462 = vmatprep.subr.mxu0 0.0
  %3463 = vmatpush2.msra.mxu0 0.0
  %3464 = vmatprep.mubr.f32.mxu0 0.0
  %3465 = vmatmul.mubr.f32.gmra.mxu0 %v644
  %v3466 = vpop.f32.mrf.mxu0
  %v3467 = vadd.f32 0.0, %v3466
  %v3468 = vpop.f32.mrf.mxu0
  %3469 = vdwg.mxu0
  %v3470 = vadd.f32 %v3396, %v3467
  %v3472 = vrot.slane %v3238, 2
  %v3473 = vrot.slane %v3239, 2
  %v3474 = vsel %vm412, %v3472, %v3473
  %v3476 = vsel %vm319, %v3473, 0
  %3478 = vmatprep.subr.mxu0 0.0
  %3479 = vmatpush1.msra.mxu0 0.0
  %3480 = vmatprep.subr.mxu0 0.0
  %3481 = vmatpush1.msra.mxu0 0.0
  %3482 = vmatprep.subr.mxu0 0.0
  %3483 = vmatpush1.msra.mxu0 0.0
  %3484 = vmatprep.subr.mxu0 0.0
  %3485 = vmatpush1.msra.mxu0 0.0
  %3486 = vmatprep.subr.mxu0 0.0
  %3487 = vmatpush1.msra.mxu0 0.0
  %3488 = vmatprep.subr.mxu0 0.0
  %3489 = vmatpush1.msra.mxu0 0.0
  %3490 = vmatprep.subr.mxu0 0.0
  %3491 = vmatpush1.msra.mxu0 0.0
  %3492 = vmatprep.subr.mxu0 0.0
  %3493 = vmatpush1.msra.mxu0 0.0
  %3494 = vmatprep.subr.mxu0 0.0
  %3495 = vmatpush1.msra.mxu0 0.0
  %3496 = vmatprep.subr.mxu0 0.0
  %3497 = vmatpush1.msra.mxu0 0.0
  %3498 = vmatprep.subr.mxu0 0.0
  %3499 = vmatpush1.msra.mxu0 0.0
  %3500 = vmatprep.subr.mxu0 0.0
  %3501 = vmatpush1.msra.mxu0 0.0
  %3502 = vmatprep.subr.mxu0 0.0
  %3503 = vmatpush1.msra.mxu0 0.0
  %3504 = vmatprep.subr.mxu0 0.0
  %3505 = vmatpush1.msra.mxu0 0.0
  %3506 = vmatprep.subr.mxu0 0.0
  %3507 = vmatpush1.msra.mxu0 %v3476
  %3508 = vmatprep.subr.mxu0 0.0
  %3509 = vmatpush1.msra.mxu0 %v3474
  %3510 = vmatprep.subr.mxu0 0.0
  %3511 = vmatpush2.msra.mxu0 0.0
  %3512 = vmatprep.subr.mxu0 0.0
  %3513 = vmatpush2.msra.mxu0 0.0
  %3514 = vmatprep.subr.mxu0 0.0
  %3515 = vmatpush2.msra.mxu0 0.0
  %3516 = vmatprep.subr.mxu0 0.0
  %3517 = vmatpush2.msra.mxu0 0.0
  %3518 = vmatprep.subr.mxu0 0.0
  %3519 = vmatpush2.msra.mxu0 0.0
  %3520 = vmatprep.subr.mxu0 0.0
  %3521 = vmatpush2.msra.mxu0 0.0
  %3522 = vmatprep.subr.mxu0 0.0
  %3523 = vmatpush2.msra.mxu0 0.0
  %3524 = vmatprep.subr.mxu0 0.0
  %3525 = vmatpush2.msra.mxu0 0.0
  %3526 = vmatprep.subr.mxu0 0.0
  %3527 = vmatpush2.msra.mxu0 0.0
  %3528 = vmatprep.subr.mxu0 0.0
  %3529 = vmatpush2.msra.mxu0 0.0
  %3530 = vmatprep.subr.mxu0 0.0
  %3531 = vmatpush2.msra.mxu0 0.0
  %3532 = vmatprep.subr.mxu0 0.0
  %3533 = vmatpush2.msra.mxu0 0.0
  %3534 = vmatprep.subr.mxu0 0.0
  %3535 = vmatpush2.msra.mxu0 0.0
  %3536 = vmatprep.subr.mxu0 0.0
  %3537 = vmatpush2.msra.mxu0 0.0
  %3538 = vmatprep.subr.mxu0 0.0
  %3539 = vmatpush2.msra.mxu0 0.0
  %3540 = vmatprep.subr.mxu0 0.0
  %3541 = vmatpush2.msra.mxu0 0.0
  %3542 = vmatprep.mubr.f32.mxu0 0.0
  %3543 = vmatmul.mubr.f32.gmra.mxu0 %v756
  %v3544 = vpop.f32.mrf.mxu0
  %v3545 = vadd.f32 0.0, %v3544
  %v3546 = vpop.f32.mrf.mxu0
  %3547 = vdwg.mxu0
  %v3548 = vadd.f32 %v3470, %v3545
  %v3549 = vrot.slane %v71, 6
  %v3550 = vsel %vm200, %v3549, 0
  %v3553 = vsel %vm213, %v3236, 0
  %3555 = vmatprep.subr.mxu0 0.0
  %3556 = vmatpush1.msra.mxu0 0.0
  %3557 = vmatprep.subr.mxu0 0.0
  %3558 = vmatpush1.msra.mxu0 0.0
  %3559 = vmatprep.subr.mxu0 0.0
  %3560 = vmatpush1.msra.mxu0 0.0
  %3561 = vmatprep.subr.mxu0 0.0
  %3562 = vmatpush1.msra.mxu0 0.0
  %3563 = vmatprep.subr.mxu0 0.0
  %3564 = vmatpush1.msra.mxu0 0.0
  %3565 = vmatprep.subr.mxu0 0.0
  %3566 = vmatpush1.msra.mxu0 0.0
  %3567 = vmatprep.subr.mxu0 0.0
  %3568 = vmatpush1.msra.mxu0 0.0
  %3569 = vmatprep.subr.mxu0 0.0
  %3570 = vmatpush1.msra.mxu0 0.0
  %3571 = vmatprep.subr.mxu0 0.0
  %3572 = vmatpush1.msra.mxu0 0.0
  %3573 = vmatprep.subr.mxu0 0.0
  %3574 = vmatpush1.msra.mxu0 0.0
  %3575 = vmatprep.subr.mxu0 0.0
  %3576 = vmatpush1.msra.mxu0 0.0
  %3577 = vmatprep.subr.mxu0 0.0
  %3578 = vmatpush1.msra.mxu0 0.0
  %3579 = vmatprep.subr.mxu0 0.0
  %3580 = vmatpush1.msra.mxu0 0.0
  %3581 = vmatprep.subr.mxu0 0.0
  %3582 = vmatpush1.msra.mxu0 0.0
  %3583 = vmatprep.subr.mxu0 0.0
  %3584 = vmatpush1.msra.mxu0 0.0
  %3585 = vmatprep.subr.mxu0 0.0
  %3586 = vmatpush1.msra.mxu0 %v3553
  %3587 = vmatprep.subr.mxu0 0.0
  %3588 = vmatpush2.msra.mxu0 0.0
  %3589 = vmatprep.subr.mxu0 0.0
  %3590 = vmatpush2.msra.mxu0 0.0
  %3591 = vmatprep.subr.mxu0 0.0
  %3592 = vmatpush2.msra.mxu0 0.0
  %3593 = vmatprep.subr.mxu0 0.0
  %3594 = vmatpush2.msra.mxu0 0.0
  %3595 = vmatprep.subr.mxu0 0.0
  %3596 = vmatpush2.msra.mxu0 0.0
  %3597 = vmatprep.subr.mxu0 0.0
  %3598 = vmatpush2.msra.mxu0 0.0
  %3599 = vmatprep.subr.mxu0 0.0
  %3600 = vmatpush2.msra.mxu0 0.0
  %3601 = vmatprep.subr.mxu0 0.0
  %3602 = vmatpush2.msra.mxu0 0.0
  %3603 = vmatprep.subr.mxu0 0.0
  %3604 = vmatpush2.msra.mxu0 0.0
  %3605 = vmatprep.subr.mxu0 0.0
  %3606 = vmatpush2.msra.mxu0 0.0
  %3607 = vmatprep.subr.mxu0 0.0
  %3608 = vmatpush2.msra.mxu0 0.0
  %3609 = vmatprep.subr.mxu0 0.0
  %3610 = vmatpush2.msra.mxu0 0.0
  %3611 = vmatprep.subr.mxu0 0.0
  %3612 = vmatpush2.msra.mxu0 0.0
  %3613 = vmatprep.subr.mxu0 0.0
  %3614 = vmatpush2.msra.mxu0 0.0
  %3615 = vmatprep.subr.mxu0 0.0
  %3616 = vmatpush2.msra.mxu0 0.0
  %3617 = vmatprep.subr.mxu0 0.0
  %3618 = vmatpush2.msra.mxu0 0.0
  %3619 = vmatprep.mubr.f32.mxu0 0.0
  %3620 = vmatmul.mubr.f32.gmra.mxu0 %v3550
  %v3621 = vpop.f32.mrf.mxu0
  %v3622 = vadd.f32 0.0, %v3621
  %v3623 = vpop.f32.mrf.mxu0
  %3624 = vdwg.mxu0
  %v3625 = vadd.f32 %v3548, %v3622
  %v3626 = vrot.slane %v183, 6
  %v3628 = vrot.slane %v3239, 4
  %v3629 = vrot.slane %v3240, 4
  %v3630 = vsel %vm213, %v3628, %v3629
  %v3632 = vsel %vm306, %v3626, 0
  %v3634 = vsel %vm319, %v3629, 0
  %3636 = vmatprep.subr.mxu0 0.0
  %3637 = vmatpush1.msra.mxu0 0.0
  %3638 = vmatprep.subr.mxu0 0.0
  %3639 = vmatpush1.msra.mxu0 0.0
  %3640 = vmatprep.subr.mxu0 0.0
  %3641 = vmatpush1.msra.mxu0 0.0
  %3642 = vmatprep.subr.mxu0 0.0
  %3643 = vmatpush1.msra.mxu0 0.0
  %3644 = vmatprep.subr.mxu0 0.0
  %3645 = vmatpush1.msra.mxu0 0.0
  %3646 = vmatprep.subr.mxu0 0.0
  %3647 = vmatpush1.msra.mxu0 0.0
  %3648 = vmatprep.subr.mxu0 0.0
  %3649 = vmatpush1.msra.mxu0 0.0
  %3650 = vmatprep.subr.mxu0 0.0
  %3651 = vmatpush1.msra.mxu0 0.0
  %3652 = vmatprep.subr.mxu0 0.0
  %3653 = vmatpush1.msra.mxu0 0.0
  %3654 = vmatprep.subr.mxu0 0.0
  %3655 = vmatpush1.msra.mxu0 0.0
  %3656 = vmatprep.subr.mxu0 0.0
  %3657 = vmatpush1.msra.mxu0 0.0
  %3658 = vmatprep.subr.mxu0 0.0
  %3659 = vmatpush1.msra.mxu0 0.0
  %3660 = vmatprep.subr.mxu0 0.0
  %3661 = vmatpush1.msra.mxu0 0.0
  %3662 = vmatprep.subr.mxu0 0.0
  %3663 = vmatpush1.msra.mxu0 0.0
  %3664 = vmatprep.subr.mxu0 0.0
  %3665 = vmatpush1.msra.mxu0 %v3634
  %3666 = vmatprep.subr.mxu0 0.0
  %3667 = vmatpush1.msra.mxu0 %v3630
  %3668 = vmatprep.subr.mxu0 0.0
  %3669 = vmatpush2.msra.mxu0 0.0
  %3670 = vmatprep.subr.mxu0 0.0
  %3671 = vmatpush2.msra.mxu0 0.0
  %3672 = vmatprep.subr.mxu0 0.0
  %3673 = vmatpush2.msra.mxu0 0.0
  %3674 = vmatprep.subr.mxu0 0.0
  %3675 = vmatpush2.msra.mxu0 0.0
  %3676 = vmatprep.subr.mxu0 0.0
  %3677 = vmatpush2.msra.mxu0 0.0
  %3678 = vmatprep.subr.mxu0 0.0
  %3679 = vmatpush2.msra.mxu0 0.0
  %3680 = vmatprep.subr.mxu0 0.0
  %3681 = vmatpush2.msra.mxu0 0.0
  %3682 = vmatprep.subr.mxu0 0.0
  %3683 = vmatpush2.msra.mxu0 0.0
  %3684 = vmatprep.subr.mxu0 0.0
  %3685 = vmatpush2.msra.mxu0 0.0
  %3686 = vmatprep.subr.mxu0 0.0
  %3687 = vmatpush2.msra.mxu0 0.0
  %3688 = vmatprep.subr.mxu0 0.0
  %3689 = vmatpush2.msra.mxu0 0.0
  %3690 = vmatprep.subr.mxu0 0.0
  %3691 = vmatpush2.msra.mxu0 0.0
  %3692 = vmatprep.subr.mxu0 0.0
  %3693 = vmatpush2.msra.mxu0 0.0
  %3694 = vmatprep.subr.mxu0 0.0
  %3695 = vmatpush2.msra.mxu0 0.0
  %3696 = vmatprep.subr.mxu0 0.0
  %3697 = vmatpush2.msra.mxu0 0.0
  %3698 = vmatprep.subr.mxu0 0.0
  %3699 = vmatpush2.msra.mxu0 0.0
  %3700 = vmatprep.mubr.f32.mxu0 0.0
  %3701 = vmatmul.mubr.f32.gmra.mxu0 %v3632
  %v3702 = vpop.f32.mrf.mxu0
  %v3703 = vadd.f32 0.0, %v3702
  %v3704 = vpop.f32.mrf.mxu0
  %3705 = vdwg.mxu0
  %v3706 = vadd.f32 %v3625, %v3703
  %vm3707 = vcmask 58368
  %3708 = vst.msk [vmem:[%s21] sm:$0x3] %vm3707, %v3706
  // Predicated region
  $region86: #{fwd.1} parent=0 // pred_check
    _
  $region87: #{fwd.1} parent=0 // pred_check_branch
    %3710 = sbr.rel (0) target = $region89
  $region88: #{fwd.1} parent=0 // pred_region
    _
  $region89: #{fwd.1} parent=0 // pred_fallthru
    _
  // Predicated region
  $region90: #{fwd.1} parent=0 // pred_check
    _
  $region91: #{fwd.1} parent=0 // pred_check_branch
    %3712 = sbr.rel (0) target = $region93
  $region92: #{fwd.1} parent=0 // pred_region
    _
  $region93: #{fwd.1} parent=0 // pred_fallthru
    _

</llo_original>
